<compile_context>
chip_gen: v7x
topology: tpu7x:2x2x1
jax: 0.10.0
libtpu: 0.0.40
codegen_flags: <defaults>
</compile_context>

<pallas_src>
import math
import functools

import jax
import jax.numpy as jnp
from jax.experimental import pallas as pl
from jax.experimental.pallas import tpu as pltpu

LN_EPS = 1e-5
NEG_INF = -1e30  # additive key mask value (finite -> no NaN on fully padded rows)


# ----------------------------- shared math helpers -----------------------------

def _layernorm(x, g, b):
    mu = jnp.mean(x, axis=-1, keepdims=True)
    xc = x - mu
    var = jnp.mean(xc * xc, axis=-1, keepdims=True)
    return xc * jax.lax.rsqrt(var + LN_EPS) * g + b


def _gelu_tanh(x):
    # tanh-approximate GELU: tanh lowers to the EUP (its own bundle slot), keeping the
    # VALU free during the FFN-activation phase.
    c = math.sqrt(2.0 / math.pi)
    return 0.5 * x * (1.0 + jnp.tanh(c * (x + 0.044715 * x * x * x)))


def _gelu_ref(x):  # exact erf GELU (pure-JAX reference only)
    return 0.5 * x * (1.0 + jax.lax.erf(x * (1.0 / math.sqrt(2.0))))


# --------------------------------- kernels --------------------------------------

def embed_ln_kernel(tok_ref, pos_ref, g_ref, b_ref, o_ref):
    # (token embedding + positional embedding) -> embedding LayerNorm, row-tiled.
    x = tok_ref[...] + pos_ref[...]                     # (TM, E)
    o_ref[...] = _layernorm(x, g_ref[...], b_ref[...])


def encoder_layer_kernel(x_ref, mask_ref,
                         wqkv_ref, bqkv_ref, wo_ref, bo_ref,
                         g1_ref, b1_ref,
                         w1_ref, bf1_ref, w2_ref, bf2_ref,
                         g2_ref, b2_ref, o_ref, *, num_heads, scaling):
    # Fully fused post-norm encoder layer for one sequence per grid step:
    #   MHSA + residual + LN1 + FFN + residual + LN2   (no HBM round-trip in between).
    # Heads are batched into single einsums; bf16 matmul inputs, f32 accumulate,
    # residual/LN path kept in f32.
    x = x_ref[0]                                        # (T, E) f32
    T, E = x.shape
    H = num_heads
    Dh = E // H

    # ---- multi-head self-attention ----
    # fused QKV projection  (T, 3E)
    qkv = jnp.dot(x.astype(jnp.bfloat16), wqkv_ref[...],
                  preferred_element_type=jnp.float32) + bqkv_ref[...]
    q = (qkv[:, :E] * scaling).reshape(T, H, Dh)
    k = qkv[:, E:2 * E].reshape(T, H, Dh)
    v = qkv[:, 2 * E:].reshape(T, H, Dh)

    # batched multi-head scores  (H, T, T)
    s = jnp.einsum('thd,shd->hts',
                   q.astype(jnp.bfloat16), k.astype(jnp.bfloat16),
                   preferred_element_type=jnp.float32)
    s = s + mask_ref[0]                                 # (1, T) additive mask, broadcasts

    m = jnp.max(s, axis=-1, keepdims=True)
    p = jnp.exp(s - m)
    p = p * pl.reciprocal(jnp.sum(p, axis=-1, keepdims=True), approx=True)

    ctx = jnp.einsum('hts,shd->thd',
                     p.astype(jnp.bfloat16), v.astype(jnp.bfloat16),
                     preferred_element_type=jnp.float32).reshape(T, E)

    attn = jnp.dot(ctx.astype(jnp.bfloat16), wo_ref[...],
                   preferred_element_type=jnp.float32) + bo_ref[...]

    # post-norm residual + LayerNorm 1
    h1 = _layernorm(x + attn, g1_ref[...], b1_ref[...])

    # ---- feed-forward network ----
    ff = _gelu_tanh(jnp.dot(h1.astype(jnp.bfloat16), w1_ref[...],
                            preferred_element_type=jnp.float32) + bf1_ref[...])
    ff = jnp.dot(ff.astype(jnp.bfloat16), w2_ref[...],
                 preferred_element_type=jnp.float32) + bf2_ref[...]

    # post-norm residual + LayerNorm 2
    o_ref[0] = _layernorm(h1 + ff, g2_ref[...], b2_ref[...])


# ------------------------------- host wrapper ------------------------------------

def roberta_encoder_forward(tokens, params, *, padding_idx, num_heads, scaling,
                            token_tile=256, vmem_limit_bytes=48 * 1024 * 1024):
    B, T = tokens.shape
    E = params['tok_emb'].shape[1]
    F = params['layers'][0]['w1'].shape[1]
    N = B * T

    # embedding lookups + position computation = glue in plain JAX
    not_pad = (tokens != padding_idx).astype(jnp.int32)
    positions = jnp.cumsum(not_pad, axis=1) * not_pad + padding_idx
    tok_e = params['tok_emb'][tokens].reshape(N, E)     # (N, E)
    pos_e = params['pos_emb'][positions].reshape(N, E)  # (N, E)
    # additive key-padding mask: 0 keep / -1e30 drop  (B, 1, T)
    add_mask = jnp.where(tokens == padding_idx, NEG_INF, 0.0).astype(jnp.float32)
    add_mask = add_mask[:, None, :]

    cp = pltpu.CompilerParams(dimension_semantics=("parallel",),
                              vmem_limit_bytes=vmem_limit_bytes)

    # token-row tile: either the full N (small inputs) or a multiple-of-8 tile
    tm = min(token_tile, N)
    row_spec = pl.BlockSpec((tm, E), lambda i: (i, 0))

    def resident(shape):  # weight/bias stays in VMEM across all grid steps
        nd = len(shape)
        return pl.BlockSpec(shape, lambda *_: (0,) * nd)

    # ---- embedding + LayerNorm (memory-bound, row tiled) ----
    x = pl.pallas_call(
        embed_ln_kernel,
        out_shape=jax.ShapeDtypeStruct((N, E), jnp.float32),
        grid=(pl.cdiv(N, tm),),
        in_specs=[row_spec, row_spec, resident((1, E)), resident((1, E))],
        out_specs=row_spec,
        compiler_params=cp,
    )(tok_e, pos_e, params['emb_ln_g'], params['emb_ln_b'])

    x = x.reshape(B, T, E)

    layer_kernel = functools.partial(encoder_layer_kernel,
                                     num_heads=num_heads, scaling=scaling)
    seq_spec = pl.BlockSpec((1, T, E), lambda b: (b, 0, 0))
    mask_spec = pl.BlockSpec((1, 1, T), lambda b: (b, 0, 0))

    for lyr in params['layers']:
        # ---- fused MHSA + LN1 + FFN + LN2 : one sequence per grid step ----
        x = pl.pallas_call(
            layer_kernel,
            out_shape=jax.ShapeDtypeStruct((B, T, E), jnp.float32),
            grid=(B,),
            in_specs=[
                seq_spec,
                mask_spec,
                resident((E, 3 * E)), resident((1, 3 * E)),
                resident((E, E)),     resident((1, E)),
                resident((1, E)),     resident((1, E)),
                resident((E, F)),     resident((1, F)),
                resident((F, E)),     resident((1, E)),
                resident((1, E)),     resident((1, E)),
            ],
            out_specs=seq_spec,
            compiler_params=cp,
        )(x, add_mask,
          lyr['wqkv'].astype(jnp.bfloat16), lyr['bqkv'],
          lyr['wo'].astype(jnp.bfloat16), lyr['bo'],
          lyr['ln1_g'], lyr['ln1_b'],
          lyr['w1'].astype(jnp.bfloat16), lyr['b1'],
          lyr['w2'].astype(jnp.bfloat16), lyr['b2'],
          lyr['ln2_g'], lyr['ln2_b'])

    return x


# ------------------------------- reference (pure JAX, f32) ------------------------

def reference_forward(tokens, params, *, padding_idx, num_heads, scaling):
    not_pad = (tokens != padding_idx).astype(jnp.int32)
    positions = jnp.cumsum(not_pad, axis=1) * not_pad + padding_idx
    x = params['tok_emb'][tokens] + params['pos_emb'][positions]
    x = _layernorm(x, params['emb_ln_g'], params['emb_ln_b'])
    pad = (tokens == padding_idx)
    B, T = tokens.shape
    E = x.shape[-1]
    H = num_heads
    Dh = E // H
    for lyr in params['layers']:
        qkv = x @ lyr['wqkv'] + lyr['bqkv']
        q = (qkv[..., :E] * scaling).reshape(B, T, H, Dh)
        k = qkv[..., E:2 * E].reshape(B, T, H, Dh)
        v = qkv[..., 2 * E:].reshape(B, T, H, Dh)
        s = jnp.einsum('bthd,bshd->bhts', q, k)
        s = jnp.where(pad[:, None, None, :], -jnp.inf, s)
        p = jax.nn.softmax(s, axis=-1)
        ctx = jnp.einsum('bhts,bshd->bthd', p, v).reshape(B, T, E)
        attn = ctx @ lyr['wo'] + lyr['bo']
        h1 = _layernorm(x + attn, lyr['ln1_g'], lyr['ln1_b'])
        ff = _gelu_ref(h1 @ lyr['w1'] + lyr['b1'])
        ff = ff @ lyr['w2'] + lyr['b2']
        x = _layernorm(h1 + ff, lyr['ln2_g'], lyr['ln2_b'])
    return x


# ------------------------------- parameter init -----------------------------------

def init_params(key, *, vocab_size, embedding_dim, ffn_dimension,
                max_seq_len, padding_idx, num_layers):
    E, F = embedding_dim, ffn_dimension

    def nrm(k, shape, scale=0.02):
        return scale * jax.random.normal(k, shape, jnp.float32)

    keys = jax.random.split(key, 2 + num_layers)
    tok_emb = nrm(keys[0], (vocab_size, E)).at[padding_idx].set(0.0)   # nn.Embedding padding_idx
    pos_emb = nrm(keys[1], (max_seq_len, E)).at[padding_idx].set(0.0)

    params = dict(
        tok_emb=tok_emb, pos_emb=pos_emb,
        emb_ln_g=jnp.ones((1, E), jnp.float32),
        emb_ln_b=jnp.zeros((1, E), jnp.float32),
        layers=[],
    )
    for i in range(num_layers):
        ks = jax.random.split(keys[2 + i], 8)
        params['layers'].append(dict(
            wqkv=nrm(ks[0], (E, 3 * E)), bqkv=nrm(ks[1], (1, 3 * E)),
            wo=nrm(ks[2], (E, E)),       bo=nrm(ks[3], (1, E)),
            ln1_g=jnp.ones((1, E), jnp.float32), ln1_b=jnp.zeros((1, E), jnp.float32),
            w1=nrm(ks[4], (E, F)),       b1=nrm(ks[5], (1, F)),
            w2=nrm(ks[6], (F, E)),       b2=nrm(ks[7], (1, E)),
            ln2_g=jnp.ones((1, E), jnp.float32), ln2_b=jnp.zeros((1, E), jnp.float32),
        ))
    return params


# ------------------------------------ main ----------------------------------------

if __name__ == "__main__":
    # small RobertaEncoder config
    B, T = 2, 8
    vocab_size = 100
    embedding_dim = 32
    ffn_dimension = 64
    padding_idx = 1
    max_seq_len = 64
    num_attention_heads = 4
    num_encoder_layers = 2
    head_dim = embedding_dim // num_attention_heads
    scaling = 1.0 / math.sqrt(head_dim)            # default scaling in RobertaEncoder

    key = jax.random.PRNGKey(0)
    kp, kt = jax.random.split(key)
    params = init_params(kp, vocab_size=vocab_size, embedding_dim=embedding_dim,
                         ffn_dimension=ffn_dimension, max_seq_len=max_seq_len,
                         padding_idx=padding_idx, num_layers=num_encoder_layers)

    tokens = jax.random.randint(kt, (B, T), 2, vocab_size, dtype=jnp.int32)
    tokens = tokens.at[1, 6:].set(padding_idx)     # some padding in the second sequence

    fwd = jax.jit(functools.partial(roberta_encoder_forward,
                                    padding_idx=padding_idx,
                                    num_heads=num_attention_heads,
                                    scaling=scaling))
    out = jax.block_until_ready(fwd(tokens, params))

    ref = reference_forward(tokens, params, padding_idx=padding_idx,
                            num_heads=num_attention_heads, scaling=scaling)

    assert out.shape == (B, T, embedding_dim), out.shape
    # bf16 matmul inputs + tanh-GELU + approx reciprocal -> loosened tolerance vs f32 ref
    max_err = float(jnp.max(jnp.abs(out - ref)))
    assert max_err < 2e-2, f"mismatch vs reference, max abs err = {max_err}"

    print("KERNEL_OK")
</pallas_src>

<mosaic_0001>
module attributes {stable_mosaic.version = 11 : i64} {
  func.func @embed_ln_kernel(%arg0: i32, %arg1: memref<16x32xf32, #tpu.memory_space<vmem>>, %arg2: memref<16x32xf32, #tpu.memory_space<vmem>>, %arg3: memref<1x32xf32, #tpu.memory_space<vmem>>, %arg4: memref<1x32xf32, #tpu.memory_space<vmem>>, %arg5: memref<16x32xf32, #tpu.memory_space<vmem>>) attributes {dimension_semantics = [#tpu.dimension_semantics<parallel>], iteration_bounds = array<i64: 1>, scalar_prefetch = 0 : i64, scratch_operands = 0 : i64, tpu.core_type = #tpu.core_type<tc>, window_params = [{transform_indices = @transform_0, window_bounds = array<i64: 16, 32>}, {transform_indices = @transform_1, window_bounds = array<i64: 16, 32>}, {pipeline_mode = #tpu.pipeline_mode<synchronous>, transform_indices = @transform_2, window_bounds = array<i64: 1, 32>}, {pipeline_mode = #tpu.pipeline_mode<synchronous>, transform_indices = @transform_3, window_bounds = array<i64: 1, 32>}, {transform_indices = @transform_4, window_bounds = array<i64: 16, 32>}]} {
    %c0 = arith.constant 0 : index
    %c0_0 = arith.constant 0 : index
    %0 = vector.load %arg1[%c0, %c0_0] : memref<16x32xf32, #tpu.memory_space<vmem>>, vector<16x32xf32>
    %c0_1 = arith.constant 0 : index
    %c0_2 = arith.constant 0 : index
    %1 = vector.load %arg2[%c0_1, %c0_2] : memref<16x32xf32, #tpu.memory_space<vmem>>, vector<16x32xf32>
    %2 = arith.addf %0, %1 : vector<16x32xf32>
    %c0_3 = arith.constant 0 : index
    %c0_4 = arith.constant 0 : index
    %3 = vector.load %arg3[%c0_3, %c0_4] : memref<1x32xf32, #tpu.memory_space<vmem>>, vector<1x32xf32>
    %c0_5 = arith.constant 0 : index
    %c0_6 = arith.constant 0 : index
    %4 = vector.load %arg4[%c0_5, %c0_6] : memref<1x32xf32, #tpu.memory_space<vmem>>, vector<1x32xf32>
    %cst = arith.constant dense<0.000000e+00> : vector<16xf32>
    %5 = vector.multi_reduction <add>, %2, %cst [1] : vector<16x32xf32> to vector<16xf32>
    %6 = vector.shape_cast %5 : vector<16xf32> to vector<16x1xf32>
    %cst_7 = arith.constant 3.200000e+01 : f32
    %7 = vector.broadcast %cst_7 : f32 to vector<16x1xf32>
    %8 = arith.divf %6, %7 : vector<16x1xf32>
    %9 = vector.broadcast %8 : vector<16x1xf32> to vector<16x32xf32>
    %10 = arith.subf %2, %9 : vector<16x32xf32>
    %11 = arith.mulf %10, %10 : vector<16x32xf32>
    %cst_8 = arith.constant dense<0.000000e+00> : vector<16xf32>
    %12 = vector.multi_reduction <add>, %11, %cst_8 [1] : vector<16x32xf32> to vector<16xf32>
    %13 = vector.shape_cast %12 : vector<16xf32> to vector<16x1xf32>
    %cst_9 = arith.constant 3.200000e+01 : f32
    %14 = vector.broadcast %cst_9 : f32 to vector<16x1xf32>
    %15 = arith.divf %13, %14 : vector<16x1xf32>
    %cst_10 = arith.constant 9.99999974E-6 : f32
    %16 = vector.broadcast %cst_10 : f32 to vector<16x1xf32>
    %17 = arith.addf %15, %16 : vector<16x1xf32>
    %18 = math.rsqrt %17 : vector<16x1xf32>
    %19 = vector.broadcast %18 : vector<16x1xf32> to vector<16x32xf32>
    %20 = arith.mulf %10, %19 : vector<16x32xf32>
    %21 = vector.broadcast %3 : vector<1x32xf32> to vector<16x32xf32>
    %22 = arith.mulf %20, %21 : vector<16x32xf32>
    %23 = vector.broadcast %4 : vector<1x32xf32> to vector<16x32xf32>
    %24 = arith.addf %22, %23 : vector<16x32xf32>
    %c0_11 = arith.constant 0 : index
    %c0_12 = arith.constant 0 : index
    %25 = vector.load %arg5[%c0_11, %c0_12] : memref<16x32xf32, #tpu.memory_space<vmem>>, vector<16x32xf32>
    tpu.vector_store %arg5[%c0_11, %c0_12], %24 {strides = array<i32>} : memref<16x32xf32, #tpu.memory_space<vmem>>, vector<16x32xf32>,
    return
  }
  func.func @transform_0(%arg0: i32) -> (i32, i32) {
    %c0_i32 = arith.constant 0 : i32
    %c0_i32_0 = arith.constant 0 : i32
    return %arg0, %c0_i32 : i32, i32
  }
  func.func @transform_1(%arg0: i32) -> (i32, i32) {
    %c0_i32 = arith.constant 0 : i32
    %c0_i32_0 = arith.constant 0 : i32
    return %arg0, %c0_i32 : i32, i32
  }
  func.func @transform_2(%arg0: i32) -> (i32, i32) {
    %c0_i32 = arith.constant 0 : i32
    %c0_i32_0 = arith.constant 0 : i32
    %c0_i32_1 = arith.constant 0 : i32
    return %c0_i32, %c0_i32_0 : i32, i32
  }
  func.func @transform_3(%arg0: i32) -> (i32, i32) {
    %c0_i32 = arith.constant 0 : i32
    %c0_i32_0 = arith.constant 0 : i32
    %c0_i32_1 = arith.constant 0 : i32
    return %c0_i32, %c0_i32_0 : i32, i32
  }
  func.func @transform_4(%arg0: i32) -> (i32, i32) {
    %c0_i32 = arith.constant 0 : i32
    %c0_i32_0 = arith.constant 0 : i32
    return %arg0, %c0_i32 : i32, i32
  }
}

module attributes {stable_mosaic.version = 11 : i64} {
  func.func @encoder_layer_kernel(%arg0: i32, %arg1: memref<1x8x32xf32, #tpu.memory_space<vmem>>, %arg2: memref<1x1x8xf32, #tpu.memory_space<vmem>>, %arg3: memref<32x96xbf16, #tpu.memory_space<vmem>>, %arg4: memref<1x96xf32, #tpu.memory_space<vmem>>, %arg5: memref<32x32xbf16, #tpu.memory_space<vmem>>, %arg6: memref<1x32xf32, #tpu.memory_space<vmem>>, %arg7: memref<1x32xf32, #tpu.memory_space<vmem>>, %arg8: memref<1x32xf32, #tpu.memory_space<vmem>>, %arg9: memref<32x64xbf16, #tpu.memory_space<vmem>>, %arg10: memref<1x64xf32, #tpu.memory_space<vmem>>, %arg11: memref<64x32xbf16, #tpu.memory_space<vmem>>, %arg12: memref<1x32xf32, #tpu.memory_space<vmem>>, %arg13: memref<1x32xf32, #tpu.memory_space<vmem>>, %arg14: memref<1x32xf32, #tpu.memory_space<vmem>>, %arg15: memref<1x8x32xf32, #tpu.memory_space<vmem>>) attributes {dimension_semantics = [#tpu.dimension_semantics<parallel>], iteration_bounds = array<i64: 2>, scalar_prefetch = 0 : i64, scratch_operands = 0 : i64, tpu.core_type = #tpu.core_type<tc>, window_params = [{transform_indices = @transform_0, window_bounds = array<i64: 1, 8, 32>}, {transform_indices = @transform_1, window_bounds = array<i64: 1, 1, 8>}, {pipeline_mode = #tpu.pipeline_mode<synchronous>, transform_indices = @transform_2, window_bounds = array<i64: 32, 96>}, {pipeline_mode = #tpu.pipeline_mode<synchronous>, transform_indices = @transform_3, window_bounds = array<i64: 1, 96>}, {pipeline_mode = #tpu.pipeline_mode<synchronous>, transform_indices = @transform_4, window_bounds = array<i64: 32, 32>}, {pipeline_mode = #tpu.pipeline_mode<synchronous>, transform_indices = @transform_5, window_bounds = array<i64: 1, 32>}, {pipeline_mode = #tpu.pipeline_mode<synchronous>, transform_indices = @transform_6, window_bounds = array<i64: 1, 32>}, {pipeline_mode = #tpu.pipeline_mode<synchronous>, transform_indices = @transform_7, window_bounds = array<i64: 1, 32>}, {pipeline_mode = #tpu.pipeline_mode<synchronous>, transform_indices = @transform_8, window_bounds = array<i64: 32, 64>}, {pipeline_mode = #tpu.pipeline_mode<synchronous>, transform_indices = @transform_9, window_bounds = array<i64: 1, 64>}, {pipeline_mode = #tpu.pipeline_mode<synchronous>, transform_indices = @transform_10, window_bounds = array<i64: 64, 32>}, {pipeline_mode = #tpu.pipeline_mode<synchronous>, transform_indices = @transform_11, window_bounds = array<i64: 1, 32>}, {pipeline_mode = #tpu.pipeline_mode<synchronous>, transform_indices = @transform_12, window_bounds = array<i64: 1, 32>}, {pipeline_mode = #tpu.pipeline_mode<synchronous>, transform_indices = @transform_13, window_bounds = array<i64: 1, 32>}, {transform_indices = @transform_14, window_bounds = array<i64: 1, 8, 32>}]} {
    %c0 = arith.constant 0 : index
    %c0_0 = arith.constant 0 : index
    %c0_1 = arith.constant 0 : index
    %0 = vector.load %arg1[%c0, %c0_0, %c0_1] : memref<1x8x32xf32, #tpu.memory_space<vmem>>, vector<1x8x32xf32>
    %1 = vector.shape_cast %0 : vector<1x8x32xf32> to vector<8x32xf32>
    %2 = arith.truncf %1 : vector<8x32xf32> to vector<8x32xbf16>
    %c0_2 = arith.constant 0 : index
    %c0_3 = arith.constant 0 : index
    %3 = vector.load %arg3[%c0_2, %c0_3] : memref<32x96xbf16, #tpu.memory_space<vmem>>, vector<32x96xbf16>
    %cst = arith.constant dense<0.000000e+00> : vector<8x96xf32>
    %4 = tpu.matmul %2, %3, %cst {dimension_numbers = #tpu.dot_dimension_numbers<[1], [0], [0], [1], [0, 0, 1, 1], [], []>} : vector<8x32xbf16>, vector<32x96xbf16>, vector<8x96xf32> -> vector<8x96xf32>
    %c0_4 = arith.constant 0 : index
    %c0_5 = arith.constant 0 : index
    %5 = vector.load %arg4[%c0_4, %c0_5] : memref<1x96xf32, #tpu.memory_space<vmem>>, vector<1x96xf32>
    %6 = vector.broadcast %5 : vector<1x96xf32> to vector<8x96xf32>
    %7 = arith.addf %4, %6 : vector<8x96xf32>
    %8 = vector.extract_strided_slice %7 {offsets = [0, 0], sizes = [8, 32], strides = [1, 1]} : vector<8x96xf32> to vector<8x32xf32>
    %cst_6 = arith.constant 0.353553385 : f32
    %9 = vector.broadcast %cst_6 : f32 to vector<8x32xf32>
    %10 = arith.mulf %8, %9 : vector<8x32xf32>
    %11 = vector.shape_cast %10 : vector<8x32xf32> to vector<8x4x8xf32>
    %12 = vector.extract_strided_slice %7 {offsets = [0, 32], sizes = [8, 32], strides = [1, 1]} : vector<8x96xf32> to vector<8x32xf32>
    %13 = vector.shape_cast %12 : vector<8x32xf32> to vector<8x4x8xf32>
    %14 = vector.extract_strided_slice %7 {offsets = [0, 64], sizes = [8, 32], strides = [1, 1]} : vector<8x96xf32> to vector<8x32xf32>
    %15 = vector.shape_cast %14 : vector<8x32xf32> to vector<8x4x8xf32>
    %16 = arith.truncf %11 : vector<8x4x8xf32> to vector<8x4x8xbf16>
    %17 = arith.truncf %13 : vector<8x4x8xf32> to vector<8x4x8xbf16>
    "tpu.trace_start"() <{level = 10 : i32, message = "thd,shd->hts"}> : () -> ()
    %cst_7 = arith.constant dense<0.000000e+00> : vector<4x8x8xf32>
    %18 = tpu.matmul %16, %17, %cst_7 {dimension_numbers = #tpu.dot_dimension_numbers<[2], [2], [0], [0], [0, 1, 0, 0, 1, 0], [1], [1]>} : vector<8x4x8xbf16>, vector<8x4x8xbf16>, vector<4x8x8xf32> -> vector<4x8x8xf32>
    "tpu.trace_stop"() : () -> ()
    %c0_8 = arith.constant 0 : index
    %c0_9 = arith.constant 0 : index
    %c0_10 = arith.constant 0 : index
    %19 = vector.load %arg2[%c0_8, %c0_9, %c0_10] : memref<1x1x8xf32, #tpu.memory_space<vmem>>, vector<1x1x8xf32>
    %20 = vector.shape_cast %19 : vector<1x1x8xf32> to vector<1x8xf32>
    %21 = vector.shape_cast %20 : vector<1x8xf32> to vector<1x1x8xf32>
    %22 = vector.broadcast %21 : vector<1x1x8xf32> to vector<4x8x8xf32>
    %23 = arith.addf %18, %22 : vector<4x8x8xf32>
    %cst_11 = arith.constant dense<0xFF800000> : vector<4x8xf32>
    %24 = vector.multi_reduction <maximumf>, %23, %cst_11 [2] : vector<4x8x8xf32> to vector<4x8xf32>
    %25 = vector.shape_cast %24 : vector<4x8xf32> to vector<4x8x1xf32>
    %26 = vector.broadcast %25 : vector<4x8x1xf32> to vector<4x8x8xf32>
    %27 = arith.subf %23, %26 : vector<4x8x8xf32>
    %28 = math.exp %27 : vector<4x8x8xf32>
    %cst_12 = arith.constant dense<0.000000e+00> : vector<4x8xf32>
    %29 = vector.multi_reduction <add>, %28, %cst_12 [2] : vector<4x8x8xf32> to vector<4x8xf32>
    %30 = vector.shape_cast %29 : vector<4x8xf32> to vector<4x8x1xf32>
    %31 = tpu.reciprocal %30 {approx = true} : vector<4x8x1xf32> -> vector<4x8x1xf32>
    %32 = vector.broadcast %31 : vector<4x8x1xf32> to vector<4x8x8xf32>
    %33 = arith.mulf %28, %32 : vector<4x8x8xf32>
    %34 = arith.truncf %33 : vector<4x8x8xf32> to vector<4x8x8xbf16>
    %35 = arith.truncf %15 : vector<8x4x8xf32> to vector<8x4x8xbf16>
    "tpu.trace_start"() <{level = 10 : i32, message = "hts,shd->thd"}> : () -> ()
    %cst_13 = arith.constant dense<0.000000e+00> : vector<4x8x8xf32>
    %36 = tpu.matmul %35, %34, %cst_13 {dimension_numbers = #tpu.dot_dimension_numbers<[0], [2], [2], [1], [0, 1, 0, 2, 1, 1], [1], [0]>} : vector<8x4x8xbf16>, vector<4x8x8xbf16>, vector<4x8x8xf32> -> vector<4x8x8xf32>
    %37 = tpu.transpose %36, [2, 0, 1] : vector<4x8x8xf32> -> vector<8x4x8xf32>
    "tpu.trace_stop"() : () -> ()
    %38 = vector.shape_cast %37 : vector<8x4x8xf32> to vector<8x32xf32>
    %39 = arith.truncf %38 : vector<8x32xf32> to vector<8x32xbf16>
    %c0_14 = arith.constant 0 : index
    %c0_15 = arith.constant 0 : index
    %40 = vector.load %arg5[%c0_14, %c0_15] : memref<32x32xbf16, #tpu.memory_space<vmem>>, vector<32x32xbf16>
    %cst_16 = arith.constant dense<0.000000e+00> : vector<8x32xf32>
    %41 = tpu.matmul %39, %40, %cst_16 {dimension_numbers = #tpu.dot_dimension_numbers<[1], [0], [0], [1], [0, 0, 1, 1], [], []>} : vector<8x32xbf16>, vector<32x32xbf16>, vector<8x32xf32> -> vector<8x32xf32>
    %c0_17 = arith.constant 0 : index
    %c0_18 = arith.constant 0 : index
    %42 = vector.load %arg6[%c0_17, %c0_18] : memref<1x32xf32, #tpu.memory_space<vmem>>, vector<1x32xf32>
    %43 = vector.broadcast %42 : vector<1x32xf32> to vector<8x32xf32>
    %44 = arith.addf %41, %43 : vector<8x32xf32>
    %45 = arith.addf %1, %44 : vector<8x32xf32>
    %c0_19 = arith.constant 0 : index
    %c0_20 = arith.constant 0 : index
    %46 = vector.load %arg7[%c0_19, %c0_20] : memref<1x32xf32, #tpu.memory_space<vmem>>, vector<1x32xf32>
    %c0_21 = arith.constant 0 : index
    %c0_22 = arith.constant 0 : index
    %47 = vector.load %arg8[%c0_21, %c0_22] : memref<1x32xf32, #tpu.memory_space<vmem>>, vector<1x32xf32>
    %cst_23 = arith.constant dense<0.000000e+00> : vector<8xf32>
    %48 = vector.multi_reduction <add>, %45, %cst_23 [1] : vector<8x32xf32> to vector<8xf32>
    %49 = vector.shape_cast %48 : vector<8xf32> to vector<8x1xf32>
    %cst_24 = arith.constant 3.200000e+01 : f32
    %50 = vector.broadcast %cst_24 : f32 to vector<8x1xf32>
    %51 = arith.divf %49, %50 : vector<8x1xf32>
    %52 = vector.broadcast %51 : vector<8x1xf32> to vector<8x32xf32>
    %53 = arith.subf %45, %52 : vector<8x32xf32>
    %54 = arith.mulf %53, %53 : vector<8x32xf32>
    %cst_25 = arith.constant dense<0.000000e+00> : vector<8xf32>
    %55 = vector.multi_reduction <add>, %54, %cst_25 [1] : vector<8x32xf32> to vector<8xf32>
    %56 = vector.shape_cast %55 : vector<8xf32> to vector<8x1xf32>
    %cst_26 = arith.constant 3.200000e+01 : f32
    %57 = vector.broadcast %cst_26 : f32 to vector<8x1xf32>
    %58 = arith.divf %56, %57 : vector<8x1xf32>
    %cst_27 = arith.constant 9.99999974E-6 : f32
    %59 = vector.broadcast %cst_27 : f32 to vector<8x1xf32>
    %60 = arith.addf %58, %59 : vector<8x1xf32>
    %61 = math.rsqrt %60 : vector<8x1xf32>
    %62 = vector.broadcast %61 : vector<8x1xf32> to vector<8x32xf32>
    %63 = arith.mulf %53, %62 : vector<8x32xf32>
    %64 = vector.broadcast %46 : vector<1x32xf32> to vector<8x32xf32>
    %65 = arith.mulf %63, %64 : vector<8x32xf32>
    %66 = vector.broadcast %47 : vector<1x32xf32> to vector<8x32xf32>
    %67 = arith.addf %65, %66 : vector<8x32xf32>
    %68 = arith.truncf %67 : vector<8x32xf32> to vector<8x32xbf16>
    %c0_28 = arith.constant 0 : index
    %c0_29 = arith.constant 0 : index
    %69 = vector.load %arg9[%c0_28, %c0_29] : memref<32x64xbf16, #tpu.memory_space<vmem>>, vector<32x64xbf16>
    %cst_30 = arith.constant dense<0.000000e+00> : vector<8x64xf32>
    %70 = tpu.matmul %68, %69, %cst_30 {dimension_numbers = #tpu.dot_dimension_numbers<[1], [0], [0], [1], [0, 0, 1, 1], [], []>} : vector<8x32xbf16>, vector<32x64xbf16>, vector<8x64xf32> -> vector<8x64xf32>
    %c0_31 = arith.constant 0 : index
    %c0_32 = arith.constant 0 : index
    %71 = vector.load %arg10[%c0_31, %c0_32] : memref<1x64xf32, #tpu.memory_space<vmem>>, vector<1x64xf32>
    %72 = vector.broadcast %71 : vector<1x64xf32> to vector<8x64xf32>
    %73 = arith.addf %70, %72 : vector<8x64xf32>
    %cst_33 = arith.constant 5.000000e-01 : f32
    %74 = vector.broadcast %cst_33 : f32 to vector<8x64xf32>
    %75 = arith.mulf %74, %73 : vector<8x64xf32>
    %cst_34 = arith.constant 4.471500e-02 : f32
    %76 = vector.broadcast %cst_34 : f32 to vector<8x64xf32>
    %77 = arith.mulf %76, %73 : vector<8x64xf32>
    %78 = arith.mulf %77, %73 : vector<8x64xf32>
    %79 = arith.mulf %78, %73 : vector<8x64xf32>
    %80 = arith.addf %73, %79 : vector<8x64xf32>
    %cst_35 = arith.constant 0.797884583 : f32
    %81 = vector.broadcast %cst_35 : f32 to vector<8x64xf32>
    %82 = arith.mulf %81, %80 : vector<8x64xf32>
    %83 = math.tanh %82 : vector<8x64xf32>
    %cst_36 = arith.constant 1.000000e+00 : f32
    %84 = vector.broadcast %cst_36 : f32 to vector<8x64xf32>
    %85 = arith.addf %84, %83 : vector<8x64xf32>
    %86 = arith.mulf %75, %85 : vector<8x64xf32>
    %87 = arith.truncf %86 : vector<8x64xf32> to vector<8x64xbf16>
    %c0_37 = arith.constant 0 : index
    %c0_38 = arith.constant 0 : index
    %88 = vector.load %arg11[%c0_37, %c0_38] : memref<64x32xbf16, #tpu.memory_space<vmem>>, vector<64x32xbf16>
    %cst_39 = arith.constant dense<0.000000e+00> : vector<8x32xf32>
    %89 = tpu.matmul %87, %88, %cst_39 {dimension_numbers = #tpu.dot_dimension_numbers<[1], [0], [0], [1], [0, 0, 1, 1], [], []>} : vector<8x64xbf16>, vector<64x32xbf16>, vector<8x32xf32> -> vector<8x32xf32>
    %c0_40 = arith.constant 0 : index
    %c0_41 = arith.constant 0 : index
    %90 = vector.load %arg12[%c0_40, %c0_41] : memref<1x32xf32, #tpu.memory_space<vmem>>, vector<1x32xf32>
    %91 = vector.broadcast %90 : vector<1x32xf32> to vector<8x32xf32>
    %92 = arith.addf %89, %91 : vector<8x32xf32>
    %93 = arith.addf %67, %92 : vector<8x32xf32>
    %c0_42 = arith.constant 0 : index
    %c0_43 = arith.constant 0 : index
    %94 = vector.load %arg13[%c0_42, %c0_43] : memref<1x32xf32, #tpu.memory_space<vmem>>, vector<1x32xf32>
    %c0_44 = arith.constant 0 : index
    %c0_45 = arith.constant 0 : index
    %95 = vector.load %arg14[%c0_44, %c0_45] : memref<1x32xf32, #tpu.memory_space<vmem>>, vector<1x32xf32>
    %cst_46 = arith.constant dense<0.000000e+00> : vector<8xf32>
    %96 = vector.multi_reduction <add>, %93, %cst_46 [1] : vector<8x32xf32> to vector<8xf32>
    %97 = vector.shape_cast %96 : vector<8xf32> to vector<8x1xf32>
    %cst_47 = arith.constant 3.200000e+01 : f32
    %98 = vector.broadcast %cst_47 : f32 to vector<8x1xf32>
    %99 = arith.divf %97, %98 : vector<8x1xf32>
    %100 = vector.broadcast %99 : vector<8x1xf32> to vector<8x32xf32>
    %101 = arith.subf %93, %100 : vector<8x32xf32>
    %102 = arith.mulf %101, %101 : vector<8x32xf32>
    %cst_48 = arith.constant dense<0.000000e+00> : vector<8xf32>
    %103 = vector.multi_reduction <add>, %102, %cst_48 [1] : vector<8x32xf32> to vector<8xf32>
    %104 = vector.shape_cast %103 : vector<8xf32> to vector<8x1xf32>
    %cst_49 = arith.constant 3.200000e+01 : f32
    %105 = vector.broadcast %cst_49 : f32 to vector<8x1xf32>
    %106 = arith.divf %104, %105 : vector<8x1xf32>
    %cst_50 = arith.constant 9.99999974E-6 : f32
    %107 = vector.broadcast %cst_50 : f32 to vector<8x1xf32>
    %108 = arith.addf %106, %107 : vector<8x1xf32>
    %109 = math.rsqrt %108 : vector<8x1xf32>
    %110 = vector.broadcast %109 : vector<8x1xf32> to vector<8x32xf32>
    %111 = arith.mulf %101, %110 : vector<8x32xf32>
    %112 = vector.broadcast %94 : vector<1x32xf32> to vector<8x32xf32>
    %113 = arith.mulf %111, %112 : vector<8x32xf32>
    %114 = vector.broadcast %95 : vector<1x32xf32> to vector<8x32xf32>
    %115 = arith.addf %113, %114 : vector<8x32xf32>
    %c0_51 = arith.constant 0 : index
    %c0_52 = arith.constant 0 : index
    %c0_53 = arith.constant 0 : index
    %116 = vector.load %arg15[%c0_51, %c0_52, %c0_53] : memref<1x8x32xf32, #tpu.memory_space<vmem>>, vector<1x8x32xf32>
    %117 = vector.shape_cast %116 : vector<1x8x32xf32> to vector<8x32xf32>
    %118 = vector.shape_cast %115 : vector<8x32xf32> to vector<1x8x32xf32>
    tpu.vector_store %arg15[%c0_51, %c0_52, %c0_53], %118 {strides = array<i32>} : memref<1x8x32xf32, #tpu.memory_space<vmem>>, vector<1x8x32xf32>,
    return
  }
  func.func @transform_0(%arg0: i32) -> (i32, i32, i32) {
    %c0_i32 = arith.constant 0 : i32
    %c0_i32_0 = arith.constant 0 : i32
    %c0_i32_1 = arith.constant 0 : i32
    return %arg0, %c0_i32, %c0_i32_0 : i32, i32, i32
  }
  func.func @transform_1(%arg0: i32) -> (i32, i32, i32) {
    %c0_i32 = arith.constant 0 : i32
    %c0_i32_0 = arith.constant 0 : i32
    %c0_i32_1 = arith.constant 0 : i32
    return %arg0, %c0_i32, %c0_i32_0 : i32, i32, i32
  }
  func.func @transform_2(%arg0: i32) -> (i32, i32) {
    %c0_i32 = arith.constant 0 : i32
    %c0_i32_0 = arith.constant 0 : i32
    %c0_i32_1 = arith.constant 0 : i32
    return %c0_i32, %c0_i32_0 : i32, i32
  }
  func.func @transform_3(%arg0: i32) -> (i32, i32) {
    %c0_i32 = arith.constant 0 : i32
    %c0_i32_0 = arith.constant 0 : i32
    %c0_i32_1 = arith.constant 0 : i32
    return %c0_i32, %c0_i32_0 : i32, i32
  }
  func.func @transform_4(%arg0: i32) -> (i32, i32) {
    %c0_i32 = arith.constant 0 : i32
    %c0_i32_0 = arith.constant 0 : i32
    %c0_i32_1 = arith.constant 0 : i32
    return %c0_i32, %c0_i32_0 : i32, i32
  }
  func.func @transform_5(%arg0: i32) -> (i32, i32) {
    %c0_i32 = arith.constant 0 : i32
    %c0_i32_0 = arith.constant 0 : i32
    %c0_i32_1 = arith.constant 0 : i32
    return %c0_i32, %c0_i32_0 : i32, i32
  }
  func.func @transform_6(%arg0: i32) -> (i32, i32) {
    %c0_i32 = arith.constant 0 : i32
    %c0_i32_0 = arith.constant 0 : i32
    %c0_i32_1 = arith.constant 0 : i32
    return %c0_i32, %c0_i32_0 : i32, i32
  }
  func.func @transform_7(%arg0: i32) -> (i32, i32) {
    %c0_i32 = arith.constant 0 : i32
    %c0_i32_0 = arith.constant 0 : i32
    %c0_i32_1 = arith.constant 0 : i32
    return %c0_i32, %c0_i32_0 : i32, i32
  }
  func.func @transform_8(%arg0: i32) -> (i32, i32) {
    %c0_i32 = arith.constant 0 : i32
    %c0_i32_0 = arith.constant 0 : i32
    %c0_i32_1 = arith.constant 0 : i32
    return %c0_i32, %c0_i32_0 : i32, i32
  }
  func.func @transform_9(%arg0: i32) -> (i32, i32) {
    %c0_i32 = arith.constant 0 : i32
    %c0_i32_0 = arith.constant 0 : i32
    %c0_i32_1 = arith.constant 0 : i32
    return %c0_i32, %c0_i32_0 : i32, i32
  }
  func.func @transform_10(%arg0: i32) -> (i32, i32) {
    %c0_i32 = arith.constant 0 : i32
    %c0_i32_0 = arith.constant 0 : i32
    %c0_i32_1 = arith.constant 0 : i32
    return %c0_i32, %c0_i32_0 : i32, i32
  }
  func.func @transform_11(%arg0: i32) -> (i32, i32) {
    %c0_i32 = arith.constant 0 : i32
    %c0_i32_0 = arith.constant 0 : i32
    %c0_i32_1 = arith.constant 0 : i32
    return %c0_i32, %c0_i32_0 : i32, i32
  }
  func.func @transform_12(%arg0: i32) -> (i32, i32) {
    %c0_i32 = arith.constant 0 : i32
    %c0_i32_0 = arith.constant 0 : i32
    %c0_i32_1 = arith.constant 0 : i32
    return %c0_i32, %c0_i32_0 : i32, i32
  }
  func.func @transform_13(%arg0: i32) -> (i32, i32) {
    %c0_i32 = arith.constant 0 : i32
    %c0_i32_0 = arith.constant 0 : i32
    %c0_i32_1 = arith.constant 0 : i32
    return %c0_i32, %c0_i32_0 : i32, i32
  }
  func.func @transform_14(%arg0: i32) -> (i32, i32, i32) {
    %c0_i32 = arith.constant 0 : i32
    %c0_i32_0 = arith.constant 0 : i32
    %c0_i32_1 = arith.constant 0 : i32
    return %arg0, %c0_i32, %c0_i32_0 : i32, i32, i32
  }
}

module attributes {stable_mosaic.version = 11 : i64} {
  func.func @encoder_layer_kernel(%arg0: i32, %arg1: memref<1x8x32xf32, #tpu.memory_space<vmem>>, %arg2: memref<1x1x8xf32, #tpu.memory_space<vmem>>, %arg3: memref<32x96xbf16, #tpu.memory_space<vmem>>, %arg4: memref<1x96xf32, #tpu.memory_space<vmem>>, %arg5: memref<32x32xbf16, #tpu.memory_space<vmem>>, %arg6: memref<1x32xf32, #tpu.memory_space<vmem>>, %arg7: memref<1x32xf32, #tpu.memory_space<vmem>>, %arg8: memref<1x32xf32, #tpu.memory_space<vmem>>, %arg9: memref<32x64xbf16, #tpu.memory_space<vmem>>, %arg10: memref<1x64xf32, #tpu.memory_space<vmem>>, %arg11: memref<64x32xbf16, #tpu.memory_space<vmem>>, %arg12: memref<1x32xf32, #tpu.memory_space<vmem>>, %arg13: memref<1x32xf32, #tpu.memory_space<vmem>>, %arg14: memref<1x32xf32, #tpu.memory_space<vmem>>, %arg15: memref<1x8x32xf32, #tpu.memory_space<vmem>>) attributes {dimension_semantics = [#tpu.dimension_semantics<parallel>], iteration_bounds = array<i64: 2>, scalar_prefetch = 0 : i64, scratch_operands = 0 : i64, tpu.core_type = #tpu.core_type<tc>, window_params = [{transform_indices = @transform_0, window_bounds = array<i64: 1, 8, 32>}, {transform_indices = @transform_1, window_bounds = array<i64: 1, 1, 8>}, {pipeline_mode = #tpu.pipeline_mode<synchronous>, transform_indices = @transform_2, window_bounds = array<i64: 32, 96>}, {pipeline_mode = #tpu.pipeline_mode<synchronous>, transform_indices = @transform_3, window_bounds = array<i64: 1, 96>}, {pipeline_mode = #tpu.pipeline_mode<synchronous>, transform_indices = @transform_4, window_bounds = array<i64: 32, 32>}, {pipeline_mode = #tpu.pipeline_mode<synchronous>, transform_indices = @transform_5, window_bounds = array<i64: 1, 32>}, {pipeline_mode = #tpu.pipeline_mode<synchronous>, transform_indices = @transform_6, window_bounds = array<i64: 1, 32>}, {pipeline_mode = #tpu.pipeline_mode<synchronous>, transform_indices = @transform_7, window_bounds = array<i64: 1, 32>}, {pipeline_mode = #tpu.pipeline_mode<synchronous>, transform_indices = @transform_8, window_bounds = array<i64: 32, 64>}, {pipeline_mode = #tpu.pipeline_mode<synchronous>, transform_indices = @transform_9, window_bounds = array<i64: 1, 64>}, {pipeline_mode = #tpu.pipeline_mode<synchronous>, transform_indices = @transform_10, window_bounds = array<i64: 64, 32>}, {pipeline_mode = #tpu.pipeline_mode<synchronous>, transform_indices = @transform_11, window_bounds = array<i64: 1, 32>}, {pipeline_mode = #tpu.pipeline_mode<synchronous>, transform_indices = @transform_12, window_bounds = array<i64: 1, 32>}, {pipeline_mode = #tpu.pipeline_mode<synchronous>, transform_indices = @transform_13, window_bounds = array<i64: 1, 32>}, {transform_indices = @transform_14, window_bounds = array<i64: 1, 8, 32>}]} {
    %c0 = arith.constant 0 : index
    %c0_0 = arith.constant 0 : index
    %c0_1 = arith.constant 0 : index
    %0 = vector.load %arg1[%c0, %c0_0, %c0_1] : memref<1x8x32xf32, #tpu.memory_space<vmem>>, vector<1x8x32xf32>
    %1 = vector.shape_cast %0 : vector<1x8x32xf32> to vector<8x32xf32>
    %2 = arith.truncf %1 : vector<8x32xf32> to vector<8x32xbf16>
    %c0_2 = arith.constant 0 : index
    %c0_3 = arith.constant 0 : index
    %3 = vector.load %arg3[%c0_2, %c0_3] : memref<32x96xbf16, #tpu.memory_space<vmem>>, vector<32x96xbf16>
    %cst = arith.constant dense<0.000000e+00> : vector<8x96xf32>
    %4 = tpu.matmul %2, %3, %cst {dimension_numbers = #tpu.dot_dimension_numbers<[1], [0], [0], [1], [0, 0, 1, 1], [], []>} : vector<8x32xbf16>, vector<32x96xbf16>, vector<8x96xf32> -> vector<8x96xf32>
    %c0_4 = arith.constant 0 : index
    %c0_5 = arith.constant 0 : index
    %5 = vector.load %arg4[%c0_4, %c0_5] : memref<1x96xf32, #tpu.memory_space<vmem>>, vector<1x96xf32>
    %6 = vector.broadcast %5 : vector<1x96xf32> to vector<8x96xf32>
    %7 = arith.addf %4, %6 : vector<8x96xf32>
    %8 = vector.extract_strided_slice %7 {offsets = [0, 0], sizes = [8, 32], strides = [1, 1]} : vector<8x96xf32> to vector<8x32xf32>
    %cst_6 = arith.constant 0.353553385 : f32
    %9 = vector.broadcast %cst_6 : f32 to vector<8x32xf32>
    %10 = arith.mulf %8, %9 : vector<8x32xf32>
    %11 = vector.shape_cast %10 : vector<8x32xf32> to vector<8x4x8xf32>
    %12 = vector.extract_strided_slice %7 {offsets = [0, 32], sizes = [8, 32], strides = [1, 1]} : vector<8x96xf32> to vector<8x32xf32>
    %13 = vector.shape_cast %12 : vector<8x32xf32> to vector<8x4x8xf32>
    %14 = vector.extract_strided_slice %7 {offsets = [0, 64], sizes = [8, 32], strides = [1, 1]} : vector<8x96xf32> to vector<8x32xf32>
    %15 = vector.shape_cast %14 : vector<8x32xf32> to vector<8x4x8xf32>
    %16 = arith.truncf %11 : vector<8x4x8xf32> to vector<8x4x8xbf16>
    %17 = arith.truncf %13 : vector<8x4x8xf32> to vector<8x4x8xbf16>
    "tpu.trace_start"() <{level = 10 : i32, message = "thd,shd->hts"}> : () -> ()
    %cst_7 = arith.constant dense<0.000000e+00> : vector<4x8x8xf32>
    %18 = tpu.matmul %16, %17, %cst_7 {dimension_numbers = #tpu.dot_dimension_numbers<[2], [2], [0], [0], [0, 1, 0, 0, 1, 0], [1], [1]>} : vector<8x4x8xbf16>, vector<8x4x8xbf16>, vector<4x8x8xf32> -> vector<4x8x8xf32>
    "tpu.trace_stop"() : () -> ()
    %c0_8 = arith.constant 0 : index
    %c0_9 = arith.constant 0 : index
    %c0_10 = arith.constant 0 : index
    %19 = vector.load %arg2[%c0_8, %c0_9, %c0_10] : memref<1x1x8xf32, #tpu.memory_space<vmem>>, vector<1x1x8xf32>
    %20 = vector.shape_cast %19 : vector<1x1x8xf32> to vector<1x8xf32>
    %21 = vector.shape_cast %20 : vector<1x8xf32> to vector<1x1x8xf32>
    %22 = vector.broadcast %21 : vector<1x1x8xf32> to vector<4x8x8xf32>
    %23 = arith.addf %18, %22 : vector<4x8x8xf32>
    %cst_11 = arith.constant dense<0xFF800000> : vector<4x8xf32>
    %24 = vector.multi_reduction <maximumf>, %23, %cst_11 [2] : vector<4x8x8xf32> to vector<4x8xf32>
    %25 = vector.shape_cast %24 : vector<4x8xf32> to vector<4x8x1xf32>
    %26 = vector.broadcast %25 : vector<4x8x1xf32> to vector<4x8x8xf32>
    %27 = arith.subf %23, %26 : vector<4x8x8xf32>
    %28 = math.exp %27 : vector<4x8x8xf32>
    %cst_12 = arith.constant dense<0.000000e+00> : vector<4x8xf32>
    %29 = vector.multi_reduction <add>, %28, %cst_12 [2] : vector<4x8x8xf32> to vector<4x8xf32>
    %30 = vector.shape_cast %29 : vector<4x8xf32> to vector<4x8x1xf32>
    %31 = tpu.reciprocal %30 {approx = true} : vector<4x8x1xf32> -> vector<4x8x1xf32>
    %32 = vector.broadcast %31 : vector<4x8x1xf32> to vector<4x8x8xf32>
    %33 = arith.mulf %28, %32 : vector<4x8x8xf32>
    %34 = arith.truncf %33 : vector<4x8x8xf32> to vector<4x8x8xbf16>
    %35 = arith.truncf %15 : vector<8x4x8xf32> to vector<8x4x8xbf16>
    "tpu.trace_start"() <{level = 10 : i32, message = "hts,shd->thd"}> : () -> ()
    %cst_13 = arith.constant dense<0.000000e+00> : vector<4x8x8xf32>
    %36 = tpu.matmul %35, %34, %cst_13 {dimension_numbers = #tpu.dot_dimension_numbers<[0], [2], [2], [1], [0, 1, 0, 2, 1, 1], [1], [0]>} : vector<8x4x8xbf16>, vector<4x8x8xbf16>, vector<4x8x8xf32> -> vector<4x8x8xf32>
    %37 = tpu.transpose %36, [2, 0, 1] : vector<4x8x8xf32> -> vector<8x4x8xf32>
    "tpu.trace_stop"() : () -> ()
    %38 = vector.shape_cast %37 : vector<8x4x8xf32> to vector<8x32xf32>
    %39 = arith.truncf %38 : vector<8x32xf32> to vector<8x32xbf16>
    %c0_14 = arith.constant 0 : index
    %c0_15 = arith.constant 0 : index
    %40 = vector.load %arg5[%c0_14, %c0_15] : memref<32x32xbf16, #tpu.memory_space<vmem>>, vector<32x32xbf16>
    %cst_16 = arith.constant dense<0.000000e+00> : vector<8x32xf32>
    %41 = tpu.matmul %39, %40, %cst_16 {dimension_numbers = #tpu.dot_dimension_numbers<[1], [0], [0], [1], [0, 0, 1, 1], [], []>} : vector<8x32xbf16>, vector<32x32xbf16>, vector<8x32xf32> -> vector<8x32xf32>
    %c0_17 = arith.constant 0 : index
    %c0_18 = arith.constant 0 : index
    %42 = vector.load %arg6[%c0_17, %c0_18] : memref<1x32xf32, #tpu.memory_space<vmem>>, vector<1x32xf32>
    %43 = vector.broadcast %42 : vector<1x32xf32> to vector<8x32xf32>
    %44 = arith.addf %41, %43 : vector<8x32xf32>
    %45 = arith.addf %1, %44 : vector<8x32xf32>
    %c0_19 = arith.constant 0 : index
    %c0_20 = arith.constant 0 : index
    %46 = vector.load %arg7[%c0_19, %c0_20] : memref<1x32xf32, #tpu.memory_space<vmem>>, vector<1x32xf32>
    %c0_21 = arith.constant 0 : index
    %c0_22 = arith.constant 0 : index
    %47 = vector.load %arg8[%c0_21, %c0_22] : memref<1x32xf32, #tpu.memory_space<vmem>>, vector<1x32xf32>
    %cst_23 = arith.constant dense<0.000000e+00> : vector<8xf32>
    %48 = vector.multi_reduction <add>, %45, %cst_23 [1] : vector<8x32xf32> to vector<8xf32>
    %49 = vector.shape_cast %48 : vector<8xf32> to vector<8x1xf32>
    %cst_24 = arith.constant 3.200000e+01 : f32
    %50 = vector.broadcast %cst_24 : f32 to vector<8x1xf32>
    %51 = arith.divf %49, %50 : vector<8x1xf32>
    %52 = vector.broadcast %51 : vector<8x1xf32> to vector<8x32xf32>
    %53 = arith.subf %45, %52 : vector<8x32xf32>
    %54 = arith.mulf %53, %53 : vector<8x32xf32>
    %cst_25 = arith.constant dense<0.000000e+00> : vector<8xf32>
    %55 = vector.multi_reduction <add>, %54, %cst_25 [1] : vector<8x32xf32> to vector<8xf32>
    %56 = vector.shape_cast %55 : vector<8xf32> to vector<8x1xf32>
    %cst_26 = arith.constant 3.200000e+01 : f32
    %57 = vector.broadcast %cst_26 : f32 to vector<8x1xf32>
    %58 = arith.divf %56, %57 : vector<8x1xf32>
    %cst_27 = arith.constant 9.99999974E-6 : f32
    %59 = vector.broadcast %cst_27 : f32 to vector<8x1xf32>
    %60 = arith.addf %58, %59 : vector<8x1xf32>
    %61 = math.rsqrt %60 : vector<8x1xf32>
    %62 = vector.broadcast %61 : vector<8x1xf32> to vector<8x32xf32>
    %63 = arith.mulf %53, %62 : vector<8x32xf32>
    %64 = vector.broadcast %46 : vector<1x32xf32> to vector<8x32xf32>
    %65 = arith.mulf %63, %64 : vector<8x32xf32>
    %66 = vector.broadcast %47 : vector<1x32xf32> to vector<8x32xf32>
    %67 = arith.addf %65, %66 : vector<8x32xf32>
    %68 = arith.truncf %67 : vector<8x32xf32> to vector<8x32xbf16>
    %c0_28 = arith.constant 0 : index
    %c0_29 = arith.constant 0 : index
    %69 = vector.load %arg9[%c0_28, %c0_29] : memref<32x64xbf16, #tpu.memory_space<vmem>>, vector<32x64xbf16>
    %cst_30 = arith.constant dense<0.000000e+00> : vector<8x64xf32>
    %70 = tpu.matmul %68, %69, %cst_30 {dimension_numbers = #tpu.dot_dimension_numbers<[1], [0], [0], [1], [0, 0, 1, 1], [], []>} : vector<8x32xbf16>, vector<32x64xbf16>, vector<8x64xf32> -> vector<8x64xf32>
    %c0_31 = arith.constant 0 : index
    %c0_32 = arith.constant 0 : index
    %71 = vector.load %arg10[%c0_31, %c0_32] : memref<1x64xf32, #tpu.memory_space<vmem>>, vector<1x64xf32>
    %72 = vector.broadcast %71 : vector<1x64xf32> to vector<8x64xf32>
    %73 = arith.addf %70, %72 : vector<8x64xf32>
    %cst_33 = arith.constant 5.000000e-01 : f32
    %74 = vector.broadcast %cst_33 : f32 to vector<8x64xf32>
    %75 = arith.mulf %74, %73 : vector<8x64xf32>
    %cst_34 = arith.constant 4.471500e-02 : f32
    %76 = vector.broadcast %cst_34 : f32 to vector<8x64xf32>
    %77 = arith.mulf %76, %73 : vector<8x64xf32>
    %78 = arith.mulf %77, %73 : vector<8x64xf32>
    %79 = arith.mulf %78, %73 : vector<8x64xf32>
    %80 = arith.addf %73, %79 : vector<8x64xf32>
    %cst_35 = arith.constant 0.797884583 : f32
    %81 = vector.broadcast %cst_35 : f32 to vector<8x64xf32>
    %82 = arith.mulf %81, %80 : vector<8x64xf32>
    %83 = math.tanh %82 : vector<8x64xf32>
    %cst_36 = arith.constant 1.000000e+00 : f32
    %84 = vector.broadcast %cst_36 : f32 to vector<8x64xf32>
    %85 = arith.addf %84, %83 : vector<8x64xf32>
    %86 = arith.mulf %75, %85 : vector<8x64xf32>
    %87 = arith.truncf %86 : vector<8x64xf32> to vector<8x64xbf16>
    %c0_37 = arith.constant 0 : index
    %c0_38 = arith.constant 0 : index
    %88 = vector.load %arg11[%c0_37, %c0_38] : memref<64x32xbf16, #tpu.memory_space<vmem>>, vector<64x32xbf16>
    %cst_39 = arith.constant dense<0.000000e+00> : vector<8x32xf32>
    %89 = tpu.matmul %87, %88, %cst_39 {dimension_numbers = #tpu.dot_dimension_numbers<[1], [0], [0], [1], [0, 0, 1, 1], [], []>} : vector<8x64xbf16>, vector<64x32xbf16>, vector<8x32xf32> -> vector<8x32xf32>
    %c0_40 = arith.constant 0 : index
    %c0_41 = arith.constant 0 : index
    %90 = vector.load %arg12[%c0_40, %c0_41] : memref<1x32xf32, #tpu.memory_space<vmem>>, vector<1x32xf32>
    %91 = vector.broadcast %90 : vector<1x32xf32> to vector<8x32xf32>
    %92 = arith.addf %89, %91 : vector<8x32xf32>
    %93 = arith.addf %67, %92 : vector<8x32xf32>
    %c0_42 = arith.constant 0 : index
    %c0_43 = arith.constant 0 : index
    %94 = vector.load %arg13[%c0_42, %c0_43] : memref<1x32xf32, #tpu.memory_space<vmem>>, vector<1x32xf32>
    %c0_44 = arith.constant 0 : index
    %c0_45 = arith.constant 0 : index
    %95 = vector.load %arg14[%c0_44, %c0_45] : memref<1x32xf32, #tpu.memory_space<vmem>>, vector<1x32xf32>
    %cst_46 = arith.constant dense<0.000000e+00> : vector<8xf32>
    %96 = vector.multi_reduction <add>, %93, %cst_46 [1] : vector<8x32xf32> to vector<8xf32>
    %97 = vector.shape_cast %96 : vector<8xf32> to vector<8x1xf32>
    %cst_47 = arith.constant 3.200000e+01 : f32
    %98 = vector.broadcast %cst_47 : f32 to vector<8x1xf32>
    %99 = arith.divf %97, %98 : vector<8x1xf32>
    %100 = vector.broadcast %99 : vector<8x1xf32> to vector<8x32xf32>
    %101 = arith.subf %93, %100 : vector<8x32xf32>
    %102 = arith.mulf %101, %101 : vector<8x32xf32>
    %cst_48 = arith.constant dense<0.000000e+00> : vector<8xf32>
    %103 = vector.multi_reduction <add>, %102, %cst_48 [1] : vector<8x32xf32> to vector<8xf32>
    %104 = vector.shape_cast %103 : vector<8xf32> to vector<8x1xf32>
    %cst_49 = arith.constant 3.200000e+01 : f32
    %105 = vector.broadcast %cst_49 : f32 to vector<8x1xf32>
    %106 = arith.divf %104, %105 : vector<8x1xf32>
    %cst_50 = arith.constant 9.99999974E-6 : f32
    %107 = vector.broadcast %cst_50 : f32 to vector<8x1xf32>
    %108 = arith.addf %106, %107 : vector<8x1xf32>
    %109 = math.rsqrt %108 : vector<8x1xf32>
    %110 = vector.broadcast %109 : vector<8x1xf32> to vector<8x32xf32>
    %111 = arith.mulf %101, %110 : vector<8x32xf32>
    %112 = vector.broadcast %94 : vector<1x32xf32> to vector<8x32xf32>
    %113 = arith.mulf %111, %112 : vector<8x32xf32>
    %114 = vector.broadcast %95 : vector<1x32xf32> to vector<8x32xf32>
    %115 = arith.addf %113, %114 : vector<8x32xf32>
    %c0_51 = arith.constant 0 : index
    %c0_52 = arith.constant 0 : index
    %c0_53 = arith.constant 0 : index
    %116 = vector.load %arg15[%c0_51, %c0_52, %c0_53] : memref<1x8x32xf32, #tpu.memory_space<vmem>>, vector<1x8x32xf32>
    %117 = vector.shape_cast %116 : vector<1x8x32xf32> to vector<8x32xf32>
    %118 = vector.shape_cast %115 : vector<8x32xf32> to vector<1x8x32xf32>
    tpu.vector_store %arg15[%c0_51, %c0_52, %c0_53], %118 {strides = array<i32>} : memref<1x8x32xf32, #tpu.memory_space<vmem>>, vector<1x8x32xf32>,
    return
  }
  func.func @transform_0(%arg0: i32) -> (i32, i32, i32) {
    %c0_i32 = arith.constant 0 : i32
    %c0_i32_0 = arith.constant 0 : i32
    %c0_i32_1 = arith.constant 0 : i32
    return %arg0, %c0_i32, %c0_i32_0 : i32, i32, i32
  }
  func.func @transform_1(%arg0: i32) -> (i32, i32, i32) {
    %c0_i32 = arith.constant 0 : i32
    %c0_i32_0 = arith.constant 0 : i32
    %c0_i32_1 = arith.constant 0 : i32
    return %arg0, %c0_i32, %c0_i32_0 : i32, i32, i32
  }
  func.func @transform_2(%arg0: i32) -> (i32, i32) {
    %c0_i32 = arith.constant 0 : i32
    %c0_i32_0 = arith.constant 0 : i32
    %c0_i32_1 = arith.constant 0 : i32
    return %c0_i32, %c0_i32_0 : i32, i32
  }
  func.func @transform_3(%arg0: i32) -> (i32, i32) {
    %c0_i32 = arith.constant 0 : i32
    %c0_i32_0 = arith.constant 0 : i32
    %c0_i32_1 = arith.constant 0 : i32
    return %c0_i32, %c0_i32_0 : i32, i32
  }
  func.func @transform_4(%arg0: i32) -> (i32, i32) {
    %c0_i32 = arith.constant 0 : i32
    %c0_i32_0 = arith.constant 0 : i32
    %c0_i32_1 = arith.constant 0 : i32
    return %c0_i32, %c0_i32_0 : i32, i32
  }
  func.func @transform_5(%arg0: i32) -> (i32, i32) {
    %c0_i32 = arith.constant 0 : i32
    %c0_i32_0 = arith.constant 0 : i32
    %c0_i32_1 = arith.constant 0 : i32
    return %c0_i32, %c0_i32_0 : i32, i32
  }
  func.func @transform_6(%arg0: i32) -> (i32, i32) {
    %c0_i32 = arith.constant 0 : i32
    %c0_i32_0 = arith.constant 0 : i32
    %c0_i32_1 = arith.constant 0 : i32
    return %c0_i32, %c0_i32_0 : i32, i32
  }
  func.func @transform_7(%arg0: i32) -> (i32, i32) {
    %c0_i32 = arith.constant 0 : i32
    %c0_i32_0 = arith.constant 0 : i32
    %c0_i32_1 = arith.constant 0 : i32
    return %c0_i32, %c0_i32_0 : i32, i32
  }
  func.func @transform_8(%arg0: i32) -> (i32, i32) {
    %c0_i32 = arith.constant 0 : i32
    %c0_i32_0 = arith.constant 0 : i32
    %c0_i32_1 = arith.constant 0 : i32
    return %c0_i32, %c0_i32_0 : i32, i32
  }
  func.func @transform_9(%arg0: i32) -> (i32, i32) {
    %c0_i32 = arith.constant 0 : i32
    %c0_i32_0 = arith.constant 0 : i32
    %c0_i32_1 = arith.constant 0 : i32
    return %c0_i32, %c0_i32_0 : i32, i32
  }
  func.func @transform_10(%arg0: i32) -> (i32, i32) {
    %c0_i32 = arith.constant 0 : i32
    %c0_i32_0 = arith.constant 0 : i32
    %c0_i32_1 = arith.constant 0 : i32
    return %c0_i32, %c0_i32_0 : i32, i32
  }
  func.func @transform_11(%arg0: i32) -> (i32, i32) {
    %c0_i32 = arith.constant 0 : i32
    %c0_i32_0 = arith.constant 0 : i32
    %c0_i32_1 = arith.constant 0 : i32
    return %c0_i32, %c0_i32_0 : i32, i32
  }
  func.func @transform_12(%arg0: i32) -> (i32, i32) {
    %c0_i32 = arith.constant 0 : i32
    %c0_i32_0 = arith.constant 0 : i32
    %c0_i32_1 = arith.constant 0 : i32
    return %c0_i32, %c0_i32_0 : i32, i32
  }
  func.func @transform_13(%arg0: i32) -> (i32, i32) {
    %c0_i32 = arith.constant 0 : i32
    %c0_i32_0 = arith.constant 0 : i32
    %c0_i32_1 = arith.constant 0 : i32
    return %c0_i32, %c0_i32_0 : i32, i32
  }
  func.func @transform_14(%arg0: i32) -> (i32, i32, i32) {
    %c0_i32 = arith.constant 0 : i32
    %c0_i32_0 = arith.constant 0 : i32
    %c0_i32_1 = arith.constant 0 : i32
    return %arg0, %c0_i32, %c0_i32_0 : i32, i32, i32
  }
}

</mosaic_0001>

<llo_original>
// kernel: roberta_encoder_forward.3
$region0: #{roberta_encoder_forward.3}
  #allocation0 [shape = 'u32[]', space=smem, size = 0x4, offset = 0x4, fixed_abs, tag = 'smem constant byte address 0x4 - core index']
  #allocation1 [shape = 'u32[144,128]{1,0:T(1,128)}', space=vmem, size = 0x12000, scoped, tag = 'internal scratch']
  %s0 = inlined_call_operand.vmem [shape: f32[16,32], index: 0, kind: input, shape index: {}]
  %s1 = inlined_call_operand.vmem [shape: f32[16,32], index: 1, kind: input, shape index: {}]
  %s2 = inlined_call_operand.vmem [shape: f32[1,32], index: 2, kind: input, shape index: {}]
  %s3 = inlined_call_operand.vmem [shape: f32[1,32], index: 3, kind: input, shape index: {}]
  %s4 = inlined_call_operand.vmem [shape: f32[16,32], index: 4, kind: output, shape index: {}]
  %s5 = sld [smem:[#allocation0]]
  $region26: #{roberta_encoder_forward.3} parent=0
    _
  %s7 = ssub.s32 1, %s5
  %s8 = scalar_select 0, %s7, %s5
  // Predicated region
  $region2: #{roberta_encoder_forward.3} parent=0 // pred_check
    _
  $region3: #{roberta_encoder_forward.3} parent=0 // pred_check_branch
    %10 = sbr.rel (0) target = $region5
  $region4: #{roberta_encoder_forward.3} parent=0 // pred_region
    _
  $region5: #{roberta_encoder_forward.3} parent=0 // pred_fallthru
    _
  // Predicated region
  $region6: #{roberta_encoder_forward.3} parent=0 // pred_check
    _
  $region7: #{roberta_encoder_forward.3} parent=0 // pred_check_branch
    %12 = sbr.rel (0) target = $region9
  $region8: #{roberta_encoder_forward.3} parent=0 // pred_region
    _
  $region9: #{roberta_encoder_forward.3} parent=0 // pred_fallthru
    _
  // Predicated region
  $region10: #{roberta_encoder_forward.3} parent=0 // pred_check
    _
  $region11: #{roberta_encoder_forward.3} parent=0 // pred_check_branch
    %14 = sbr.rel (0) target = $region13
  $region12: #{roberta_encoder_forward.3} parent=0 // pred_region
    _
  $region13: #{roberta_encoder_forward.3} parent=0 // pred_fallthru
    _
  // Predicated region
  $region14: #{roberta_encoder_forward.3} parent=0 // pred_check
    _
  $region15: #{roberta_encoder_forward.3} parent=0 // pred_check_branch
    %16 = sbr.rel (0) target = $region17
  $region16: #{roberta_encoder_forward.3} parent=0 // pred_region
    _
  $region17: #{roberta_encoder_forward.3} parent=0 // pred_fallthru
    _
  %v17 = vld [vmem:[%s0] sm:$0xff]
  %v18 = vld [vmem:[%s0 + $0x8] sm:$0xff]
  %v19 = vld [vmem:[%s1] sm:$0xff]
  %v20 = vld [vmem:[%s1 + $0x8] sm:$0xff]
  %v21 = vadd.f32 %v17, %v19
  %v22 = vadd.f32 %v18, %v20
  %v23 = vld [vmem:[%s2] sm:$0x1]
  %v24 = vld [vmem:[%s3] sm:$0x1]
  %vm25 = vcmask 261120
  %v26 = vsel %vm25, %v21, 0.0
  %27 = vadd.xlane.f32.xlu0 %v26
  %v28 = vpop.xlane.xlu0 %27
  %v29 = vsel %vm25, %v22, 0.0
  %30 = vadd.xlane.f32.xlu0 %v29
  %v31 = vpop.xlane.xlu0 %30
  %v32 = vrcp.pop 32.0
  %v33 = vmul.f32 %v28, %v32
  %v34 = vmul.f32 %v31, %v32
  %v35 = vsub.f32 %v21, %v33
  %v36 = vsub.f32 %v22, %v34
  %v37 = vmul.f32 %v35, %v35
  %v38 = vmul.f32 %v36, %v36
  %v39 = vsel %vm25, %v37, 0.0
  %40 = vadd.xlane.f32.xlu0 %v39
  %v41 = vpop.xlane.xlu0 %40
  %v42 = vsel %vm25, %v38, 0.0
  %43 = vadd.xlane.f32.xlu0 %v42
  %v44 = vpop.xlane.xlu0 %43
  %v45 = vmul.f32 %v41, %v32
  %v46 = vmul.f32 %v44, %v32
  %v47 = vadd.f32 %v45, 1e-05
  %v48 = vadd.f32 %v46, 1e-05
  %v49 = vrsqrt.pop %v47
  %v50 = vrsqrt.pop %v48
  %v51 = vmul.f32 %v35, %v49
  %v52 = vmul.f32 %v36, %v50
  %v54 = vlaneseq
  %v55 = vshrl.u32 %v54, 7
  %v56 = vsub.s32 0, %v55
  %v57 = vrot.slane %v23, %v56
  %v59 = vmul.f32 %v51, %v57
  %v60 = vmul.f32 %v52, %v57
  %v62 = vlaneseq
  %v63 = vshrl.u32 %v62, 7
  %v64 = vsub.s32 0, %v63
  %v65 = vrot.slane %v24, %v64
  %v67 = vadd.f32 %v59, %v65
  %v68 = vadd.f32 %v60, %v65
  %69 = vst.msk [vmem:[%s4] sm:$0xff] %vm25, %v67
  %70 = vst.msk [vmem:[%s4 + $0x8] sm:$0xff] %vm25, %v68
  // Predicated region
  $region18: #{roberta_encoder_forward.3} parent=0 // pred_check
    _
  $region19: #{roberta_encoder_forward.3} parent=0 // pred_check_branch
    %72 = sbr.rel (0) target = $region21
  $region20: #{roberta_encoder_forward.3} parent=0 // pred_region
    _
  $region21: #{roberta_encoder_forward.3} parent=0 // pred_fallthru
    _
  // Predicated region
  $region22: #{roberta_encoder_forward.3} parent=0 // pred_check
    _
  $region23: #{roberta_encoder_forward.3} parent=0 // pred_check_branch
    %74 = sbr.rel (0) target = $region25
  $region24: #{roberta_encoder_forward.3} parent=0 // pred_region
    _
  $region25: #{roberta_encoder_forward.3} parent=0 // pred_fallthru
    _

// kernel: roberta_encoder_forward.4
$region0: #{roberta_encoder_forward.4}
  #allocation0 [shape = 'u32[]', space=smem, size = 0x4, offset = 0x4, fixed_abs, tag = 'smem constant byte address 0x4 - core index']
  #allocation1 [shape = 'u32[144,128]{1,0:T(1,128)}', space=vmem, size = 0x12000, scoped, tag = 'internal scratch']
  %s0 = inlined_call_operand.vmem [shape: f32[2,8,32], index: 0, kind: input, shape index: {}]
  %s1 = inlined_call_operand.vmem [shape: f32[2,1,8], index: 1, kind: input, shape index: {}]
  %s2 = inlined_call_operand.vmem [shape: bf16[32,96], index: 2, kind: input, shape index: {}]
  %s3 = inlined_call_operand.vmem [shape: f32[1,96], index: 3, kind: input, shape index: {}]
  %s4 = inlined_call_operand.vmem [shape: bf16[32,32], index: 4, kind: input, shape index: {}]
  %s5 = inlined_call_operand.vmem [shape: f32[1,32], index: 5, kind: input, shape index: {}]
  %s6 = inlined_call_operand.vmem [shape: f32[1,32], index: 6, kind: input, shape index: {}]
  %s7 = inlined_call_operand.vmem [shape: f32[1,32], index: 7, kind: input, shape index: {}]
  %s8 = inlined_call_operand.vmem [shape: bf16[32,64], index: 8, kind: input, shape index: {}]
  %s9 = inlined_call_operand.vmem [shape: f32[1,64], index: 9, kind: input, shape index: {}]
  %s10 = inlined_call_operand.vmem [shape: bf16[64,32], index: 10, kind: input, shape index: {}]
  %s11 = inlined_call_operand.vmem [shape: f32[1,32], index: 11, kind: input, shape index: {}]
  %s12 = inlined_call_operand.vmem [shape: f32[1,32], index: 12, kind: input, shape index: {}]
  %s13 = inlined_call_operand.vmem [shape: f32[1,32], index: 13, kind: input, shape index: {}]
  %s14 = inlined_call_operand.vmem [shape: f32[2,8,32], index: 14, kind: output, shape index: {}]
  %s15 = sld [smem:[#allocation0]]
  $region89: #{roberta_encoder_forward.4} parent=0
    _
  %s17 = ssub.s32 1, %s15
  %s18 = scalar_select 0, %s17, %s15
  loop: start=0, step=1, limit=4
  $region2: #{roberta_encoder_forward.4} parent=0 // loop_pre_header
    _
  $region3: #{roberta_encoder_forward.4} parent=0 // loop_header
    %s20 = sphi 0, %s24
    %p21 = scmp.ge.s32.totalorder %s20, 4
    %s30 = sphi 0, %s32
    %s33 = sphi 0, %s30
    %s34 = sphi 0, %s33
    %s50 = sphi 0, %s34
    %s56 = sphi 0, %s58
    %s59 = sphi 0, %s56
    %s60 = sphi 0, %s59
    %s76 = sphi 0, %s60
    %s80 = sphi 0, %s80
    %s82 = sphi 0, %s80
    %s83 = sphi 0, %s82
    %s97 = sphi 0, %s83
    %s101 = sphi 0, %s101
    %s103 = sphi 0, %s101
    %s104 = sphi 0, %s103
    %s118 = sphi 0, %s104
    %s122 = sphi 0, %s122
    %s124 = sphi 0, %s122
    %s125 = sphi 0, %s124
    %s139 = sphi 0, %s125
    %s143 = sphi 0, %s143
    %s145 = sphi 0, %s143
    %s146 = sphi 0, %s145
    %s160 = sphi 0, %s146
    %s164 = sphi 0, %s164
    %s166 = sphi 0, %s164
    %s167 = sphi 0, %s166
    %s181 = sphi 0, %s167
    %s185 = sphi 0, %s185
    %s187 = sphi 0, %s185
    %s188 = sphi 0, %s187
    %s202 = sphi 0, %s188
    %s206 = sphi 0, %s206
    %s208 = sphi 0, %s206
    %s209 = sphi 0, %s208
    %s223 = sphi 0, %s209
    %s227 = sphi 0, %s227
    %s229 = sphi 0, %s227
    %s230 = sphi 0, %s229
    %s244 = sphi 0, %s230
    %s248 = sphi 0, %s248
    %s250 = sphi 0, %s248
    %s251 = sphi 0, %s250
    %s265 = sphi 0, %s251
    %s269 = sphi 0, %s269
    %s271 = sphi 0, %s269
    %s272 = sphi 0, %s271
    %s286 = sphi 0, %s272
    %s290 = sphi 0, %s290
    %s292 = sphi 0, %s290
    %s293 = sphi 0, %s292
    %s307 = sphi 0, %s293
    %s311 = sphi 0, %s311
    %s313 = sphi 0, %s311
    %s314 = sphi 0, %s313
    %s328 = sphi 0, %s314
    %s334 = sphi 0, %s336
    %s337 = sphi 0, %s334
    %s338 = sphi 0, %s337
    %s354 = sphi 0, %s338
  $region4: #{roberta_encoder_forward.4} parent=0 // loop_header_branch
    %23 = sbr.rel (%p21) target = $region8
  $region5: #{roberta_encoder_forward.4} parent=0 // loop_body
    %s25 = ssub.s32 %s20, 1
    %s26 = ssub.s32 %s20, 2
    %s27 = sadd.s32 %s20, 1
    %s28 = ssub.s32 %s20, %s27
    %p29 = scmp.eq.s32.totalorder %s28, 0
    %s31 = sadd.s32 %s30, 1
    %s32 = scalar_select %p29, %s30, %s31
    %p35 = pneg %p29
    %p36 = scmp.eq.s32.totalorder %s20, 1
    %p37 = por %p35, %p36
    %p38 = scmp.ne.s32.totalorder %s30, %s33
    %p39 = scmp.eq.s32.totalorder %s20, 0
    %p40 = por %p38, %p39
    %p41 = scmp.ne.s32.totalorder %s30, %s33
    %p42 = scmp.eq.s32.totalorder %s25, 1
    %p43 = por %p41, %p42
    %p44 = scmp.ne.s32.totalorder %s33, %s34
    %p45 = scmp.eq.s32.totalorder %s25, 0
    %p46 = por %p44, %p45
    %p47 = scmp.ne.s32.totalorder %s33, %s34
    %p48 = scmp.eq.s32.totalorder %s26, 1
    %p49 = por %p47, %p48
    %p51 = scmp.ne.s32.totalorder %s34, %s50
    %p52 = scmp.eq.s32.totalorder %s26, 0
    %p53 = por %p51, %p52
    %s54 = ssub.s32 %s20, %s27
    %p55 = scmp.eq.s32.totalorder %s54, 0
    %s57 = sadd.s32 %s56, 1
    %s58 = scalar_select %p55, %s56, %s57
    %p61 = pneg %p55
    %p62 = scmp.eq.s32.totalorder %s20, 1
    %p63 = por %p61, %p62
    %p64 = scmp.ne.s32.totalorder %s56, %s59
    %p65 = scmp.eq.s32.totalorder %s20, 0
    %p66 = por %p64, %p65
    %p67 = scmp.ne.s32.totalorder %s56, %s59
    %p68 = scmp.eq.s32.totalorder %s25, 1
    %p69 = por %p67, %p68
    %p70 = scmp.ne.s32.totalorder %s59, %s60
    %p71 = scmp.eq.s32.totalorder %s25, 0
    %p72 = por %p70, %p71
    %p73 = scmp.ne.s32.totalorder %s59, %s60
    %p74 = scmp.eq.s32.totalorder %s26, 1
    %p75 = por %p73, %p74
    %p77 = scmp.ne.s32.totalorder %s60, %s76
    %p78 = scmp.eq.s32.totalorder %s26, 0
    %p79 = por %p77, %p78
    %s81 = sadd.s32 %s80, 1
    %p84 = scmp.eq.s32.totalorder %s20, 1
    %p85 = scmp.ne.s32.totalorder %s80, %s82
    %p86 = scmp.eq.s32.totalorder %s20, 0
    %p87 = por %p85, %p86
    %p88 = scmp.ne.s32.totalorder %s80, %s82
    %p89 = scmp.eq.s32.totalorder %s25, 1
    %p90 = por %p88, %p89
    %p91 = scmp.ne.s32.totalorder %s82, %s83
    %p92 = scmp.eq.s32.totalorder %s25, 0
    %p93 = por %p91, %p92
    %p94 = scmp.ne.s32.totalorder %s82, %s83
    %p95 = scmp.eq.s32.totalorder %s26, 1
    %p96 = por %p94, %p95
    %p98 = scmp.ne.s32.totalorder %s83, %s97
    %p99 = scmp.eq.s32.totalorder %s26, 0
    %p100 = por %p98, %p99
    %s102 = sadd.s32 %s101, 1
    %p105 = scmp.eq.s32.totalorder %s20, 1
    %p106 = scmp.ne.s32.totalorder %s101, %s103
    %p107 = scmp.eq.s32.totalorder %s20, 0
    %p108 = por %p106, %p107
    %p109 = scmp.ne.s32.totalorder %s101, %s103
    %p110 = scmp.eq.s32.totalorder %s25, 1
    %p111 = por %p109, %p110
    %p112 = scmp.ne.s32.totalorder %s103, %s104
    %p113 = scmp.eq.s32.totalorder %s25, 0
    %p114 = por %p112, %p113
    %p115 = scmp.ne.s32.totalorder %s103, %s104
    %p116 = scmp.eq.s32.totalorder %s26, 1
    %p117 = por %p115, %p116
    %p119 = scmp.ne.s32.totalorder %s104, %s118
    %p120 = scmp.eq.s32.totalorder %s26, 0
    %p121 = por %p119, %p120
    %s123 = sadd.s32 %s122, 1
    %p126 = scmp.eq.s32.totalorder %s20, 1
    %p127 = scmp.ne.s32.totalorder %s122, %s124
    %p128 = scmp.eq.s32.totalorder %s20, 0
    %p129 = por %p127, %p128
    %p130 = scmp.ne.s32.totalorder %s122, %s124
    %p131 = scmp.eq.s32.totalorder %s25, 1
    %p132 = por %p130, %p131
    %p133 = scmp.ne.s32.totalorder %s124, %s125
    %p134 = scmp.eq.s32.totalorder %s25, 0
    %p135 = por %p133, %p134
    %p136 = scmp.ne.s32.totalorder %s124, %s125
    %p137 = scmp.eq.s32.totalorder %s26, 1
    %p138 = por %p136, %p137
    %p140 = scmp.ne.s32.totalorder %s125, %s139
    %p141 = scmp.eq.s32.totalorder %s26, 0
    %p142 = por %p140, %p141
    %s144 = sadd.s32 %s143, 1
    %p147 = scmp.eq.s32.totalorder %s20, 1
    %p148 = scmp.ne.s32.totalorder %s143, %s145
    %p149 = scmp.eq.s32.totalorder %s20, 0
    %p150 = por %p148, %p149
    %p151 = scmp.ne.s32.totalorder %s143, %s145
    %p152 = scmp.eq.s32.totalorder %s25, 1
    %p153 = por %p151, %p152
    %p154 = scmp.ne.s32.totalorder %s145, %s146
    %p155 = scmp.eq.s32.totalorder %s25, 0
    %p156 = por %p154, %p155
    %p157 = scmp.ne.s32.totalorder %s145, %s146
    %p158 = scmp.eq.s32.totalorder %s26, 1
    %p159 = por %p157, %p158
    %p161 = scmp.ne.s32.totalorder %s146, %s160
    %p162 = scmp.eq.s32.totalorder %s26, 0
    %p163 = por %p161, %p162
    %s165 = sadd.s32 %s164, 1
    %p168 = scmp.eq.s32.totalorder %s20, 1
    %p169 = scmp.ne.s32.totalorder %s164, %s166
    %p170 = scmp.eq.s32.totalorder %s20, 0
    %p171 = por %p169, %p170
    %p172 = scmp.ne.s32.totalorder %s164, %s166
    %p173 = scmp.eq.s32.totalorder %s25, 1
    %p174 = por %p172, %p173
    %p175 = scmp.ne.s32.totalorder %s166, %s167
    %p176 = scmp.eq.s32.totalorder %s25, 0
    %p177 = por %p175, %p176
    %p178 = scmp.ne.s32.totalorder %s166, %s167
    %p179 = scmp.eq.s32.totalorder %s26, 1
    %p180 = por %p178, %p179
    %p182 = scmp.ne.s32.totalorder %s167, %s181
    %p183 = scmp.eq.s32.totalorder %s26, 0
    %p184 = por %p182, %p183
    %s186 = sadd.s32 %s185, 1
    %p189 = scmp.eq.s32.totalorder %s20, 1
    %p190 = scmp.ne.s32.totalorder %s185, %s187
    %p191 = scmp.eq.s32.totalorder %s20, 0
    %p192 = por %p190, %p191
    %p193 = scmp.ne.s32.totalorder %s185, %s187
    %p194 = scmp.eq.s32.totalorder %s25, 1
    %p195 = por %p193, %p194
    %p196 = scmp.ne.s32.totalorder %s187, %s188
    %p197 = scmp.eq.s32.totalorder %s25, 0
    %p198 = por %p196, %p197
    %p199 = scmp.ne.s32.totalorder %s187, %s188
    %p200 = scmp.eq.s32.totalorder %s26, 1
    %p201 = por %p199, %p200
    %p203 = scmp.ne.s32.totalorder %s188, %s202
    %p204 = scmp.eq.s32.totalorder %s26, 0
    %p205 = por %p203, %p204
    %s207 = sadd.s32 %s206, 1
    %p210 = scmp.eq.s32.totalorder %s20, 1
    %p211 = scmp.ne.s32.totalorder %s206, %s208
    %p212 = scmp.eq.s32.totalorder %s20, 0
    %p213 = por %p211, %p212
    %p214 = scmp.ne.s32.totalorder %s206, %s208
    %p215 = scmp.eq.s32.totalorder %s25, 1
    %p216 = por %p214, %p215
    %p217 = scmp.ne.s32.totalorder %s208, %s209
    %p218 = scmp.eq.s32.totalorder %s25, 0
    %p219 = por %p217, %p218
    %p220 = scmp.ne.s32.totalorder %s208, %s209
    %p221 = scmp.eq.s32.totalorder %s26, 1
    %p222 = por %p220, %p221
    %p224 = scmp.ne.s32.totalorder %s209, %s223
    %p225 = scmp.eq.s32.totalorder %s26, 0
    %p226 = por %p224, %p225
    %s228 = sadd.s32 %s227, 1
    %p231 = scmp.eq.s32.totalorder %s20, 1
    %p232 = scmp.ne.s32.totalorder %s227, %s229
    %p233 = scmp.eq.s32.totalorder %s20, 0
    %p234 = por %p232, %p233
    %p235 = scmp.ne.s32.totalorder %s227, %s229
    %p236 = scmp.eq.s32.totalorder %s25, 1
    %p237 = por %p235, %p236
    %p238 = scmp.ne.s32.totalorder %s229, %s230
    %p239 = scmp.eq.s32.totalorder %s25, 0
    %p240 = por %p238, %p239
    %p241 = scmp.ne.s32.totalorder %s229, %s230
    %p242 = scmp.eq.s32.totalorder %s26, 1
    %p243 = por %p241, %p242
    %p245 = scmp.ne.s32.totalorder %s230, %s244
    %p246 = scmp.eq.s32.totalorder %s26, 0
    %p247 = por %p245, %p246
    %s249 = sadd.s32 %s248, 1
    %p252 = scmp.eq.s32.totalorder %s20, 1
    %p253 = scmp.ne.s32.totalorder %s248, %s250
    %p254 = scmp.eq.s32.totalorder %s20, 0
    %p255 = por %p253, %p254
    %p256 = scmp.ne.s32.totalorder %s248, %s250
    %p257 = scmp.eq.s32.totalorder %s25, 1
    %p258 = por %p256, %p257
    %p259 = scmp.ne.s32.totalorder %s250, %s251
    %p260 = scmp.eq.s32.totalorder %s25, 0
    %p261 = por %p259, %p260
    %p262 = scmp.ne.s32.totalorder %s250, %s251
    %p263 = scmp.eq.s32.totalorder %s26, 1
    %p264 = por %p262, %p263
    %p266 = scmp.ne.s32.totalorder %s251, %s265
    %p267 = scmp.eq.s32.totalorder %s26, 0
    %p268 = por %p266, %p267
    %s270 = sadd.s32 %s269, 1
    %p273 = scmp.eq.s32.totalorder %s20, 1
    %p274 = scmp.ne.s32.totalorder %s269, %s271
    %p275 = scmp.eq.s32.totalorder %s20, 0
    %p276 = por %p274, %p275
    %p277 = scmp.ne.s32.totalorder %s269, %s271
    %p278 = scmp.eq.s32.totalorder %s25, 1
    %p279 = por %p277, %p278
    %p280 = scmp.ne.s32.totalorder %s271, %s272
    %p281 = scmp.eq.s32.totalorder %s25, 0
    %p282 = por %p280, %p281
    %p283 = scmp.ne.s32.totalorder %s271, %s272
    %p284 = scmp.eq.s32.totalorder %s26, 1
    %p285 = por %p283, %p284
    %p287 = scmp.ne.s32.totalorder %s272, %s286
    %p288 = scmp.eq.s32.totalorder %s26, 0
    %p289 = por %p287, %p288
    %s291 = sadd.s32 %s290, 1
    %p294 = scmp.eq.s32.totalorder %s20, 1
    %p295 = scmp.ne.s32.totalorder %s290, %s292
    %p296 = scmp.eq.s32.totalorder %s20, 0
    %p297 = por %p295, %p296
    %p298 = scmp.ne.s32.totalorder %s290, %s292
    %p299 = scmp.eq.s32.totalorder %s25, 1
    %p300 = por %p298, %p299
    %p301 = scmp.ne.s32.totalorder %s292, %s293
    %p302 = scmp.eq.s32.totalorder %s25, 0
    %p303 = por %p301, %p302
    %p304 = scmp.ne.s32.totalorder %s292, %s293
    %p305 = scmp.eq.s32.totalorder %s26, 1
    %p306 = por %p304, %p305
    %p308 = scmp.ne.s32.totalorder %s293, %s307
    %p309 = scmp.eq.s32.totalorder %s26, 0
    %p310 = por %p308, %p309
    %s312 = sadd.s32 %s311, 1
    %p315 = scmp.eq.s32.totalorder %s20, 1
    %p316 = scmp.ne.s32.totalorder %s311, %s313
    %p317 = scmp.eq.s32.totalorder %s20, 0
    %p318 = por %p316, %p317
    %p319 = scmp.ne.s32.totalorder %s311, %s313
    %p320 = scmp.eq.s32.totalorder %s25, 1
    %p321 = por %p319, %p320
    %p322 = scmp.ne.s32.totalorder %s313, %s314
    %p323 = scmp.eq.s32.totalorder %s25, 0
    %p324 = por %p322, %p323
    %p325 = scmp.ne.s32.totalorder %s313, %s314
    %p326 = scmp.eq.s32.totalorder %s26, 1
    %p327 = por %p325, %p326
    %p329 = scmp.ne.s32.totalorder %s314, %s328
    %p330 = scmp.eq.s32.totalorder %s26, 0
    %p331 = por %p329, %p330
    %s332 = ssub.s32 %s20, %s27
    %p333 = scmp.eq.s32.totalorder %s332, 0
    %s335 = sadd.s32 %s334, 1
    %s336 = scalar_select %p333, %s334, %s335
    %p339 = pneg %p333
    %p340 = scmp.eq.s32.totalorder %s20, 1
    %p341 = por %p339, %p340
    %p342 = scmp.ne.s32.totalorder %s334, %s337
    %p343 = scmp.eq.s32.totalorder %s20, 0
    %p344 = por %p342, %p343
    %p345 = scmp.ne.s32.totalorder %s334, %s337
    %p346 = scmp.eq.s32.totalorder %s25, 1
    %p347 = por %p345, %p346
    %p348 = scmp.ne.s32.totalorder %s337, %s338
    %p349 = scmp.eq.s32.totalorder %s25, 0
    %p350 = por %p348, %p349
    %p351 = scmp.ne.s32.totalorder %s337, %s338
    %p352 = scmp.eq.s32.totalorder %s26, 1
    %p353 = por %p351, %p352
    %p355 = scmp.ne.s32.totalorder %s338, %s354
    %p356 = scmp.eq.s32.totalorder %s26, 0
    %p357 = por %p355, %p356
    %p358 = scmp.le.s32.totalorder 1, %s20
    %p359 = scmp.lt.s32.totalorder %s20, 3
    %p360 = pnand %p358, %p359
    %p361 = pneg %p360
    // Predicated region
    $region9: #{roberta_encoder_forward.4} parent=5 // pred_check
      _
    $region10: #{roberta_encoder_forward.4} parent=5 // pred_check_branch
      %363 = sbr.rel (%p360) target = $region12
    $region11: #{roberta_encoder_forward.4} parent=5 // pred_region
      %s364 = ssub.s32 %s20, 1
      // Predicated region
      $region13: #{roberta_encoder_forward.4} parent=11 // pred_check
        %p365 = pneg %p93
      $region14: #{roberta_encoder_forward.4} parent=11 // pred_check_branch
        %367 = sbr.rel (%p365) target = $region16
      $region15: #{roberta_encoder_forward.4} parent=11 // pred_region
        _
      $region16: #{roberta_encoder_forward.4} parent=11 // pred_fallthru
        _
      // Predicated region
      $region17: #{roberta_encoder_forward.4} parent=11 // pred_check
        %p368 = pneg %p114
      $region18: #{roberta_encoder_forward.4} parent=11 // pred_check_branch
        %370 = sbr.rel (%p368) target = $region20
      $region19: #{roberta_encoder_forward.4} parent=11 // pred_region
        _
      $region20: #{roberta_encoder_forward.4} parent=11 // pred_fallthru
        _
      // Predicated region
      $region21: #{roberta_encoder_forward.4} parent=11 // pred_check
        %p371 = pneg %p135
      $region22: #{roberta_encoder_forward.4} parent=11 // pred_check_branch
        %373 = sbr.rel (%p371) target = $region24
      $region23: #{roberta_encoder_forward.4} parent=11 // pred_region
        _
      $region24: #{roberta_encoder_forward.4} parent=11 // pred_fallthru
        _
      // Predicated region
      $region25: #{roberta_encoder_forward.4} parent=11 // pred_check
        %p374 = pneg %p156
      $region26: #{roberta_encoder_forward.4} parent=11 // pred_check_branch
        %376 = sbr.rel (%p374) target = $region28
      $region27: #{roberta_encoder_forward.4} parent=11 // pred_region
        _
      $region28: #{roberta_encoder_forward.4} parent=11 // pred_fallthru
        _
      // Predicated region
      $region29: #{roberta_encoder_forward.4} parent=11 // pred_check
        %p377 = pneg %p177
      $region30: #{roberta_encoder_forward.4} parent=11 // pred_check_branch
        %379 = sbr.rel (%p377) target = $region32
      $region31: #{roberta_encoder_forward.4} parent=11 // pred_region
        _
      $region32: #{roberta_encoder_forward.4} parent=11 // pred_fallthru
        _
      // Predicated region
      $region33: #{roberta_encoder_forward.4} parent=11 // pred_check
        %p380 = pneg %p198
      $region34: #{roberta_encoder_forward.4} parent=11 // pred_check_branch
        %382 = sbr.rel (%p380) target = $region36
      $region35: #{roberta_encoder_forward.4} parent=11 // pred_region
        _
      $region36: #{roberta_encoder_forward.4} parent=11 // pred_fallthru
        _
      // Predicated region
      $region37: #{roberta_encoder_forward.4} parent=11 // pred_check
        %p383 = pneg %p219
      $region38: #{roberta_encoder_forward.4} parent=11 // pred_check_branch
        %385 = sbr.rel (%p383) target = $region40
      $region39: #{roberta_encoder_forward.4} parent=11 // pred_region
        _
      $region40: #{roberta_encoder_forward.4} parent=11 // pred_fallthru
        _
      // Predicated region
      $region41: #{roberta_encoder_forward.4} parent=11 // pred_check
        %p386 = pneg %p240
      $region42: #{roberta_encoder_forward.4} parent=11 // pred_check_branch
        %388 = sbr.rel (%p386) target = $region44
      $region43: #{roberta_encoder_forward.4} parent=11 // pred_region
        _
      $region44: #{roberta_encoder_forward.4} parent=11 // pred_fallthru
        _
      // Predicated region
      $region45: #{roberta_encoder_forward.4} parent=11 // pred_check
        %p389 = pneg %p261
      $region46: #{roberta_encoder_forward.4} parent=11 // pred_check_branch
        %391 = sbr.rel (%p389) target = $region48
      $region47: #{roberta_encoder_forward.4} parent=11 // pred_region
        _
      $region48: #{roberta_encoder_forward.4} parent=11 // pred_fallthru
        _
      // Predicated region
      $region49: #{roberta_encoder_forward.4} parent=11 // pred_check
        %p392 = pneg %p282
      $region50: #{roberta_encoder_forward.4} parent=11 // pred_check_branch
        %394 = sbr.rel (%p392) target = $region52
      $region51: #{roberta_encoder_forward.4} parent=11 // pred_region
        _
      $region52: #{roberta_encoder_forward.4} parent=11 // pred_fallthru
        _
      // Predicated region
      $region53: #{roberta_encoder_forward.4} parent=11 // pred_check
        %p395 = pneg %p303
      $region54: #{roberta_encoder_forward.4} parent=11 // pred_check_branch
        %397 = sbr.rel (%p395) target = $region56
      $region55: #{roberta_encoder_forward.4} parent=11 // pred_region
        _
      $region56: #{roberta_encoder_forward.4} parent=11 // pred_fallthru
        _
      // Predicated region
      $region57: #{roberta_encoder_forward.4} parent=11 // pred_check
        %p398 = pneg %p324
      $region58: #{roberta_encoder_forward.4} parent=11 // pred_check_branch
        %400 = sbr.rel (%p398) target = $region60
      $region59: #{roberta_encoder_forward.4} parent=11 // pred_region
        _
      $region60: #{roberta_encoder_forward.4} parent=11 // pred_fallthru
        _
    $region12: #{roberta_encoder_forward.4} parent=5 // pred_fallthru
      _
    %p401 = scmp.lt.s32.totalorder %s20, 2
    // Predicated region
    $region61: #{roberta_encoder_forward.4} parent=5 // pred_check
      %p402 = pneg %p401
    $region62: #{roberta_encoder_forward.4} parent=5 // pred_check_branch
      %404 = sbr.rel (%p402) target = $region64
    $region63: #{roberta_encoder_forward.4} parent=5 // pred_region
      // Predicated region
      $region65: #{roberta_encoder_forward.4} parent=63 // pred_check
        %p405 = pneg %p40
      $region66: #{roberta_encoder_forward.4} parent=63 // pred_check_branch
        %407 = sbr.rel (%p405) target = $region68
      $region67: #{roberta_encoder_forward.4} parent=63 // pred_region
        %p408 = scmp.lt.s32.totalorder %s20, 1
        %s409 = scalar_select %p408, %s20, 1
        %s410 = smul.addr %s409, 8
        %s411 = scalar_lea.vmem %s0, %s410
      $region68: #{roberta_encoder_forward.4} parent=63 // pred_fallthru
        _
      // Predicated region
      $region69: #{roberta_encoder_forward.4} parent=63 // pred_check
        %p412 = pneg %p66
      $region70: #{roberta_encoder_forward.4} parent=63 // pred_check_branch
        %414 = sbr.rel (%p412) target = $region72
      $region71: #{roberta_encoder_forward.4} parent=63 // pred_region
        %p415 = scmp.lt.s32.totalorder %s20, 1
        %s416 = scalar_select %p415, %s20, 1
        %s417 = scalar_lea.vmem %s1, %s416
      $region72: #{roberta_encoder_forward.4} parent=63 // pred_fallthru
        _
    $region64: #{roberta_encoder_forward.4} parent=5 // pred_fallthru
      _
    %p418 = scmp.le.s32.totalorder 1, %s20
    %p419 = scmp.lt.s32.totalorder %s20, 3
    %p420 = pnand %p418, %p419
    %p421 = pneg %p420
    // Predicated region
    $region73: #{roberta_encoder_forward.4} parent=5 // pred_check
      _
    $region74: #{roberta_encoder_forward.4} parent=5 // pred_check_branch
      %423 = sbr.rel (%p420) target = $region76
    $region75: #{roberta_encoder_forward.4} parent=5 // pred_region
      %s424 = ssub.s32 %s20, 1
      %p425 = scmp.lt.s32.totalorder %s25, 1
      %s426 = scalar_select %p425, %s25, 1
      %s427 = smul.addr %s426, 8
      %s428 = scalar_lea.vmem %s0, %s427
      %p429 = pneg %p46
      %p430 = pneg %p43
      %p431 = scmp.lt.s32.totalorder %s25, 1
      %s432 = scalar_select %p431, %s25, 1
      %s433 = scalar_lea.vmem %s1, %s432
      %p434 = pneg %p72
      %p435 = pneg %p69
      %p436 = pneg %p93
      %p437 = pneg %p90
      %p438 = pneg %p114
      %p439 = pneg %p111
      %p440 = pneg %p135
      %p441 = pneg %p132
      %p442 = pneg %p156
      %p443 = pneg %p153
      %p444 = pneg %p177
      %p445 = pneg %p174
      %p446 = pneg %p198
      %p447 = pneg %p195
      %p448 = pneg %p219
      %p449 = pneg %p216
      %p450 = pneg %p240
      %p451 = pneg %p237
      %p452 = pneg %p261
      %p453 = pneg %p258
      %p454 = pneg %p282
      %p455 = pneg %p279
      %p456 = pneg %p303
      %p457 = pneg %p300
      %p458 = pneg %p324
      %p459 = pneg %p321
      %p460 = pneg %p350
      %p461 = pneg %p347
      %p462 = scmp.lt.s32.totalorder %s25, 1
      %s463 = scalar_select %p462, %s25, 1
      %s464 = smul.addr %s463, 8
      %s465 = scalar_lea.vmem %s14, %s464
      %p466 = scmp.lt.s32.totalorder %s25, 1
      %s467 = scalar_select %p466, %s25, 1
      %s468 = smul.addr %s467, 8
      %s469 = scalar_lea.vmem %s0, %s468
      %p470 = scmp.lt.s32.totalorder %s25, 1
      %s471 = scalar_select %p470, %s25, 1
      %s472 = scalar_lea.vmem %s1, %s471
      %p473 = scmp.lt.s32.totalorder %s25, 1
      %s474 = scalar_select %p473, %s25, 1
      %s475 = smul.addr %s474, 8
      %s476 = scalar_lea.vmem %s14, %s475
      %v478 = vld [vmem:[%s469] sm:$0xff]
      %v479 = vpack.c.bf16 %v478, %v478
      %v480 = vld [vmem:[%s2] sm:$0xf]
      %v481 = vld [vmem:[%s2 + $0x4] sm:$0xf]
      %v482 = vld [vmem:[%s2 + $0x8] sm:$0xf]
      %v483 = vld [vmem:[%s2 + $0xc] sm:$0xf]
      %v484 = vld [vmem:[%s3] sm:$0x1]
      %v486 = vlaneseq
      %v487 = vshrl.u32 %v486, 7
      %v488 = vsub.s32 0, %v487
      %v489 = vrot.slane %v484, %v488
      %v495 = vunpack.c.l.b16 %v480
      %v496 = vunpack.c.l.b16 %v481
      %v497 = vunpack.c.l.b16 %v482
      %v498 = vunpack.c.l.b16 %v483
      %v499 = vpack.c.b16 %v496, %v495
      %v500 = vpack.c.b16 %v498, %v497
      %vm503 = vcmask 261120
      %v505 = vsel %vm503, %v479, 0
      %507 = vmatprep.subr.bf16.mxu0 0
      %508 = vmatpush1.bf16.msra.mxu0 %v499
      %509 = vmatprep.subr.bf16.mxu0 0
      %510 = vmatpush1.bf16.msra.mxu0 %v500
      %511 = vmatprep.subr.bf16.mxu0 0
      %512 = vmatpush1.bf16.msra.mxu0 0
      %513 = vmatprep.subr.bf16.mxu0 0
      %514 = vmatpush1.bf16.msra.mxu0 0
      %515 = vmatprep.subr.bf16.mxu0 0
      %516 = vmatpush1.bf16.msra.mxu0 0
      %517 = vmatprep.subr.bf16.mxu0 0
      %518 = vmatpush1.bf16.msra.mxu0 0
      %519 = vmatprep.subr.bf16.mxu0 0
      %520 = vmatpush1.bf16.msra.mxu0 0
      %521 = vmatprep.subr.bf16.mxu0 0
      %522 = vmatpush1.bf16.msra.mxu0 0
      %523 = vmatprep.subr.bf16.mxu0 0
      %524 = vmatpush1.bf16.msra.mxu0 0
      %525 = vmatprep.subr.bf16.mxu0 0
      %526 = vmatpush1.bf16.msra.mxu0 0
      %527 = vmatprep.subr.bf16.mxu0 0
      %528 = vmatpush1.bf16.msra.mxu0 0
      %529 = vmatprep.subr.bf16.mxu0 0
      %530 = vmatpush1.bf16.msra.mxu0 0
      %531 = vmatprep.subr.bf16.mxu0 0
      %532 = vmatpush1.bf16.msra.mxu0 0
      %533 = vmatprep.subr.bf16.mxu0 0
      %534 = vmatpush1.bf16.msra.mxu0 0
      %535 = vmatprep.subr.bf16.mxu0 0
      %536 = vmatpush1.bf16.msra.mxu0 0
      %537 = vmatprep.subr.bf16.mxu0 0
      %538 = vmatpush1.bf16.msra.mxu0 0
      %539 = vmatprep.mubr.bf16.mxu0 0
      %540 = vmatmul.mubr.bf16.gmra.mrb[0].mxu0 %v505
      %v541 = vpop.f32.mrb[0].mxu0
      %v542 = vadd.f32 %v489, %v541
      %v543 = vpop.f32.mrb[0].mxu0
      %v544 = vpop.f32.mrb[0].mxu0
      %v545 = vpop.f32.mrb[0].mxu0
      %546 = vdwg.mxu0
      %v547 = vmul.f32 %v542, 0.35355338
      %549 = vrot.lane.b32.xlu0 %v547, 120
      %v550 = vpop.permute.xlu0 %549
      %552 = vrot.lane.b32.xlu0 %v547, 112
      %v553 = vpop.permute.xlu0 %552
      %555 = vrot.lane.b32.xlu0 %v547, 104
      %v556 = vpop.permute.xlu0 %555
      %v558 = vcombine.low %v547, %v553
      %v559 = vcombine.high %v547, %v553
      %v561 = vunpack.c.l.s4 1983009808
      %v562 = vunpack.c.0.s8 %v561
      %v563 = vlaneseq
      %v564 = vshrl.u32 %v563, 7
      %v565 = vsub.s32 %v562, %v564
      %v566 = vrot.slane %v558, %v565
      %v568 = vunpack.c.l.s4 1983009808
      %v569 = vunpack.c.0.s8 %v568
      %v570 = vlaneseq
      %v571 = vshrl.u32 %v570, 7
      %v572 = vsub.s32 %v569, %v571
      %v573 = vrot.slane %v559, %v572
      %v574 = vcombine.low %v550, %v556
      %v575 = vcombine.high %v550, %v556
      %v577 = vunpack.c.l.s4 1983009808
      %v578 = vunpack.c.0.s8 %v577
      %v579 = vlaneseq
      %v580 = vshrl.u32 %v579, 7
      %v581 = vsub.s32 %v578, %v580
      %v582 = vrot.slane %v574, %v581
      %v584 = vunpack.c.l.s4 1983009808
      %v585 = vunpack.c.0.s8 %v584
      %v586 = vlaneseq
      %v587 = vshrl.u32 %v586, 7
      %v588 = vsub.s32 %v585, %v587
      %v589 = vrot.slane %v575, %v588
      %v590 = vcombine.low %v566, %v582
      %v591 = vcombine.high %v566, %v582
      %v593 = vunpack.c.l.s4 1934713408
      %v594 = vunpack.c.0.s8 %v593
      %v595 = vlaneseq
      %v596 = vshrl.u32 %v595, 7
      %v597 = vsub.s32 %v594, %v596
      %v598 = vrot.slane %v590, %v597
      %v600 = vunpack.c.l.s4 1934713408
      %v601 = vunpack.c.0.s8 %v600
      %v602 = vlaneseq
      %v603 = vshrl.u32 %v602, 7
      %v604 = vsub.s32 %v601, %v603
      %v605 = vrot.slane %v591, %v604
      %v606 = vcombine.low %v573, %v589
      %v607 = vcombine.high %v573, %v589
      %v609 = vunpack.c.l.s4 1934713408
      %v610 = vunpack.c.0.s8 %v609
      %v611 = vlaneseq
      %v612 = vshrl.u32 %v611, 7
      %v613 = vsub.s32 %v610, %v612
      %v614 = vrot.slane %v606, %v613
      %v616 = vunpack.c.l.s4 1934713408
      %v617 = vunpack.c.0.s8 %v616
      %v618 = vlaneseq
      %v619 = vshrl.u32 %v618, 7
      %v620 = vsub.s32 %v617, %v619
      %v621 = vrot.slane %v607, %v620
      %v622 = vcombine.high %v598, 0.0
      %v623 = vcombine.high %v605, 0.0
      %v624 = vcombine.high %v614, 0.0
      %v625 = vcombine.high %v621, 0.0
      %627 = vrot.lane.b32.xlu0 %v542, 120
      %v628 = vpop.permute.xlu0 %627
      %629 = vrot.lane.b32.xlu0 %v542, 112
      %v630 = vpop.permute.xlu0 %629
      %631 = vrot.lane.b32.xlu0 %v542, 104
      %v632 = vpop.permute.xlu0 %631
      %633 = vrot.lane.b32.xlu0 %v542, 96
      %v634 = vpop.permute.xlu0 %633
      %635 = vrot.lane.b32.xlu0 %v628, 96
      %v636 = vpop.permute.xlu0 %635
      %637 = vrot.lane.b32.xlu0 %v630, 96
      %v638 = vpop.permute.xlu0 %637
      %639 = vrot.lane.b32.xlu0 %v632, 96
      %v640 = vpop.permute.xlu0 %639
      %v645 = vcombine.low %v634, %v638
      %v646 = vcombine.high %v634, %v638
      %v648 = vunpack.c.l.s4 1983009808
      %v649 = vunpack.c.0.s8 %v648
      %v650 = vlaneseq
      %v651 = vshrl.u32 %v650, 7
      %v652 = vsub.s32 %v649, %v651
      %v653 = vrot.slane %v645, %v652
      %v655 = vunpack.c.l.s4 1983009808
      %v656 = vunpack.c.0.s8 %v655
      %v657 = vlaneseq
      %v658 = vshrl.u32 %v657, 7
      %v659 = vsub.s32 %v656, %v658
      %v660 = vrot.slane %v646, %v659
      %v661 = vcombine.low %v636, %v640
      %v662 = vcombine.high %v636, %v640
      %v664 = vunpack.c.l.s4 1983009808
      %v665 = vunpack.c.0.s8 %v664
      %v666 = vlaneseq
      %v667 = vshrl.u32 %v666, 7
      %v668 = vsub.s32 %v665, %v667
      %v669 = vrot.slane %v661, %v668
      %v671 = vunpack.c.l.s4 1983009808
      %v672 = vunpack.c.0.s8 %v671
      %v673 = vlaneseq
      %v674 = vshrl.u32 %v673, 7
      %v675 = vsub.s32 %v672, %v674
      %v676 = vrot.slane %v662, %v675
      %v677 = vcombine.low %v653, %v669
      %v678 = vcombine.high %v653, %v669
      %v680 = vunpack.c.l.s4 1934713408
      %v681 = vunpack.c.0.s8 %v680
      %v682 = vlaneseq
      %v683 = vshrl.u32 %v682, 7
      %v684 = vsub.s32 %v681, %v683
      %v685 = vrot.slane %v677, %v684
      %v687 = vunpack.c.l.s4 1934713408
      %v688 = vunpack.c.0.s8 %v687
      %v689 = vlaneseq
      %v690 = vshrl.u32 %v689, 7
      %v691 = vsub.s32 %v688, %v690
      %v692 = vrot.slane %v678, %v691
      %v693 = vcombine.low %v660, %v676
      %v694 = vcombine.high %v660, %v676
      %v696 = vunpack.c.l.s4 1934713408
      %v697 = vunpack.c.0.s8 %v696
      %v698 = vlaneseq
      %v699 = vshrl.u32 %v698, 7
      %v700 = vsub.s32 %v697, %v699
      %v701 = vrot.slane %v693, %v700
      %v703 = vunpack.c.l.s4 1934713408
      %v704 = vunpack.c.0.s8 %v703
      %v705 = vlaneseq
      %v706 = vshrl.u32 %v705, 7
      %v707 = vsub.s32 %v704, %v706
      %v708 = vrot.slane %v694, %v707
      %v709 = vcombine.high %v685, 0.0
      %v710 = vcombine.high %v692, 0.0
      %v711 = vcombine.high %v701, 0.0
      %v712 = vcombine.high %v708, 0.0
      %713 = vrot.lane.b32.xlu0 %v542, 64
      %v714 = vpop.permute.xlu0 %713
      %715 = vrot.lane.b32.xlu0 %v628, 64
      %v716 = vpop.permute.xlu0 %715
      %717 = vrot.lane.b32.xlu0 %v630, 64
      %v718 = vpop.permute.xlu0 %717
      %719 = vrot.lane.b32.xlu0 %v632, 64
      %v720 = vpop.permute.xlu0 %719
      %v725 = vcombine.low %v714, %v718
      %v726 = vcombine.high %v714, %v718
      %v728 = vunpack.c.l.s4 1983009808
      %v729 = vunpack.c.0.s8 %v728
      %v730 = vlaneseq
      %v731 = vshrl.u32 %v730, 7
      %v732 = vsub.s32 %v729, %v731
      %v733 = vrot.slane %v725, %v732
      %v735 = vunpack.c.l.s4 1983009808
      %v736 = vunpack.c.0.s8 %v735
      %v737 = vlaneseq
      %v738 = vshrl.u32 %v737, 7
      %v739 = vsub.s32 %v736, %v738
      %v740 = vrot.slane %v726, %v739
      %v741 = vcombine.low %v716, %v720
      %v742 = vcombine.high %v716, %v720
      %v744 = vunpack.c.l.s4 1983009808
      %v745 = vunpack.c.0.s8 %v744
      %v746 = vlaneseq
      %v747 = vshrl.u32 %v746, 7
      %v748 = vsub.s32 %v745, %v747
      %v749 = vrot.slane %v741, %v748
      %v751 = vunpack.c.l.s4 1983009808
      %v752 = vunpack.c.0.s8 %v751
      %v753 = vlaneseq
      %v754 = vshrl.u32 %v753, 7
      %v755 = vsub.s32 %v752, %v754
      %v756 = vrot.slane %v742, %v755
      %v757 = vcombine.low %v733, %v749
      %v758 = vcombine.high %v733, %v749
      %v760 = vunpack.c.l.s4 1934713408
      %v761 = vunpack.c.0.s8 %v760
      %v762 = vlaneseq
      %v763 = vshrl.u32 %v762, 7
      %v764 = vsub.s32 %v761, %v763
      %v765 = vrot.slane %v757, %v764
      %v767 = vunpack.c.l.s4 1934713408
      %v768 = vunpack.c.0.s8 %v767
      %v769 = vlaneseq
      %v770 = vshrl.u32 %v769, 7
      %v771 = vsub.s32 %v768, %v770
      %v772 = vrot.slane %v758, %v771
      %v773 = vcombine.low %v740, %v756
      %v774 = vcombine.high %v740, %v756
      %v776 = vunpack.c.l.s4 1934713408
      %v777 = vunpack.c.0.s8 %v776
      %v778 = vlaneseq
      %v779 = vshrl.u32 %v778, 7
      %v780 = vsub.s32 %v777, %v779
      %v781 = vrot.slane %v773, %v780
      %v783 = vunpack.c.l.s4 1934713408
      %v784 = vunpack.c.0.s8 %v783
      %v785 = vlaneseq
      %v786 = vshrl.u32 %v785, 7
      %v787 = vsub.s32 %v784, %v786
      %v788 = vrot.slane %v774, %v787
      %v789 = vcombine.high %v765, 0.0
      %v790 = vcombine.high %v772, 0.0
      %v791 = vcombine.high %v781, 0.0
      %v792 = vcombine.high %v788, 0.0
      %v793 = vpack.c.bf16 %v598, %v598
      %v794 = vpack.c.bf16 %v622, %v622
      %v795 = vpack.c.bf16 %v605, %v605
      %v796 = vpack.c.bf16 %v623, %v623
      %v797 = vpack.c.bf16 %v614, %v614
      %v798 = vpack.c.bf16 %v624, %v624
      %v799 = vpack.c.bf16 %v621, %v621
      %v800 = vpack.c.bf16 %v625, %v625
      %v801 = vpack.c.bf16 %v685, %v685
      %v802 = vpack.c.bf16 %v709, %v709
      %v803 = vpack.c.bf16 %v692, %v692
      %v804 = vpack.c.bf16 %v710, %v710
      %v805 = vpack.c.bf16 %v701, %v701
      %v806 = vpack.c.bf16 %v711, %v711
      %v807 = vpack.c.bf16 %v708, %v708
      %v808 = vpack.c.bf16 %v712, %v712
      %v809 = vld [vmem:[%s472] sm:$0x1]
      %v811 = vlaneseq
      %v812 = vshrl.u32 %v811, 7
      %v813 = vsub.s32 0, %v812
      %v814 = vrot.slane %v809, %v813
      %v816 = vcombine.low %v793, %v797
      %v818 = vunpack.c.l.s4 1983009808
      %v819 = vunpack.c.0.s8 %v818
      %v820 = vlaneseq
      %v821 = vshrl.u32 %v820, 7
      %v822 = vsub.s32 %v819, %v821
      %v823 = vrot.slane %v816, %v822
      %v824 = vcombine.low %v795, %v799
      %v826 = vunpack.c.l.s4 1983009808
      %v827 = vunpack.c.0.s8 %v826
      %v828 = vlaneseq
      %v829 = vshrl.u32 %v828, 7
      %v830 = vsub.s32 %v827, %v829
      %v831 = vrot.slane %v824, %v830
      %v832 = vcombine.low %v823, %v831
      %v834 = vunpack.c.l.s4 1934713408
      %v835 = vunpack.c.0.s8 %v834
      %v836 = vlaneseq
      %v837 = vshrl.u32 %v836, 7
      %v838 = vsub.s32 %v835, %v837
      %v839 = vrot.slane %v832, %v838
      %v840 = vcombine.high %v839, 0
      %v841 = vcombine.low %v794, %v798
      %v843 = vunpack.c.l.s4 1983009808
      %v844 = vunpack.c.0.s8 %v843
      %v845 = vlaneseq
      %v846 = vshrl.u32 %v845, 7
      %v847 = vsub.s32 %v844, %v846
      %v848 = vrot.slane %v841, %v847
      %v849 = vcombine.low %v796, %v800
      %v851 = vunpack.c.l.s4 1983009808
      %v852 = vunpack.c.0.s8 %v851
      %v853 = vlaneseq
      %v854 = vshrl.u32 %v853, 7
      %v855 = vsub.s32 %v852, %v854
      %v856 = vrot.slane %v849, %v855
      %v857 = vcombine.low %v848, %v856
      %v859 = vunpack.c.l.s4 1934713408
      %v860 = vunpack.c.0.s8 %v859
      %v861 = vlaneseq
      %v862 = vshrl.u32 %v861, 7
      %v863 = vsub.s32 %v860, %v862
      %v864 = vrot.slane %v857, %v863
      %v865 = vcombine.high %v864, 0
      %v868 = vpack.i.b16 %v864, %v839
      %v869 = vshrl.u32 %v839, 16
      %v870 = vshrl.u32 %v864, 16
      %v871 = vpack.i.b16 %v870, %v869
      %v874 = vpack.i.b16 %v865, %v840
      %v875 = vshrl.u32 %v840, 16
      %v876 = vshrl.u32 %v865, 16
      %v877 = vpack.i.b16 %v876, %v875
      %878 = vxpose.xlu0.c.b16.start [1/8] %v801, 128
      %879 = vxpose.xlu0.c.b16.cont [2/8] 0, 128
      %880 = vxpose.xlu0.c.b16.cont [3/8] 0, 128
      %881 = vxpose.xlu0.c.b16.cont [4/8] 0, 128
      %882 = vxpose.xlu0.c.b16.cont [5/8] 0, 128
      %883 = vxpose.xlu0.c.b16.cont [6/8] 0, 128
      %884 = vxpose.xlu0.c.b16.cont [7/8] 0, 128
      %885 = vxpose.xlu0.c.b16.end [8/8] 0, 128
      %v886 = vpop.trf.xlu0
      %v887 = vpop.trf.xlu0
      %v888 = vpop.trf.xlu0
      %v889 = vpop.trf.xlu0
      %v890 = vpop.trf.xlu0
      %v891 = vpop.trf.xlu0
      %v892 = vpop.trf.xlu0
      %v893 = vpop.trf.xlu0
      %894 = vxpose.xlu0.c.b16.start [1/8] %v802, 128
      %895 = vxpose.xlu0.c.b16.cont [2/8] 0, 128
      %896 = vxpose.xlu0.c.b16.cont [3/8] 0, 128
      %897 = vxpose.xlu0.c.b16.cont [4/8] 0, 128
      %898 = vxpose.xlu0.c.b16.cont [5/8] 0, 128
      %899 = vxpose.xlu0.c.b16.cont [6/8] 0, 128
      %900 = vxpose.xlu0.c.b16.cont [7/8] 0, 128
      %901 = vxpose.xlu0.c.b16.end [8/8] 0, 128
      %v902 = vpop.trf.xlu0
      %v903 = vpop.trf.xlu0
      %v904 = vpop.trf.xlu0
      %v905 = vpop.trf.xlu0
      %v906 = vpop.trf.xlu0
      %v907 = vpop.trf.xlu0
      %v908 = vpop.trf.xlu0
      %v909 = vpop.trf.xlu0
      %910 = vxpose.xlu0.c.b16.start [1/8] %v803, 128
      %911 = vxpose.xlu0.c.b16.cont [2/8] 0, 128
      %912 = vxpose.xlu0.c.b16.cont [3/8] 0, 128
      %913 = vxpose.xlu0.c.b16.cont [4/8] 0, 128
      %914 = vxpose.xlu0.c.b16.cont [5/8] 0, 128
      %915 = vxpose.xlu0.c.b16.cont [6/8] 0, 128
      %916 = vxpose.xlu0.c.b16.cont [7/8] 0, 128
      %917 = vxpose.xlu0.c.b16.end [8/8] 0, 128
      %v918 = vpop.trf.xlu0
      %v919 = vpop.trf.xlu0
      %v920 = vpop.trf.xlu0
      %v921 = vpop.trf.xlu0
      %v922 = vpop.trf.xlu0
      %v923 = vpop.trf.xlu0
      %v924 = vpop.trf.xlu0
      %v925 = vpop.trf.xlu0
      %926 = vxpose.xlu0.c.b16.start [1/8] %v804, 128
      %927 = vxpose.xlu0.c.b16.cont [2/8] 0, 128
      %928 = vxpose.xlu0.c.b16.cont [3/8] 0, 128
      %929 = vxpose.xlu0.c.b16.cont [4/8] 0, 128
      %930 = vxpose.xlu0.c.b16.cont [5/8] 0, 128
      %931 = vxpose.xlu0.c.b16.cont [6/8] 0, 128
      %932 = vxpose.xlu0.c.b16.cont [7/8] 0, 128
      %933 = vxpose.xlu0.c.b16.end [8/8] 0, 128
      %v934 = vpop.trf.xlu0
      %v935 = vpop.trf.xlu0
      %v936 = vpop.trf.xlu0
      %v937 = vpop.trf.xlu0
      %v938 = vpop.trf.xlu0
      %v939 = vpop.trf.xlu0
      %v940 = vpop.trf.xlu0
      %v941 = vpop.trf.xlu0
      %942 = vxpose.xlu0.c.b16.start [1/8] %v805, 128
      %943 = vxpose.xlu0.c.b16.cont [2/8] 0, 128
      %944 = vxpose.xlu0.c.b16.cont [3/8] 0, 128
      %945 = vxpose.xlu0.c.b16.cont [4/8] 0, 128
      %946 = vxpose.xlu0.c.b16.cont [5/8] 0, 128
      %947 = vxpose.xlu0.c.b16.cont [6/8] 0, 128
      %948 = vxpose.xlu0.c.b16.cont [7/8] 0, 128
      %949 = vxpose.xlu0.c.b16.end [8/8] 0, 128
      %v950 = vpop.trf.xlu0
      %v951 = vpop.trf.xlu0
      %v952 = vpop.trf.xlu0
      %v953 = vpop.trf.xlu0
      %v954 = vpop.trf.xlu0
      %v955 = vpop.trf.xlu0
      %v956 = vpop.trf.xlu0
      %v957 = vpop.trf.xlu0
      %958 = vxpose.xlu0.c.b16.start [1/8] %v806, 128
      %959 = vxpose.xlu0.c.b16.cont [2/8] 0, 128
      %960 = vxpose.xlu0.c.b16.cont [3/8] 0, 128
      %961 = vxpose.xlu0.c.b16.cont [4/8] 0, 128
      %962 = vxpose.xlu0.c.b16.cont [5/8] 0, 128
      %963 = vxpose.xlu0.c.b16.cont [6/8] 0, 128
      %964 = vxpose.xlu0.c.b16.cont [7/8] 0, 128
      %965 = vxpose.xlu0.c.b16.end [8/8] 0, 128
      %v966 = vpop.trf.xlu0
      %v967 = vpop.trf.xlu0
      %v968 = vpop.trf.xlu0
      %v969 = vpop.trf.xlu0
      %v970 = vpop.trf.xlu0
      %v971 = vpop.trf.xlu0
      %v972 = vpop.trf.xlu0
      %v973 = vpop.trf.xlu0
      %974 = vxpose.xlu0.c.b16.start [1/8] %v807, 128
      %975 = vxpose.xlu0.c.b16.cont [2/8] 0, 128
      %976 = vxpose.xlu0.c.b16.cont [3/8] 0, 128
      %977 = vxpose.xlu0.c.b16.cont [4/8] 0, 128
      %978 = vxpose.xlu0.c.b16.cont [5/8] 0, 128
      %979 = vxpose.xlu0.c.b16.cont [6/8] 0, 128
      %980 = vxpose.xlu0.c.b16.cont [7/8] 0, 128
      %981 = vxpose.xlu0.c.b16.end [8/8] 0, 128
      %v982 = vpop.trf.xlu0
      %v983 = vpop.trf.xlu0
      %v984 = vpop.trf.xlu0
      %v985 = vpop.trf.xlu0
      %v986 = vpop.trf.xlu0
      %v987 = vpop.trf.xlu0
      %v988 = vpop.trf.xlu0
      %v989 = vpop.trf.xlu0
      %990 = vxpose.xlu0.c.b16.start [1/8] %v808, 128
      %991 = vxpose.xlu0.c.b16.cont [2/8] 0, 128
      %992 = vxpose.xlu0.c.b16.cont [3/8] 0, 128
      %993 = vxpose.xlu0.c.b16.cont [4/8] 0, 128
      %994 = vxpose.xlu0.c.b16.cont [5/8] 0, 128
      %995 = vxpose.xlu0.c.b16.cont [6/8] 0, 128
      %996 = vxpose.xlu0.c.b16.cont [7/8] 0, 128
      %997 = vxpose.xlu0.c.b16.end [8/8] 0, 128
      %v998 = vpop.trf.xlu0
      %v999 = vpop.trf.xlu0
      %v1000 = vpop.trf.xlu0
      %v1001 = vpop.trf.xlu0
      %v1002 = vpop.trf.xlu0
      %v1003 = vpop.trf.xlu0
      %v1004 = vpop.trf.xlu0
      %v1005 = vpop.trf.xlu0
      %v1006 = vcombine.low %v886, %v950
      %v1008 = vunpack.c.l.s4 1983009808
      %v1009 = vunpack.c.0.s8 %v1008
      %v1010 = vlaneseq
      %v1011 = vshrl.u32 %v1010, 7
      %v1012 = vsub.s32 %v1009, %v1011
      %v1013 = vrot.slane %v1006, %v1012
      %v1014 = vcombine.low %v918, %v982
      %v1016 = vunpack.c.l.s4 1983009808
      %v1017 = vunpack.c.0.s8 %v1016
      %v1018 = vlaneseq
      %v1019 = vshrl.u32 %v1018, 7
      %v1020 = vsub.s32 %v1017, %v1019
      %v1021 = vrot.slane %v1014, %v1020
      %v1022 = vcombine.low %v1013, %v1021
      %v1023 = vcombine.high %v1013, %v1021
      %v1025 = vunpack.c.l.s4 1934713408
      %v1026 = vunpack.c.0.s8 %v1025
      %v1027 = vlaneseq
      %v1028 = vshrl.u32 %v1027, 7
      %v1029 = vsub.s32 %v1026, %v1028
      %v1030 = vrot.slane %v1022, %v1029
      %v1032 = vunpack.c.l.s4 1934713408
      %v1033 = vunpack.c.0.s8 %v1032
      %v1034 = vlaneseq
      %v1035 = vshrl.u32 %v1034, 7
      %v1036 = vsub.s32 %v1033, %v1035
      %v1037 = vrot.slane %v1023, %v1036
      %v1038 = vcombine.high %v1030, 0
      %v1039 = vcombine.high %v1037, 0
      %v1040 = vcombine.low %v902, %v966
      %v1042 = vunpack.c.l.s4 1983009808
      %v1043 = vunpack.c.0.s8 %v1042
      %v1044 = vlaneseq
      %v1045 = vshrl.u32 %v1044, 7
      %v1046 = vsub.s32 %v1043, %v1045
      %v1047 = vrot.slane %v1040, %v1046
      %v1048 = vcombine.low %v934, %v998
      %v1050 = vunpack.c.l.s4 1983009808
      %v1051 = vunpack.c.0.s8 %v1050
      %v1052 = vlaneseq
      %v1053 = vshrl.u32 %v1052, 7
      %v1054 = vsub.s32 %v1051, %v1053
      %v1055 = vrot.slane %v1048, %v1054
      %v1056 = vcombine.low %v1047, %v1055
      %v1057 = vcombine.high %v1047, %v1055
      %v1059 = vunpack.c.l.s4 1934713408
      %v1060 = vunpack.c.0.s8 %v1059
      %v1061 = vlaneseq
      %v1062 = vshrl.u32 %v1061, 7
      %v1063 = vsub.s32 %v1060, %v1062
      %v1064 = vrot.slane %v1056, %v1063
      %v1066 = vunpack.c.l.s4 1934713408
      %v1067 = vunpack.c.0.s8 %v1066
      %v1068 = vlaneseq
      %v1069 = vshrl.u32 %v1068, 7
      %v1070 = vsub.s32 %v1067, %v1069
      %v1071 = vrot.slane %v1057, %v1070
      %v1072 = vcombine.high %v1064, 0
      %v1073 = vcombine.high %v1071, 0
      %v1076 = vpack.i.b16 %v1064, %v1030
      %v1078 = vshrl.u32 %v1030, 16
      %v1079 = vshrl.u32 %v1064, 16
      %v1080 = vpack.i.b16 %v1079, %v1078
      %v1084 = vpack.i.b16 %v1072, %v1038
      %v1086 = vshrl.u32 %v1038, 16
      %v1087 = vshrl.u32 %v1072, 16
      %v1088 = vpack.i.b16 %v1087, %v1086
      %v1092 = vpack.i.b16 %v1071, %v1037
      %v1094 = vshrl.u32 %v1037, 16
      %v1095 = vshrl.u32 %v1071, 16
      %v1096 = vpack.i.b16 %v1095, %v1094
      %v1100 = vpack.i.b16 %v1073, %v1039
      %v1102 = vshrl.u32 %v1039, 16
      %v1103 = vshrl.u32 %v1073, 16
      %v1104 = vpack.i.b16 %v1103, %v1102
      %1106 = vxpose.xlu0.c.b16.start [1/8] %v1076, 128
      %1107 = vxpose.xlu0.c.b16.cont [2/8] 0, 128
      %1108 = vxpose.xlu0.c.b16.cont [3/8] 0, 128
      %1109 = vxpose.xlu0.c.b16.cont [4/8] 0, 128
      %1110 = vxpose.xlu0.c.b16.cont [5/8] 0, 128
      %1111 = vxpose.xlu0.c.b16.cont [6/8] 0, 128
      %1112 = vxpose.xlu0.c.b16.cont [7/8] 0, 128
      %1113 = vxpose.xlu0.c.b16.end [8/8] 0, 128
      %v1114 = vpop.trf.xlu0
      %v1115 = vpop.trf.xlu0
      %v1116 = vpop.trf.xlu0
      %v1117 = vpop.trf.xlu0
      %v1118 = vpop.trf.xlu0
      %v1119 = vpop.trf.xlu0
      %v1120 = vpop.trf.xlu0
      %v1121 = vpop.trf.xlu0
      %1122 = vxpose.xlu0.c.b16.start [1/8] %v1080, 128
      %1123 = vxpose.xlu0.c.b16.cont [2/8] 0, 128
      %1124 = vxpose.xlu0.c.b16.cont [3/8] 0, 128
      %1125 = vxpose.xlu0.c.b16.cont [4/8] 0, 128
      %1126 = vxpose.xlu0.c.b16.cont [5/8] 0, 128
      %1127 = vxpose.xlu0.c.b16.cont [6/8] 0, 128
      %1128 = vxpose.xlu0.c.b16.cont [7/8] 0, 128
      %1129 = vxpose.xlu0.c.b16.end [8/8] 0, 128
      %v1130 = vpop.trf.xlu0
      %v1131 = vpop.trf.xlu0
      %v1132 = vpop.trf.xlu0
      %v1133 = vpop.trf.xlu0
      %v1134 = vpop.trf.xlu0
      %v1135 = vpop.trf.xlu0
      %v1136 = vpop.trf.xlu0
      %v1137 = vpop.trf.xlu0
      %1138 = vxpose.xlu0.c.b16.start [1/8] %v1084, 128
      %1139 = vxpose.xlu0.c.b16.cont [2/8] 0, 128
      %1140 = vxpose.xlu0.c.b16.cont [3/8] 0, 128
      %1141 = vxpose.xlu0.c.b16.cont [4/8] 0, 128
      %1142 = vxpose.xlu0.c.b16.cont [5/8] 0, 128
      %1143 = vxpose.xlu0.c.b16.cont [6/8] 0, 128
      %1144 = vxpose.xlu0.c.b16.cont [7/8] 0, 128
      %1145 = vxpose.xlu0.c.b16.end [8/8] 0, 128
      %v1146 = vpop.trf.xlu0
      %v1147 = vpop.trf.xlu0
      %v1148 = vpop.trf.xlu0
      %v1149 = vpop.trf.xlu0
      %v1150 = vpop.trf.xlu0
      %v1151 = vpop.trf.xlu0
      %v1152 = vpop.trf.xlu0
      %v1153 = vpop.trf.xlu0
      %1154 = vxpose.xlu0.c.b16.start [1/8] %v1088, 128
      %1155 = vxpose.xlu0.c.b16.cont [2/8] 0, 128
      %1156 = vxpose.xlu0.c.b16.cont [3/8] 0, 128
      %1157 = vxpose.xlu0.c.b16.cont [4/8] 0, 128
      %1158 = vxpose.xlu0.c.b16.cont [5/8] 0, 128
      %1159 = vxpose.xlu0.c.b16.cont [6/8] 0, 128
      %1160 = vxpose.xlu0.c.b16.cont [7/8] 0, 128
      %1161 = vxpose.xlu0.c.b16.end [8/8] 0, 128
      %v1162 = vpop.trf.xlu0
      %v1163 = vpop.trf.xlu0
      %v1164 = vpop.trf.xlu0
      %v1165 = vpop.trf.xlu0
      %v1166 = vpop.trf.xlu0
      %v1167 = vpop.trf.xlu0
      %v1168 = vpop.trf.xlu0
      %v1169 = vpop.trf.xlu0
      %1170 = vxpose.xlu0.c.b16.start [1/8] %v1092, 128
      %1171 = vxpose.xlu0.c.b16.cont [2/8] 0, 128
      %1172 = vxpose.xlu0.c.b16.cont [3/8] 0, 128
      %1173 = vxpose.xlu0.c.b16.cont [4/8] 0, 128
      %1174 = vxpose.xlu0.c.b16.cont [5/8] 0, 128
      %1175 = vxpose.xlu0.c.b16.cont [6/8] 0, 128
      %1176 = vxpose.xlu0.c.b16.cont [7/8] 0, 128
      %1177 = vxpose.xlu0.c.b16.end [8/8] 0, 128
      %v1178 = vpop.trf.xlu0
      %v1179 = vpop.trf.xlu0
      %v1180 = vpop.trf.xlu0
      %v1181 = vpop.trf.xlu0
      %v1182 = vpop.trf.xlu0
      %v1183 = vpop.trf.xlu0
      %v1184 = vpop.trf.xlu0
      %v1185 = vpop.trf.xlu0
      %1186 = vxpose.xlu0.c.b16.start [1/8] %v1096, 128
      %1187 = vxpose.xlu0.c.b16.cont [2/8] 0, 128
      %1188 = vxpose.xlu0.c.b16.cont [3/8] 0, 128
      %1189 = vxpose.xlu0.c.b16.cont [4/8] 0, 128
      %1190 = vxpose.xlu0.c.b16.cont [5/8] 0, 128
      %1191 = vxpose.xlu0.c.b16.cont [6/8] 0, 128
      %1192 = vxpose.xlu0.c.b16.cont [7/8] 0, 128
      %1193 = vxpose.xlu0.c.b16.end [8/8] 0, 128
      %v1194 = vpop.trf.xlu0
      %v1195 = vpop.trf.xlu0
      %v1196 = vpop.trf.xlu0
      %v1197 = vpop.trf.xlu0
      %v1198 = vpop.trf.xlu0
      %v1199 = vpop.trf.xlu0
      %v1200 = vpop.trf.xlu0
      %v1201 = vpop.trf.xlu0
      %1202 = vxpose.xlu0.c.b16.start [1/8] %v1100, 128
      %1203 = vxpose.xlu0.c.b16.cont [2/8] 0, 128
      %1204 = vxpose.xlu0.c.b16.cont [3/8] 0, 128
      %1205 = vxpose.xlu0.c.b16.cont [4/8] 0, 128
      %1206 = vxpose.xlu0.c.b16.cont [5/8] 0, 128
      %1207 = vxpose.xlu0.c.b16.cont [6/8] 0, 128
      %1208 = vxpose.xlu0.c.b16.cont [7/8] 0, 128
      %1209 = vxpose.xlu0.c.b16.end [8/8] 0, 128
      %v1210 = vpop.trf.xlu0
      %v1211 = vpop.trf.xlu0
      %v1212 = vpop.trf.xlu0
      %v1213 = vpop.trf.xlu0
      %v1214 = vpop.trf.xlu0
      %v1215 = vpop.trf.xlu0
      %v1216 = vpop.trf.xlu0
      %v1217 = vpop.trf.xlu0
      %1218 = vxpose.xlu0.c.b16.start [1/8] %v1104, 128
      %1219 = vxpose.xlu0.c.b16.cont [2/8] 0, 128
      %1220 = vxpose.xlu0.c.b16.cont [3/8] 0, 128
      %1221 = vxpose.xlu0.c.b16.cont [4/8] 0, 128
      %1222 = vxpose.xlu0.c.b16.cont [5/8] 0, 128
      %1223 = vxpose.xlu0.c.b16.cont [6/8] 0, 128
      %1224 = vxpose.xlu0.c.b16.cont [7/8] 0, 128
      %1225 = vxpose.xlu0.c.b16.end [8/8] 0, 128
      %v1226 = vpop.trf.xlu0
      %v1227 = vpop.trf.xlu0
      %v1228 = vpop.trf.xlu0
      %v1229 = vpop.trf.xlu0
      %v1230 = vpop.trf.xlu0
      %v1231 = vpop.trf.xlu0
      %v1232 = vpop.trf.xlu0
      %v1233 = vpop.trf.xlu0
      %v1234 = vcombine.low %v1114, %v1178
      %v1236 = vunpack.c.l.s4 1983009808
      %v1237 = vunpack.c.0.s8 %v1236
      %v1238 = vlaneseq
      %v1239 = vshrl.u32 %v1238, 7
      %v1240 = vsub.s32 %v1237, %v1239
      %v1241 = vrot.slane %v1234, %v1240
      %v1242 = vcombine.low %v1146, %v1210
      %v1244 = vunpack.c.l.s4 1983009808
      %v1245 = vunpack.c.0.s8 %v1244
      %v1246 = vlaneseq
      %v1247 = vshrl.u32 %v1246, 7
      %v1248 = vsub.s32 %v1245, %v1247
      %v1249 = vrot.slane %v1242, %v1248
      %v1250 = vcombine.low %v1241, %v1249
      %v1252 = vunpack.c.l.s4 1934713408
      %v1253 = vunpack.c.0.s8 %v1252
      %v1254 = vlaneseq
      %v1255 = vshrl.u32 %v1254, 7
      %v1256 = vsub.s32 %v1253, %v1255
      %v1257 = vrot.slane %v1250, %v1256
      %v1258 = vcombine.high %v1257, 0
      %v1259 = vcombine.low %v1130, %v1194
      %v1261 = vunpack.c.l.s4 1983009808
      %v1262 = vunpack.c.0.s8 %v1261
      %v1263 = vlaneseq
      %v1264 = vshrl.u32 %v1263, 7
      %v1265 = vsub.s32 %v1262, %v1264
      %v1266 = vrot.slane %v1259, %v1265
      %v1267 = vcombine.low %v1162, %v1226
      %v1269 = vunpack.c.l.s4 1983009808
      %v1270 = vunpack.c.0.s8 %v1269
      %v1271 = vlaneseq
      %v1272 = vshrl.u32 %v1271, 7
      %v1273 = vsub.s32 %v1270, %v1272
      %v1274 = vrot.slane %v1267, %v1273
      %v1275 = vcombine.low %v1266, %v1274
      %v1277 = vunpack.c.l.s4 1934713408
      %v1278 = vunpack.c.0.s8 %v1277
      %v1279 = vlaneseq
      %v1280 = vshrl.u32 %v1279, 7
      %v1281 = vsub.s32 %v1278, %v1280
      %v1282 = vrot.slane %v1275, %v1281
      %v1283 = vcombine.high %v1282, 0
      %v1286 = vpack.i.b16 %v1282, %v1257
      %v1287 = vshrl.u32 %v1257, 16
      %v1288 = vshrl.u32 %v1282, 16
      %v1289 = vpack.i.b16 %v1288, %v1287
      %v1292 = vpack.i.b16 %v1283, %v1258
      %v1293 = vshrl.u32 %v1258, 16
      %v1294 = vshrl.u32 %v1283, 16
      %v1295 = vpack.i.b16 %v1294, %v1293
      %vm1296 = vcmask 64512
      %v1298 = vsel %vm1296, %v868, 0
      %vm1300 = vcmask 1043456
      %v1302 = vsel %vm1300, %v1286, 0
      %1304 = vmatprep.subr.bf16.mxu0 0
      %1305 = vmatpush1.bf16.msra.mxu0 %v1302
      %1306 = vmatprep.subr.bf16.mxu0 0
      %1307 = vmatpush1.bf16.msra.mxu0 0
      %1308 = vmatprep.subr.bf16.mxu0 0
      %1309 = vmatpush1.bf16.msra.mxu0 0
      %1310 = vmatprep.subr.bf16.mxu0 0
      %1311 = vmatpush1.bf16.msra.mxu0 0
      %1312 = vmatprep.subr.bf16.mxu0 0
      %1313 = vmatpush1.bf16.msra.mxu0 0
      %1314 = vmatprep.subr.bf16.mxu0 0
      %1315 = vmatpush1.bf16.msra.mxu0 0
      %1316 = vmatprep.subr.bf16.mxu0 0
      %1317 = vmatpush1.bf16.msra.mxu0 0
      %1318 = vmatprep.subr.bf16.mxu0 0
      %1319 = vmatpush1.bf16.msra.mxu0 0
      %1320 = vmatprep.subr.bf16.mxu0 0
      %1321 = vmatpush1.bf16.msra.mxu0 0
      %1322 = vmatprep.subr.bf16.mxu0 0
      %1323 = vmatpush1.bf16.msra.mxu0 0
      %1324 = vmatprep.subr.bf16.mxu0 0
      %1325 = vmatpush1.bf16.msra.mxu0 0
      %1326 = vmatprep.subr.bf16.mxu0 0
      %1327 = vmatpush1.bf16.msra.mxu0 0
      %1328 = vmatprep.subr.bf16.mxu0 0
      %1329 = vmatpush1.bf16.msra.mxu0 0
      %1330 = vmatprep.subr.bf16.mxu0 0
      %1331 = vmatpush1.bf16.msra.mxu0 0
      %1332 = vmatprep.subr.bf16.mxu0 0
      %1333 = vmatpush1.bf16.msra.mxu0 0
      %1334 = vmatprep.subr.bf16.mxu0 0
      %1335 = vmatpush1.bf16.msra.mxu0 0
      %1336 = vmatprep.mubr.bf16.mxu0 0
      %1337 = vmatmul.mubr.bf16.gmra.mrb[0].mxu0 %v1298
      %v1338 = vpop.f32.mrb[0].mxu0
      %v1339 = vadd.f32 %v814, %v1338
      %v1340 = vpop.f32.mrb[0].mxu0
      %v1341 = vpop.f32.mrb[0].mxu0
      %v1342 = vpop.f32.mrb[0].mxu0
      %1343 = vdwg.mxu0
      %v1345 = vsel %vm1296, %v871, 0
      %v1348 = vsel %vm1300, %v1289, 0
      %1350 = vmatprep.subr.bf16.mxu0 0
      %1351 = vmatpush1.bf16.msra.mxu0 %v1348
      %1352 = vmatprep.subr.bf16.mxu0 0
      %1353 = vmatpush1.bf16.msra.mxu0 0
      %1354 = vmatprep.subr.bf16.mxu0 0
      %1355 = vmatpush1.bf16.msra.mxu0 0
      %1356 = vmatprep.subr.bf16.mxu0 0
      %1357 = vmatpush1.bf16.msra.mxu0 0
      %1358 = vmatprep.subr.bf16.mxu0 0
      %1359 = vmatpush1.bf16.msra.mxu0 0
      %1360 = vmatprep.subr.bf16.mxu0 0
      %1361 = vmatpush1.bf16.msra.mxu0 0
      %1362 = vmatprep.subr.bf16.mxu0 0
      %1363 = vmatpush1.bf16.msra.mxu0 0
      %1364 = vmatprep.subr.bf16.mxu0 0
      %1365 = vmatpush1.bf16.msra.mxu0 0
      %1366 = vmatprep.subr.bf16.mxu0 0
      %1367 = vmatpush1.bf16.msra.mxu0 0
      %1368 = vmatprep.subr.bf16.mxu0 0
      %1369 = vmatpush1.bf16.msra.mxu0 0
      %1370 = vmatprep.subr.bf16.mxu0 0
      %1371 = vmatpush1.bf16.msra.mxu0 0
      %1372 = vmatprep.subr.bf16.mxu0 0
      %1373 = vmatpush1.bf16.msra.mxu0 0
      %1374 = vmatprep.subr.bf16.mxu0 0
      %1375 = vmatpush1.bf16.msra.mxu0 0
      %1376 = vmatprep.subr.bf16.mxu0 0
      %1377 = vmatpush1.bf16.msra.mxu0 0
      %1378 = vmatprep.subr.bf16.mxu0 0
      %1379 = vmatpush1.bf16.msra.mxu0 0
      %1380 = vmatprep.subr.bf16.mxu0 0
      %1381 = vmatpush1.bf16.msra.mxu0 0
      %1382 = vmatprep.mubr.bf16.mxu0 0
      %1383 = vmatmul.mubr.bf16.gmra.mrb[0].mxu0 %v1345
      %v1384 = vpop.f32.mrb[0].mxu0
      %v1385 = vadd.f32 %v814, %v1384
      %v1386 = vpop.f32.mrb[0].mxu0
      %v1387 = vpop.f32.mrb[0].mxu0
      %v1388 = vpop.f32.mrb[0].mxu0
      %1389 = vdwg.mxu0
      %v1391 = vsel %vm1296, %v874, 0
      %v1394 = vsel %vm1300, %v1292, 0
      %1396 = vmatprep.subr.bf16.mxu0 0
      %1397 = vmatpush1.bf16.msra.mxu0 %v1394
      %1398 = vmatprep.subr.bf16.mxu0 0
      %1399 = vmatpush1.bf16.msra.mxu0 0
      %1400 = vmatprep.subr.bf16.mxu0 0
      %1401 = vmatpush1.bf16.msra.mxu0 0
      %1402 = vmatprep.subr.bf16.mxu0 0
      %1403 = vmatpush1.bf16.msra.mxu0 0
      %1404 = vmatprep.subr.bf16.mxu0 0
      %1405 = vmatpush1.bf16.msra.mxu0 0
      %1406 = vmatprep.subr.bf16.mxu0 0
      %1407 = vmatpush1.bf16.msra.mxu0 0
      %1408 = vmatprep.subr.bf16.mxu0 0
      %1409 = vmatpush1.bf16.msra.mxu0 0
      %1410 = vmatprep.subr.bf16.mxu0 0
      %1411 = vmatpush1.bf16.msra.mxu0 0
      %1412 = vmatprep.subr.bf16.mxu0 0
      %1413 = vmatpush1.bf16.msra.mxu0 0
      %1414 = vmatprep.subr.bf16.mxu0 0
      %1415 = vmatpush1.bf16.msra.mxu0 0
      %1416 = vmatprep.subr.bf16.mxu0 0
      %1417 = vmatpush1.bf16.msra.mxu0 0
      %1418 = vmatprep.subr.bf16.mxu0 0
      %1419 = vmatpush1.bf16.msra.mxu0 0
      %1420 = vmatprep.subr.bf16.mxu0 0
      %1421 = vmatpush1.bf16.msra.mxu0 0
      %1422 = vmatprep.subr.bf16.mxu0 0
      %1423 = vmatpush1.bf16.msra.mxu0 0
      %1424 = vmatprep.subr.bf16.mxu0 0
      %1425 = vmatpush1.bf16.msra.mxu0 0
      %1426 = vmatprep.subr.bf16.mxu0 0
      %1427 = vmatpush1.bf16.msra.mxu0 0
      %1428 = vmatprep.mubr.bf16.mxu0 0
      %1429 = vmatmul.mubr.bf16.gmra.mrb[0].mxu0 %v1391
      %v1430 = vpop.f32.mrb[0].mxu0
      %v1431 = vadd.f32 %v814, %v1430
      %v1432 = vpop.f32.mrb[0].mxu0
      %v1433 = vpop.f32.mrb[0].mxu0
      %v1434 = vpop.f32.mrb[0].mxu0
      %1435 = vdwg.mxu0
      %v1437 = vsel %vm1296, %v877, 0
      %v1440 = vsel %vm1300, %v1295, 0
      %1442 = vmatprep.subr.bf16.mxu0 0
      %1443 = vmatpush1.bf16.msra.mxu0 %v1440
      %1444 = vmatprep.subr.bf16.mxu0 0
      %1445 = vmatpush1.bf16.msra.mxu0 0
      %1446 = vmatprep.subr.bf16.mxu0 0
      %1447 = vmatpush1.bf16.msra.mxu0 0
      %1448 = vmatprep.subr.bf16.mxu0 0
      %1449 = vmatpush1.bf16.msra.mxu0 0
      %1450 = vmatprep.subr.bf16.mxu0 0
      %1451 = vmatpush1.bf16.msra.mxu0 0
      %1452 = vmatprep.subr.bf16.mxu0 0
      %1453 = vmatpush1.bf16.msra.mxu0 0
      %1454 = vmatprep.subr.bf16.mxu0 0
      %1455 = vmatpush1.bf16.msra.mxu0 0
      %1456 = vmatprep.subr.bf16.mxu0 0
      %1457 = vmatpush1.bf16.msra.mxu0 0
      %1458 = vmatprep.subr.bf16.mxu0 0
      %1459 = vmatpush1.bf16.msra.mxu0 0
      %1460 = vmatprep.subr.bf16.mxu0 0
      %1461 = vmatpush1.bf16.msra.mxu0 0
      %1462 = vmatprep.subr.bf16.mxu0 0
      %1463 = vmatpush1.bf16.msra.mxu0 0
      %1464 = vmatprep.subr.bf16.mxu0 0
      %1465 = vmatpush1.bf16.msra.mxu0 0
      %1466 = vmatprep.subr.bf16.mxu0 0
      %1467 = vmatpush1.bf16.msra.mxu0 0
      %1468 = vmatprep.subr.bf16.mxu0 0
      %1469 = vmatpush1.bf16.msra.mxu0 0
      %1470 = vmatprep.subr.bf16.mxu0 0
      %1471 = vmatpush1.bf16.msra.mxu0 0
      %1472 = vmatprep.subr.bf16.mxu0 0
      %1473 = vmatpush1.bf16.msra.mxu0 0
      %1474 = vmatprep.mubr.bf16.mxu0 0
      %1475 = vmatmul.mubr.bf16.gmra.mrb[0].mxu0 %v1437
      %v1476 = vpop.f32.mrb[0].mxu0
      %v1477 = vadd.f32 %v814, %v1476
      %v1478 = vpop.f32.mrb[0].mxu0
      %v1479 = vpop.f32.mrb[0].mxu0
      %v1480 = vpop.f32.mrb[0].mxu0
      %1481 = vdwg.mxu0
      %v1482 = vsel %vm1296, %v1339, -inf
      %1483 = vmax.xlane.f32.xlu0 %v1482
      %v1484 = vpop.xlane.xlu0 %1483
      %v1485 = vsel %vm1296, %v1385, -inf
      %1486 = vmax.xlane.f32.xlu0 %v1485
      %v1487 = vpop.xlane.xlu0 %1486
      %v1488 = vsel %vm1296, %v1431, -inf
      %1489 = vmax.xlane.f32.xlu0 %v1488
      %v1490 = vpop.xlane.xlu0 %1489
      %v1491 = vsel %vm1296, %v1477, -inf
      %1492 = vmax.xlane.f32.xlu0 %v1491
      %v1493 = vpop.xlane.xlu0 %1492
      %v1494 = vsub.f32 %v1339, %v1484
      %v1495 = vsub.f32 %v1385, %v1487
      %v1496 = vsub.f32 %v1431, %v1490
      %v1497 = vsub.f32 %v1477, %v1493
      %v1498 = vmul.f32 %v1494, 1.442695
      %v1499 = vpow.pop %v1498
      %v1500 = vmul.f32 %v1495, 1.442695
      %v1501 = vpow.pop %v1500
      %v1502 = vmul.f32 %v1496, 1.442695
      %v1503 = vpow.pop %v1502
      %v1504 = vmul.f32 %v1497, 1.442695
      %v1505 = vpow.pop %v1504
      %v1506 = vsel %vm1296, %v1499, 0.0
      %1507 = vadd.xlane.f32.xlu0 %v1506
      %v1508 = vpop.xlane.xlu0 %1507
      %v1509 = vsel %vm1296, %v1501, 0.0
      %1510 = vadd.xlane.f32.xlu0 %v1509
      %v1511 = vpop.xlane.xlu0 %1510
      %v1512 = vsel %vm1296, %v1503, 0.0
      %1513 = vadd.xlane.f32.xlu0 %v1512
      %v1514 = vpop.xlane.xlu0 %1513
      %v1515 = vsel %vm1296, %v1505, 0.0
      %1516 = vadd.xlane.f32.xlu0 %v1515
      %v1517 = vpop.xlane.xlu0 %1516
      %v1518 = vrcp.pop %v1508
      %v1519 = vrcp.pop %v1511
      %v1520 = vrcp.pop %v1514
      %v1521 = vrcp.pop %v1517
      %v1522 = vmul.f32 %v1499, %v1518
      %v1523 = vmul.f32 %v1501, %v1519
      %v1524 = vmul.f32 %v1503, %v1520
      %v1525 = vmul.f32 %v1505, %v1521
      %v1526 = vpack.c.bf16 %v1522, %v1522
      %v1527 = vpack.c.bf16 %v1523, %v1523
      %v1528 = vpack.c.bf16 %v1524, %v1524
      %v1529 = vpack.c.bf16 %v1525, %v1525
      %v1530 = vpack.c.bf16 %v765, %v765
      %v1531 = vpack.c.bf16 %v789, %v789
      %v1532 = vpack.c.bf16 %v772, %v772
      %v1533 = vpack.c.bf16 %v790, %v790
      %v1534 = vpack.c.bf16 %v781, %v781
      %v1535 = vpack.c.bf16 %v791, %v791
      %v1536 = vpack.c.bf16 %v788, %v788
      %v1537 = vpack.c.bf16 %v792, %v792
      %1538 = vxpose.xlu0.c.b16.start [1/8] %v1530, 128
      %1539 = vxpose.xlu0.c.b16.cont [2/8] 0, 128
      %1540 = vxpose.xlu0.c.b16.cont [3/8] 0, 128
      %1541 = vxpose.xlu0.c.b16.cont [4/8] 0, 128
      %1542 = vxpose.xlu0.c.b16.cont [5/8] 0, 128
      %1543 = vxpose.xlu0.c.b16.cont [6/8] 0, 128
      %1544 = vxpose.xlu0.c.b16.cont [7/8] 0, 128
      %1545 = vxpose.xlu0.c.b16.end [8/8] 0, 128
      %v1546 = vpop.trf.xlu0
      %v1547 = vpop.trf.xlu0
      %v1548 = vpop.trf.xlu0
      %v1549 = vpop.trf.xlu0
      %v1550 = vpop.trf.xlu0
      %v1551 = vpop.trf.xlu0
      %v1552 = vpop.trf.xlu0
      %v1553 = vpop.trf.xlu0
      %1554 = vxpose.xlu0.c.b16.start [1/8] %v1531, 128
      %1555 = vxpose.xlu0.c.b16.cont [2/8] 0, 128
      %1556 = vxpose.xlu0.c.b16.cont [3/8] 0, 128
      %1557 = vxpose.xlu0.c.b16.cont [4/8] 0, 128
      %1558 = vxpose.xlu0.c.b16.cont [5/8] 0, 128
      %1559 = vxpose.xlu0.c.b16.cont [6/8] 0, 128
      %1560 = vxpose.xlu0.c.b16.cont [7/8] 0, 128
      %1561 = vxpose.xlu0.c.b16.end [8/8] 0, 128
      %v1562 = vpop.trf.xlu0
      %v1563 = vpop.trf.xlu0
      %v1564 = vpop.trf.xlu0
      %v1565 = vpop.trf.xlu0
      %v1566 = vpop.trf.xlu0
      %v1567 = vpop.trf.xlu0
      %v1568 = vpop.trf.xlu0
      %v1569 = vpop.trf.xlu0
      %1570 = vxpose.xlu0.c.b16.start [1/8] %v1532, 128
      %1571 = vxpose.xlu0.c.b16.cont [2/8] 0, 128
      %1572 = vxpose.xlu0.c.b16.cont [3/8] 0, 128
      %1573 = vxpose.xlu0.c.b16.cont [4/8] 0, 128
      %1574 = vxpose.xlu0.c.b16.cont [5/8] 0, 128
      %1575 = vxpose.xlu0.c.b16.cont [6/8] 0, 128
      %1576 = vxpose.xlu0.c.b16.cont [7/8] 0, 128
      %1577 = vxpose.xlu0.c.b16.end [8/8] 0, 128
      %v1578 = vpop.trf.xlu0
      %v1579 = vpop.trf.xlu0
      %v1580 = vpop.trf.xlu0
      %v1581 = vpop.trf.xlu0
      %v1582 = vpop.trf.xlu0
      %v1583 = vpop.trf.xlu0
      %v1584 = vpop.trf.xlu0
      %v1585 = vpop.trf.xlu0
      %1586 = vxpose.xlu0.c.b16.start [1/8] %v1533, 128
      %1587 = vxpose.xlu0.c.b16.cont [2/8] 0, 128
      %1588 = vxpose.xlu0.c.b16.cont [3/8] 0, 128
      %1589 = vxpose.xlu0.c.b16.cont [4/8] 0, 128
      %1590 = vxpose.xlu0.c.b16.cont [5/8] 0, 128
      %1591 = vxpose.xlu0.c.b16.cont [6/8] 0, 128
      %1592 = vxpose.xlu0.c.b16.cont [7/8] 0, 128
      %1593 = vxpose.xlu0.c.b16.end [8/8] 0, 128
      %v1594 = vpop.trf.xlu0
      %v1595 = vpop.trf.xlu0
      %v1596 = vpop.trf.xlu0
      %v1597 = vpop.trf.xlu0
      %v1598 = vpop.trf.xlu0
      %v1599 = vpop.trf.xlu0
      %v1600 = vpop.trf.xlu0
      %v1601 = vpop.trf.xlu0
      %1602 = vxpose.xlu0.c.b16.start [1/8] %v1534, 128
      %1603 = vxpose.xlu0.c.b16.cont [2/8] 0, 128
      %1604 = vxpose.xlu0.c.b16.cont [3/8] 0, 128
      %1605 = vxpose.xlu0.c.b16.cont [4/8] 0, 128
      %1606 = vxpose.xlu0.c.b16.cont [5/8] 0, 128
      %1607 = vxpose.xlu0.c.b16.cont [6/8] 0, 128
      %1608 = vxpose.xlu0.c.b16.cont [7/8] 0, 128
      %1609 = vxpose.xlu0.c.b16.end [8/8] 0, 128
      %v1610 = vpop.trf.xlu0
      %v1611 = vpop.trf.xlu0
      %v1612 = vpop.trf.xlu0
      %v1613 = vpop.trf.xlu0
      %v1614 = vpop.trf.xlu0
      %v1615 = vpop.trf.xlu0
      %v1616 = vpop.trf.xlu0
      %v1617 = vpop.trf.xlu0
      %1618 = vxpose.xlu0.c.b16.start [1/8] %v1535, 128
      %1619 = vxpose.xlu0.c.b16.cont [2/8] 0, 128
      %1620 = vxpose.xlu0.c.b16.cont [3/8] 0, 128
      %1621 = vxpose.xlu0.c.b16.cont [4/8] 0, 128
      %1622 = vxpose.xlu0.c.b16.cont [5/8] 0, 128
      %1623 = vxpose.xlu0.c.b16.cont [6/8] 0, 128
      %1624 = vxpose.xlu0.c.b16.cont [7/8] 0, 128
      %1625 = vxpose.xlu0.c.b16.end [8/8] 0, 128
      %v1626 = vpop.trf.xlu0
      %v1627 = vpop.trf.xlu0
      %v1628 = vpop.trf.xlu0
      %v1629 = vpop.trf.xlu0
      %v1630 = vpop.trf.xlu0
      %v1631 = vpop.trf.xlu0
      %v1632 = vpop.trf.xlu0
      %v1633 = vpop.trf.xlu0
      %1634 = vxpose.xlu0.c.b16.start [1/8] %v1536, 128
      %1635 = vxpose.xlu0.c.b16.cont [2/8] 0, 128
      %1636 = vxpose.xlu0.c.b16.cont [3/8] 0, 128
      %1637 = vxpose.xlu0.c.b16.cont [4/8] 0, 128
      %1638 = vxpose.xlu0.c.b16.cont [5/8] 0, 128
      %1639 = vxpose.xlu0.c.b16.cont [6/8] 0, 128
      %1640 = vxpose.xlu0.c.b16.cont [7/8] 0, 128
      %1641 = vxpose.xlu0.c.b16.end [8/8] 0, 128
      %v1642 = vpop.trf.xlu0
      %v1643 = vpop.trf.xlu0
      %v1644 = vpop.trf.xlu0
      %v1645 = vpop.trf.xlu0
      %v1646 = vpop.trf.xlu0
      %v1647 = vpop.trf.xlu0
      %v1648 = vpop.trf.xlu0
      %v1649 = vpop.trf.xlu0
      %1650 = vxpose.xlu0.c.b16.start [1/8] %v1537, 128
      %1651 = vxpose.xlu0.c.b16.cont [2/8] 0, 128
      %1652 = vxpose.xlu0.c.b16.cont [3/8] 0, 128
      %1653 = vxpose.xlu0.c.b16.cont [4/8] 0, 128
      %1654 = vxpose.xlu0.c.b16.cont [5/8] 0, 128
      %1655 = vxpose.xlu0.c.b16.cont [6/8] 0, 128
      %1656 = vxpose.xlu0.c.b16.cont [7/8] 0, 128
      %1657 = vxpose.xlu0.c.b16.end [8/8] 0, 128
      %v1658 = vpop.trf.xlu0
      %v1659 = vpop.trf.xlu0
      %v1660 = vpop.trf.xlu0
      %v1661 = vpop.trf.xlu0
      %v1662 = vpop.trf.xlu0
      %v1663 = vpop.trf.xlu0
      %v1664 = vpop.trf.xlu0
      %v1665 = vpop.trf.xlu0
      %v1666 = vcombine.low %v1546, %v1610
      %v1668 = vunpack.c.l.s4 1983009808
      %v1669 = vunpack.c.0.s8 %v1668
      %v1670 = vlaneseq
      %v1671 = vshrl.u32 %v1670, 7
      %v1672 = vsub.s32 %v1669, %v1671
      %v1673 = vrot.slane %v1666, %v1672
      %v1674 = vcombine.low %v1578, %v1642
      %v1676 = vunpack.c.l.s4 1983009808
      %v1677 = vunpack.c.0.s8 %v1676
      %v1678 = vlaneseq
      %v1679 = vshrl.u32 %v1678, 7
      %v1680 = vsub.s32 %v1677, %v1679
      %v1681 = vrot.slane %v1674, %v1680
      %v1682 = vcombine.low %v1673, %v1681
      %v1683 = vcombine.high %v1673, %v1681
      %v1685 = vunpack.c.l.s4 1934713408
      %v1686 = vunpack.c.0.s8 %v1685
      %v1687 = vlaneseq
      %v1688 = vshrl.u32 %v1687, 7
      %v1689 = vsub.s32 %v1686, %v1688
      %v1690 = vrot.slane %v1682, %v1689
      %v1692 = vunpack.c.l.s4 1934713408
      %v1693 = vunpack.c.0.s8 %v1692
      %v1694 = vlaneseq
      %v1695 = vshrl.u32 %v1694, 7
      %v1696 = vsub.s32 %v1693, %v1695
      %v1697 = vrot.slane %v1683, %v1696
      %v1698 = vcombine.high %v1690, 0
      %v1699 = vcombine.high %v1697, 0
      %v1700 = vcombine.low %v1562, %v1626
      %v1702 = vunpack.c.l.s4 1983009808
      %v1703 = vunpack.c.0.s8 %v1702
      %v1704 = vlaneseq
      %v1705 = vshrl.u32 %v1704, 7
      %v1706 = vsub.s32 %v1703, %v1705
      %v1707 = vrot.slane %v1700, %v1706
      %v1708 = vcombine.low %v1594, %v1658
      %v1710 = vunpack.c.l.s4 1983009808
      %v1711 = vunpack.c.0.s8 %v1710
      %v1712 = vlaneseq
      %v1713 = vshrl.u32 %v1712, 7
      %v1714 = vsub.s32 %v1711, %v1713
      %v1715 = vrot.slane %v1708, %v1714
      %v1716 = vcombine.low %v1707, %v1715
      %v1717 = vcombine.high %v1707, %v1715
      %v1719 = vunpack.c.l.s4 1934713408
      %v1720 = vunpack.c.0.s8 %v1719
      %v1721 = vlaneseq
      %v1722 = vshrl.u32 %v1721, 7
      %v1723 = vsub.s32 %v1720, %v1722
      %v1724 = vrot.slane %v1716, %v1723
      %v1726 = vunpack.c.l.s4 1934713408
      %v1727 = vunpack.c.0.s8 %v1726
      %v1728 = vlaneseq
      %v1729 = vshrl.u32 %v1728, 7
      %v1730 = vsub.s32 %v1727, %v1729
      %v1731 = vrot.slane %v1717, %v1730
      %v1732 = vcombine.high %v1724, 0
      %v1733 = vcombine.high %v1731, 0
      %v1736 = vpack.i.b16 %v1724, %v1690
      %v1738 = vshrl.u32 %v1690, 16
      %v1739 = vshrl.u32 %v1724, 16
      %v1740 = vpack.i.b16 %v1739, %v1738
      %v1744 = vpack.i.b16 %v1732, %v1698
      %v1746 = vshrl.u32 %v1698, 16
      %v1747 = vshrl.u32 %v1732, 16
      %v1748 = vpack.i.b16 %v1747, %v1746
      %v1752 = vpack.i.b16 %v1731, %v1697
      %v1754 = vshrl.u32 %v1697, 16
      %v1755 = vshrl.u32 %v1731, 16
      %v1756 = vpack.i.b16 %v1755, %v1754
      %v1760 = vpack.i.b16 %v1733, %v1699
      %v1762 = vshrl.u32 %v1699, 16
      %v1763 = vshrl.u32 %v1733, 16
      %v1764 = vpack.i.b16 %v1763, %v1762
      %1766 = vxpose.xlu0.c.b16.start [1/8] %v1736, 128
      %1767 = vxpose.xlu0.c.b16.cont [2/8] 0, 128
      %1768 = vxpose.xlu0.c.b16.cont [3/8] 0, 128
      %1769 = vxpose.xlu0.c.b16.cont [4/8] 0, 128
      %1770 = vxpose.xlu0.c.b16.cont [5/8] 0, 128
      %1771 = vxpose.xlu0.c.b16.cont [6/8] 0, 128
      %1772 = vxpose.xlu0.c.b16.cont [7/8] 0, 128
      %1773 = vxpose.xlu0.c.b16.end [8/8] 0, 128
      %v1774 = vpop.trf.xlu0
      %v1775 = vpop.trf.xlu0
      %v1776 = vpop.trf.xlu0
      %v1777 = vpop.trf.xlu0
      %v1778 = vpop.trf.xlu0
      %v1779 = vpop.trf.xlu0
      %v1780 = vpop.trf.xlu0
      %v1781 = vpop.trf.xlu0
      %1782 = vxpose.xlu0.c.b16.start [1/8] %v1740, 128
      %1783 = vxpose.xlu0.c.b16.cont [2/8] 0, 128
      %1784 = vxpose.xlu0.c.b16.cont [3/8] 0, 128
      %1785 = vxpose.xlu0.c.b16.cont [4/8] 0, 128
      %1786 = vxpose.xlu0.c.b16.cont [5/8] 0, 128
      %1787 = vxpose.xlu0.c.b16.cont [6/8] 0, 128
      %1788 = vxpose.xlu0.c.b16.cont [7/8] 0, 128
      %1789 = vxpose.xlu0.c.b16.end [8/8] 0, 128
      %v1790 = vpop.trf.xlu0
      %v1791 = vpop.trf.xlu0
      %v1792 = vpop.trf.xlu0
      %v1793 = vpop.trf.xlu0
      %v1794 = vpop.trf.xlu0
      %v1795 = vpop.trf.xlu0
      %v1796 = vpop.trf.xlu0
      %v1797 = vpop.trf.xlu0
      %1798 = vxpose.xlu0.c.b16.start [1/8] %v1744, 128
      %1799 = vxpose.xlu0.c.b16.cont [2/8] 0, 128
      %1800 = vxpose.xlu0.c.b16.cont [3/8] 0, 128
      %1801 = vxpose.xlu0.c.b16.cont [4/8] 0, 128
      %1802 = vxpose.xlu0.c.b16.cont [5/8] 0, 128
      %1803 = vxpose.xlu0.c.b16.cont [6/8] 0, 128
      %1804 = vxpose.xlu0.c.b16.cont [7/8] 0, 128
      %1805 = vxpose.xlu0.c.b16.end [8/8] 0, 128
      %v1806 = vpop.trf.xlu0
      %v1807 = vpop.trf.xlu0
      %v1808 = vpop.trf.xlu0
      %v1809 = vpop.trf.xlu0
      %v1810 = vpop.trf.xlu0
      %v1811 = vpop.trf.xlu0
      %v1812 = vpop.trf.xlu0
      %v1813 = vpop.trf.xlu0
      %1814 = vxpose.xlu0.c.b16.start [1/8] %v1748, 128
      %1815 = vxpose.xlu0.c.b16.cont [2/8] 0, 128
      %1816 = vxpose.xlu0.c.b16.cont [3/8] 0, 128
      %1817 = vxpose.xlu0.c.b16.cont [4/8] 0, 128
      %1818 = vxpose.xlu0.c.b16.cont [5/8] 0, 128
      %1819 = vxpose.xlu0.c.b16.cont [6/8] 0, 128
      %1820 = vxpose.xlu0.c.b16.cont [7/8] 0, 128
      %1821 = vxpose.xlu0.c.b16.end [8/8] 0, 128
      %v1822 = vpop.trf.xlu0
      %v1823 = vpop.trf.xlu0
      %v1824 = vpop.trf.xlu0
      %v1825 = vpop.trf.xlu0
      %v1826 = vpop.trf.xlu0
      %v1827 = vpop.trf.xlu0
      %v1828 = vpop.trf.xlu0
      %v1829 = vpop.trf.xlu0
      %1830 = vxpose.xlu0.c.b16.start [1/8] %v1752, 128
      %1831 = vxpose.xlu0.c.b16.cont [2/8] 0, 128
      %1832 = vxpose.xlu0.c.b16.cont [3/8] 0, 128
      %1833 = vxpose.xlu0.c.b16.cont [4/8] 0, 128
      %1834 = vxpose.xlu0.c.b16.cont [5/8] 0, 128
      %1835 = vxpose.xlu0.c.b16.cont [6/8] 0, 128
      %1836 = vxpose.xlu0.c.b16.cont [7/8] 0, 128
      %1837 = vxpose.xlu0.c.b16.end [8/8] 0, 128
      %v1838 = vpop.trf.xlu0
      %v1839 = vpop.trf.xlu0
      %v1840 = vpop.trf.xlu0
      %v1841 = vpop.trf.xlu0
      %v1842 = vpop.trf.xlu0
      %v1843 = vpop.trf.xlu0
      %v1844 = vpop.trf.xlu0
      %v1845 = vpop.trf.xlu0
      %1846 = vxpose.xlu0.c.b16.start [1/8] %v1756, 128
      %1847 = vxpose.xlu0.c.b16.cont [2/8] 0, 128
      %1848 = vxpose.xlu0.c.b16.cont [3/8] 0, 128
      %1849 = vxpose.xlu0.c.b16.cont [4/8] 0, 128
      %1850 = vxpose.xlu0.c.b16.cont [5/8] 0, 128
      %1851 = vxpose.xlu0.c.b16.cont [6/8] 0, 128
      %1852 = vxpose.xlu0.c.b16.cont [7/8] 0, 128
      %1853 = vxpose.xlu0.c.b16.end [8/8] 0, 128
      %v1854 = vpop.trf.xlu0
      %v1855 = vpop.trf.xlu0
      %v1856 = vpop.trf.xlu0
      %v1857 = vpop.trf.xlu0
      %v1858 = vpop.trf.xlu0
      %v1859 = vpop.trf.xlu0
      %v1860 = vpop.trf.xlu0
      %v1861 = vpop.trf.xlu0
      %1862 = vxpose.xlu0.c.b16.start [1/8] %v1760, 128
      %1863 = vxpose.xlu0.c.b16.cont [2/8] 0, 128
      %1864 = vxpose.xlu0.c.b16.cont [3/8] 0, 128
      %1865 = vxpose.xlu0.c.b16.cont [4/8] 0, 128
      %1866 = vxpose.xlu0.c.b16.cont [5/8] 0, 128
      %1867 = vxpose.xlu0.c.b16.cont [6/8] 0, 128
      %1868 = vxpose.xlu0.c.b16.cont [7/8] 0, 128
      %1869 = vxpose.xlu0.c.b16.end [8/8] 0, 128
      %v1870 = vpop.trf.xlu0
      %v1871 = vpop.trf.xlu0
      %v1872 = vpop.trf.xlu0
      %v1873 = vpop.trf.xlu0
      %v1874 = vpop.trf.xlu0
      %v1875 = vpop.trf.xlu0
      %v1876 = vpop.trf.xlu0
      %v1877 = vpop.trf.xlu0
      %1878 = vxpose.xlu0.c.b16.start [1/8] %v1764, 128
      %1879 = vxpose.xlu0.c.b16.cont [2/8] 0, 128
      %1880 = vxpose.xlu0.c.b16.cont [3/8] 0, 128
      %1881 = vxpose.xlu0.c.b16.cont [4/8] 0, 128
      %1882 = vxpose.xlu0.c.b16.cont [5/8] 0, 128
      %1883 = vxpose.xlu0.c.b16.cont [6/8] 0, 128
      %1884 = vxpose.xlu0.c.b16.cont [7/8] 0, 128
      %1885 = vxpose.xlu0.c.b16.end [8/8] 0, 128
      %v1886 = vpop.trf.xlu0
      %v1887 = vpop.trf.xlu0
      %v1888 = vpop.trf.xlu0
      %v1889 = vpop.trf.xlu0
      %v1890 = vpop.trf.xlu0
      %v1891 = vpop.trf.xlu0
      %v1892 = vpop.trf.xlu0
      %v1893 = vpop.trf.xlu0
      %v1894 = vcombine.low %v1774, %v1838
      %v1896 = vunpack.c.l.s4 1983009808
      %v1897 = vunpack.c.0.s8 %v1896
      %v1898 = vlaneseq
      %v1899 = vshrl.u32 %v1898, 7
      %v1900 = vsub.s32 %v1897, %v1899
      %v1901 = vrot.slane %v1894, %v1900
      %v1902 = vcombine.low %v1806, %v1870
      %v1904 = vunpack.c.l.s4 1983009808
      %v1905 = vunpack.c.0.s8 %v1904
      %v1906 = vlaneseq
      %v1907 = vshrl.u32 %v1906, 7
      %v1908 = vsub.s32 %v1905, %v1907
      %v1909 = vrot.slane %v1902, %v1908
      %v1910 = vcombine.low %v1901, %v1909
      %v1912 = vunpack.c.l.s4 1934713408
      %v1913 = vunpack.c.0.s8 %v1912
      %v1914 = vlaneseq
      %v1915 = vshrl.u32 %v1914, 7
      %v1916 = vsub.s32 %v1913, %v1915
      %v1917 = vrot.slane %v1910, %v1916
      %v1918 = vcombine.high %v1917, 0
      %v1919 = vcombine.low %v1790, %v1854
      %v1921 = vunpack.c.l.s4 1983009808
      %v1922 = vunpack.c.0.s8 %v1921
      %v1923 = vlaneseq
      %v1924 = vshrl.u32 %v1923, 7
      %v1925 = vsub.s32 %v1922, %v1924
      %v1926 = vrot.slane %v1919, %v1925
      %v1927 = vcombine.low %v1822, %v1886
      %v1929 = vunpack.c.l.s4 1983009808
      %v1930 = vunpack.c.0.s8 %v1929
      %v1931 = vlaneseq
      %v1932 = vshrl.u32 %v1931, 7
      %v1933 = vsub.s32 %v1930, %v1932
      %v1934 = vrot.slane %v1927, %v1933
      %v1935 = vcombine.low %v1926, %v1934
      %v1937 = vunpack.c.l.s4 1934713408
      %v1938 = vunpack.c.0.s8 %v1937
      %v1939 = vlaneseq
      %v1940 = vshrl.u32 %v1939, 7
      %v1941 = vsub.s32 %v1938, %v1940
      %v1942 = vrot.slane %v1935, %v1941
      %v1943 = vcombine.high %v1942, 0
      %v1946 = vpack.i.b16 %v1942, %v1917
      %v1947 = vshrl.u32 %v1917, 16
      %v1948 = vshrl.u32 %v1942, 16
      %v1949 = vpack.i.b16 %v1948, %v1947
      %v1952 = vpack.i.b16 %v1943, %v1918
      %v1953 = vshrl.u32 %v1918, 16
      %v1954 = vshrl.u32 %v1943, 16
      %v1955 = vpack.i.b16 %v1954, %v1953
      %v1957 = vsel %vm1296, %v1946, 0
      %v1960 = vsel %vm1296, %v1526, 0
      %1962 = vmatprep.subr.bf16.mxu0 0
      %1963 = vmatpush1.bf16.xpose.msra.mxu0 %v1960
      %1964 = vmatprep.subr.bf16.mxu0 0
      %1965 = vmatpush1.bf16.xpose.msra.mxu0 0
      %1966 = vmatprep.subr.bf16.mxu0 0
      %1967 = vmatpush1.bf16.xpose.msra.mxu0 0
      %1968 = vmatprep.subr.bf16.mxu0 0
      %1969 = vmatpush1.bf16.xpose.msra.mxu0 0
      %1970 = vmatprep.subr.bf16.mxu0 0
      %1971 = vmatpush1.bf16.xpose.msra.mxu0 0
      %1972 = vmatprep.subr.bf16.mxu0 0
      %1973 = vmatpush1.bf16.xpose.msra.mxu0 0
      %1974 = vmatprep.subr.bf16.mxu0 0
      %1975 = vmatpush1.bf16.xpose.msra.mxu0 0
      %1976 = vmatprep.subr.bf16.mxu0 0
      %1977 = vmatpush1.bf16.xpose.msra.mxu0 0
      %1978 = vmatprep.subr.bf16.mxu0 0
      %1979 = vmatpush1.bf16.xpose.msra.mxu0 0
      %1980 = vmatprep.subr.bf16.mxu0 0
      %1981 = vmatpush1.bf16.xpose.msra.mxu0 0
      %1982 = vmatprep.subr.bf16.mxu0 0
      %1983 = vmatpush1.bf16.xpose.msra.mxu0 0
      %1984 = vmatprep.subr.bf16.mxu0 0
      %1985 = vmatpush1.bf16.xpose.msra.mxu0 0
      %1986 = vmatprep.subr.bf16.mxu0 0
      %1987 = vmatpush1.bf16.xpose.msra.mxu0 0
      %1988 = vmatprep.subr.bf16.mxu0 0
      %1989 = vmatpush1.bf16.xpose.msra.mxu0 0
      %1990 = vmatprep.subr.bf16.mxu0 0
      %1991 = vmatpush1.bf16.xpose.msra.mxu0 0
      %1992 = vmatprep.subr.bf16.mxu0 0
      %1993 = vmatpush1.bf16.xpose.msra.mxu0 0
      %1994 = vmatprep.mubr.bf16.mxu0 0
      %1995 = vmatmul.mubr.bf16.gmra.mrb[0].mxu0 %v1957
      %v1996 = vpop.f32.mrb[0].mxu0
      %v1997 = vadd.f32 0.0, %v1996
      %v1998 = vpop.f32.mrb[0].mxu0
      %v1999 = vpop.f32.mrb[0].mxu0
      %v2000 = vpop.f32.mrb[0].mxu0
      %2001 = vdwg.mxu0
      %v2003 = vsel %vm1296, %v1949, 0
      %v2006 = vsel %vm1296, %v1527, 0
      %2008 = vmatprep.subr.bf16.mxu0 0
      %2009 = vmatpush1.bf16.xpose.msra.mxu0 %v2006
      %2010 = vmatprep.subr.bf16.mxu0 0
      %2011 = vmatpush1.bf16.xpose.msra.mxu0 0
      %2012 = vmatprep.subr.bf16.mxu0 0
      %2013 = vmatpush1.bf16.xpose.msra.mxu0 0
      %2014 = vmatprep.subr.bf16.mxu0 0
      %2015 = vmatpush1.bf16.xpose.msra.mxu0 0
      %2016 = vmatprep.subr.bf16.mxu0 0
      %2017 = vmatpush1.bf16.xpose.msra.mxu0 0
      %2018 = vmatprep.subr.bf16.mxu0 0
      %2019 = vmatpush1.bf16.xpose.msra.mxu0 0
      %2020 = vmatprep.subr.bf16.mxu0 0
      %2021 = vmatpush1.bf16.xpose.msra.mxu0 0
      %2022 = vmatprep.subr.bf16.mxu0 0
      %2023 = vmatpush1.bf16.xpose.msra.mxu0 0
      %2024 = vmatprep.subr.bf16.mxu0 0
      %2025 = vmatpush1.bf16.xpose.msra.mxu0 0
      %2026 = vmatprep.subr.bf16.mxu0 0
      %2027 = vmatpush1.bf16.xpose.msra.mxu0 0
      %2028 = vmatprep.subr.bf16.mxu0 0
      %2029 = vmatpush1.bf16.xpose.msra.mxu0 0
      %2030 = vmatprep.subr.bf16.mxu0 0
      %2031 = vmatpush1.bf16.xpose.msra.mxu0 0
      %2032 = vmatprep.subr.bf16.mxu0 0
      %2033 = vmatpush1.bf16.xpose.msra.mxu0 0
      %2034 = vmatprep.subr.bf16.mxu0 0
      %2035 = vmatpush1.bf16.xpose.msra.mxu0 0
      %2036 = vmatprep.subr.bf16.mxu0 0
      %2037 = vmatpush1.bf16.xpose.msra.mxu0 0
      %2038 = vmatprep.subr.bf16.mxu0 0
      %2039 = vmatpush1.bf16.xpose.msra.mxu0 0
      %2040 = vmatprep.mubr.bf16.mxu0 0
      %2041 = vmatmul.mubr.bf16.gmra.mrb[0].mxu0 %v2003
      %v2042 = vpop.f32.mrb[0].mxu0
      %v2043 = vadd.f32 0.0, %v2042
      %v2044 = vpop.f32.mrb[0].mxu0
      %v2045 = vpop.f32.mrb[0].mxu0
      %v2046 = vpop.f32.mrb[0].mxu0
      %2047 = vdwg.mxu0
      %v2049 = vsel %vm1296, %v1952, 0
      %v2052 = vsel %vm1296, %v1528, 0
      %2054 = vmatprep.subr.bf16.mxu0 0
      %2055 = vmatpush1.bf16.xpose.msra.mxu0 %v2052
      %2056 = vmatprep.subr.bf16.mxu0 0
      %2057 = vmatpush1.bf16.xpose.msra.mxu0 0
      %2058 = vmatprep.subr.bf16.mxu0 0
      %2059 = vmatpush1.bf16.xpose.msra.mxu0 0
      %2060 = vmatprep.subr.bf16.mxu0 0
      %2061 = vmatpush1.bf16.xpose.msra.mxu0 0
      %2062 = vmatprep.subr.bf16.mxu0 0
      %2063 = vmatpush1.bf16.xpose.msra.mxu0 0
      %2064 = vmatprep.subr.bf16.mxu0 0
      %2065 = vmatpush1.bf16.xpose.msra.mxu0 0
      %2066 = vmatprep.subr.bf16.mxu0 0
      %2067 = vmatpush1.bf16.xpose.msra.mxu0 0
      %2068 = vmatprep.subr.bf16.mxu0 0
      %2069 = vmatpush1.bf16.xpose.msra.mxu0 0
      %2070 = vmatprep.subr.bf16.mxu0 0
      %2071 = vmatpush1.bf16.xpose.msra.mxu0 0
      %2072 = vmatprep.subr.bf16.mxu0 0
      %2073 = vmatpush1.bf16.xpose.msra.mxu0 0
      %2074 = vmatprep.subr.bf16.mxu0 0
      %2075 = vmatpush1.bf16.xpose.msra.mxu0 0
      %2076 = vmatprep.subr.bf16.mxu0 0
      %2077 = vmatpush1.bf16.xpose.msra.mxu0 0
      %2078 = vmatprep.subr.bf16.mxu0 0
      %2079 = vmatpush1.bf16.xpose.msra.mxu0 0
      %2080 = vmatprep.subr.bf16.mxu0 0
      %2081 = vmatpush1.bf16.xpose.msra.mxu0 0
      %2082 = vmatprep.subr.bf16.mxu0 0
      %2083 = vmatpush1.bf16.xpose.msra.mxu0 0
      %2084 = vmatprep.subr.bf16.mxu0 0
      %2085 = vmatpush1.bf16.xpose.msra.mxu0 0
      %2086 = vmatprep.mubr.bf16.mxu0 0
      %2087 = vmatmul.mubr.bf16.gmra.mrb[0].mxu0 %v2049
      %v2088 = vpop.f32.mrb[0].mxu0
      %v2089 = vadd.f32 0.0, %v2088
      %v2090 = vpop.f32.mrb[0].mxu0
      %v2091 = vpop.f32.mrb[0].mxu0
      %v2092 = vpop.f32.mrb[0].mxu0
      %2093 = vdwg.mxu0
      %v2095 = vsel %vm1296, %v1955, 0
      %v2098 = vsel %vm1296, %v1529, 0
      %2100 = vmatprep.subr.bf16.mxu0 0
      %2101 = vmatpush1.bf16.xpose.msra.mxu0 %v2098
      %2102 = vmatprep.subr.bf16.mxu0 0
      %2103 = vmatpush1.bf16.xpose.msra.mxu0 0
      %2104 = vmatprep.subr.bf16.mxu0 0
      %2105 = vmatpush1.bf16.xpose.msra.mxu0 0
      %2106 = vmatprep.subr.bf16.mxu0 0
      %2107 = vmatpush1.bf16.xpose.msra.mxu0 0
      %2108 = vmatprep.subr.bf16.mxu0 0
      %2109 = vmatpush1.bf16.xpose.msra.mxu0 0
      %2110 = vmatprep.subr.bf16.mxu0 0
      %2111 = vmatpush1.bf16.xpose.msra.mxu0 0
      %2112 = vmatprep.subr.bf16.mxu0 0
      %2113 = vmatpush1.bf16.xpose.msra.mxu0 0
      %2114 = vmatprep.subr.bf16.mxu0 0
      %2115 = vmatpush1.bf16.xpose.msra.mxu0 0
      %2116 = vmatprep.subr.bf16.mxu0 0
      %2117 = vmatpush1.bf16.xpose.msra.mxu0 0
      %2118 = vmatprep.subr.bf16.mxu0 0
      %2119 = vmatpush1.bf16.xpose.msra.mxu0 0
      %2120 = vmatprep.subr.bf16.mxu0 0
      %2121 = vmatpush1.bf16.xpose.msra.mxu0 0
      %2122 = vmatprep.subr.bf16.mxu0 0
      %2123 = vmatpush1.bf16.xpose.msra.mxu0 0
      %2124 = vmatprep.subr.bf16.mxu0 0
      %2125 = vmatpush1.bf16.xpose.msra.mxu0 0
      %2126 = vmatprep.subr.bf16.mxu0 0
      %2127 = vmatpush1.bf16.xpose.msra.mxu0 0
      %2128 = vmatprep.subr.bf16.mxu0 0
      %2129 = vmatpush1.bf16.xpose.msra.mxu0 0
      %2130 = vmatprep.subr.bf16.mxu0 0
      %2131 = vmatpush1.bf16.xpose.msra.mxu0 0
      %2132 = vmatprep.mubr.bf16.mxu0 0
      %2133 = vmatmul.mubr.bf16.gmra.mrb[0].mxu0 %v2095
      %v2134 = vpop.f32.mrb[0].mxu0
      %v2135 = vadd.f32 0.0, %v2134
      %v2136 = vpop.f32.mrb[0].mxu0
      %v2137 = vpop.f32.mrb[0].mxu0
      %v2138 = vpop.f32.mrb[0].mxu0
      %2139 = vdwg.mxu0
      %2140 = vxpose.xlu0.b32.start [1/16] %v1997, 128
      %2141 = vxpose.xlu0.b32.cont [2/16] 0.0, 128
      %2142 = vxpose.xlu0.b32.cont [3/16] 0.0, 128
      %2143 = vxpose.xlu0.b32.cont [4/16] 0.0, 128
      %2144 = vxpose.xlu0.b32.cont [5/16] 0.0, 128
      %2145 = vxpose.xlu0.b32.cont [6/16] 0.0, 128
      %2146 = vxpose.xlu0.b32.cont [7/16] 0.0, 128
      %2147 = vxpose.xlu0.b32.cont [8/16] 0.0, 128
      %2148 = vxpose.xlu0.b32.cont [9/16] 0.0, 128
      %2149 = vxpose.xlu0.b32.cont [10/16] 0.0, 128
      %2150 = vxpose.xlu0.b32.cont [11/16] 0.0, 128
      %2151 = vxpose.xlu0.b32.cont [12/16] 0.0, 128
      %2152 = vxpose.xlu0.b32.cont [13/16] 0.0, 128
      %2153 = vxpose.xlu0.b32.cont [14/16] 0.0, 128
      %2154 = vxpose.xlu0.b32.cont [15/16] 0.0, 128
      %2155 = vxpose.xlu0.b32.end [16/16] 0.0, 128
      %v2156 = vpop.trf.xlu0
      %v2157 = vpop.trf.xlu0
      %v2158 = vpop.trf.xlu0
      %v2159 = vpop.trf.xlu0
      %v2160 = vpop.trf.xlu0
      %v2161 = vpop.trf.xlu0
      %v2162 = vpop.trf.xlu0
      %v2163 = vpop.trf.xlu0
      %v2164 = vpop.trf.xlu0
      %v2165 = vpop.trf.xlu0
      %v2166 = vpop.trf.xlu0
      %v2167 = vpop.trf.xlu0
      %v2168 = vpop.trf.xlu0
      %v2169 = vpop.trf.xlu0
      %v2170 = vpop.trf.xlu0
      %v2171 = vpop.trf.xlu0
      %2172 = vxpose.xlu0.b32.start [1/16] %v2043, 128
      %2173 = vxpose.xlu0.b32.cont [2/16] 0.0, 128
      %2174 = vxpose.xlu0.b32.cont [3/16] 0.0, 128
      %2175 = vxpose.xlu0.b32.cont [4/16] 0.0, 128
      %2176 = vxpose.xlu0.b32.cont [5/16] 0.0, 128
      %2177 = vxpose.xlu0.b32.cont [6/16] 0.0, 128
      %2178 = vxpose.xlu0.b32.cont [7/16] 0.0, 128
      %2179 = vxpose.xlu0.b32.cont [8/16] 0.0, 128
      %2180 = vxpose.xlu0.b32.cont [9/16] 0.0, 128
      %2181 = vxpose.xlu0.b32.cont [10/16] 0.0, 128
      %2182 = vxpose.xlu0.b32.cont [11/16] 0.0, 128
      %2183 = vxpose.xlu0.b32.cont [12/16] 0.0, 128
      %2184 = vxpose.xlu0.b32.cont [13/16] 0.0, 128
      %2185 = vxpose.xlu0.b32.cont [14/16] 0.0, 128
      %2186 = vxpose.xlu0.b32.cont [15/16] 0.0, 128
      %2187 = vxpose.xlu0.b32.end [16/16] 0.0, 128
      %v2188 = vpop.trf.xlu0
      %v2189 = vpop.trf.xlu0
      %v2190 = vpop.trf.xlu0
      %v2191 = vpop.trf.xlu0
      %v2192 = vpop.trf.xlu0
      %v2193 = vpop.trf.xlu0
      %v2194 = vpop.trf.xlu0
      %v2195 = vpop.trf.xlu0
      %v2196 = vpop.trf.xlu0
      %v2197 = vpop.trf.xlu0
      %v2198 = vpop.trf.xlu0
      %v2199 = vpop.trf.xlu0
      %v2200 = vpop.trf.xlu0
      %v2201 = vpop.trf.xlu0
      %v2202 = vpop.trf.xlu0
      %v2203 = vpop.trf.xlu0
      %2204 = vxpose.xlu0.b32.start [1/16] %v2089, 128
      %2205 = vxpose.xlu0.b32.cont [2/16] 0.0, 128
      %2206 = vxpose.xlu0.b32.cont [3/16] 0.0, 128
      %2207 = vxpose.xlu0.b32.cont [4/16] 0.0, 128
      %2208 = vxpose.xlu0.b32.cont [5/16] 0.0, 128
      %2209 = vxpose.xlu0.b32.cont [6/16] 0.0, 128
      %2210 = vxpose.xlu0.b32.cont [7/16] 0.0, 128
      %2211 = vxpose.xlu0.b32.cont [8/16] 0.0, 128
      %2212 = vxpose.xlu0.b32.cont [9/16] 0.0, 128
      %2213 = vxpose.xlu0.b32.cont [10/16] 0.0, 128
      %2214 = vxpose.xlu0.b32.cont [11/16] 0.0, 128
      %2215 = vxpose.xlu0.b32.cont [12/16] 0.0, 128
      %2216 = vxpose.xlu0.b32.cont [13/16] 0.0, 128
      %2217 = vxpose.xlu0.b32.cont [14/16] 0.0, 128
      %2218 = vxpose.xlu0.b32.cont [15/16] 0.0, 128
      %2219 = vxpose.xlu0.b32.end [16/16] 0.0, 128
      %v2220 = vpop.trf.xlu0
      %v2221 = vpop.trf.xlu0
      %v2222 = vpop.trf.xlu0
      %v2223 = vpop.trf.xlu0
      %v2224 = vpop.trf.xlu0
      %v2225 = vpop.trf.xlu0
      %v2226 = vpop.trf.xlu0
      %v2227 = vpop.trf.xlu0
      %v2228 = vpop.trf.xlu0
      %v2229 = vpop.trf.xlu0
      %v2230 = vpop.trf.xlu0
      %v2231 = vpop.trf.xlu0
      %v2232 = vpop.trf.xlu0
      %v2233 = vpop.trf.xlu0
      %v2234 = vpop.trf.xlu0
      %v2235 = vpop.trf.xlu0
      %2236 = vxpose.xlu0.b32.start [1/16] %v2135, 128
      %2237 = vxpose.xlu0.b32.cont [2/16] 0.0, 128
      %2238 = vxpose.xlu0.b32.cont [3/16] 0.0, 128
      %2239 = vxpose.xlu0.b32.cont [4/16] 0.0, 128
      %2240 = vxpose.xlu0.b32.cont [5/16] 0.0, 128
      %2241 = vxpose.xlu0.b32.cont [6/16] 0.0, 128
      %2242 = vxpose.xlu0.b32.cont [7/16] 0.0, 128
      %2243 = vxpose.xlu0.b32.cont [8/16] 0.0, 128
      %2244 = vxpose.xlu0.b32.cont [9/16] 0.0, 128
      %2245 = vxpose.xlu0.b32.cont [10/16] 0.0, 128
      %2246 = vxpose.xlu0.b32.cont [11/16] 0.0, 128
      %2247 = vxpose.xlu0.b32.cont [12/16] 0.0, 128
      %2248 = vxpose.xlu0.b32.cont [13/16] 0.0, 128
      %2249 = vxpose.xlu0.b32.cont [14/16] 0.0, 128
      %2250 = vxpose.xlu0.b32.cont [15/16] 0.0, 128
      %2251 = vxpose.xlu0.b32.end [16/16] 0.0, 128
      %v2252 = vpop.trf.xlu0
      %v2253 = vpop.trf.xlu0
      %v2254 = vpop.trf.xlu0
      %v2255 = vpop.trf.xlu0
      %v2256 = vpop.trf.xlu0
      %v2257 = vpop.trf.xlu0
      %v2258 = vpop.trf.xlu0
      %v2259 = vpop.trf.xlu0
      %v2260 = vpop.trf.xlu0
      %v2261 = vpop.trf.xlu0
      %v2262 = vpop.trf.xlu0
      %v2263 = vpop.trf.xlu0
      %v2264 = vpop.trf.xlu0
      %v2265 = vpop.trf.xlu0
      %v2266 = vpop.trf.xlu0
      %v2267 = vpop.trf.xlu0
      %v2268 = vcombine.low %v2156, %v2220
      %v2269 = vcombine.high %v2156, %v2220
      %v2271 = vunpack.c.l.s4 1983009808
      %v2272 = vunpack.c.0.s8 %v2271
      %v2273 = vlaneseq
      %v2274 = vshrl.u32 %v2273, 7
      %v2275 = vsub.s32 %v2272, %v2274
      %v2276 = vrot.slane %v2268, %v2275
      %v2278 = vunpack.c.l.s4 1983009808
      %v2279 = vunpack.c.0.s8 %v2278
      %v2280 = vlaneseq
      %v2281 = vshrl.u32 %v2280, 7
      %v2282 = vsub.s32 %v2279, %v2281
      %v2283 = vrot.slane %v2269, %v2282
      %v2284 = vcombine.low %v2188, %v2252
      %v2285 = vcombine.high %v2188, %v2252
      %v2287 = vunpack.c.l.s4 1983009808
      %v2288 = vunpack.c.0.s8 %v2287
      %v2289 = vlaneseq
      %v2290 = vshrl.u32 %v2289, 7
      %v2291 = vsub.s32 %v2288, %v2290
      %v2292 = vrot.slane %v2284, %v2291
      %v2294 = vunpack.c.l.s4 1983009808
      %v2295 = vunpack.c.0.s8 %v2294
      %v2296 = vlaneseq
      %v2297 = vshrl.u32 %v2296, 7
      %v2298 = vsub.s32 %v2295, %v2297
      %v2299 = vrot.slane %v2285, %v2298
      %v2300 = vcombine.low %v2276, %v2292
      %v2301 = vcombine.high %v2276, %v2292
      %v2303 = vunpack.c.l.s4 1934713408
      %v2304 = vunpack.c.0.s8 %v2303
      %v2305 = vlaneseq
      %v2306 = vshrl.u32 %v2305, 7
      %v2307 = vsub.s32 %v2304, %v2306
      %v2308 = vrot.slane %v2300, %v2307
      %v2310 = vunpack.c.l.s4 1934713408
      %v2311 = vunpack.c.0.s8 %v2310
      %v2312 = vlaneseq
      %v2313 = vshrl.u32 %v2312, 7
      %v2314 = vsub.s32 %v2311, %v2313
      %v2315 = vrot.slane %v2301, %v2314
      %v2316 = vcombine.low %v2283, %v2299
      %v2317 = vcombine.high %v2283, %v2299
      %v2319 = vunpack.c.l.s4 1934713408
      %v2320 = vunpack.c.0.s8 %v2319
      %v2321 = vlaneseq
      %v2322 = vshrl.u32 %v2321, 7
      %v2323 = vsub.s32 %v2320, %v2322
      %v2324 = vrot.slane %v2316, %v2323
      %v2326 = vunpack.c.l.s4 1934713408
      %v2327 = vunpack.c.0.s8 %v2326
      %v2328 = vlaneseq
      %v2329 = vshrl.u32 %v2328, 7
      %v2330 = vsub.s32 %v2327, %v2329
      %v2331 = vrot.slane %v2317, %v2330
      %v2332 = vcombine.high %v2308, 0.0
      %v2333 = vcombine.high %v2315, 0.0
      %v2334 = vcombine.high %v2324, 0.0
      %v2335 = vcombine.high %v2331, 0.0
      %v2336 = vcombine.low %v2308, %v2315
      %v2338 = vunpack.c.l.s4 1983009808
      %v2339 = vunpack.c.0.s8 %v2338
      %v2340 = vlaneseq
      %v2341 = vshrl.u32 %v2340, 7
      %v2342 = vsub.s32 %v2339, %v2341
      %v2343 = vrot.slane %v2336, %v2342
      %v2344 = vcombine.low %v2332, %v2333
      %v2346 = vunpack.c.l.s4 1983009808
      %v2347 = vunpack.c.0.s8 %v2346
      %v2348 = vlaneseq
      %v2349 = vshrl.u32 %v2348, 7
      %v2350 = vsub.s32 %v2347, %v2349
      %v2351 = vrot.slane %v2344, %v2350
      %v2352 = vcombine.low %v2324, %v2331
      %v2354 = vunpack.c.l.s4 1983009808
      %v2355 = vunpack.c.0.s8 %v2354
      %v2356 = vlaneseq
      %v2357 = vshrl.u32 %v2356, 7
      %v2358 = vsub.s32 %v2355, %v2357
      %v2359 = vrot.slane %v2352, %v2358
      %v2360 = vcombine.low %v2334, %v2335
      %v2362 = vunpack.c.l.s4 1983009808
      %v2363 = vunpack.c.0.s8 %v2362
      %v2364 = vlaneseq
      %v2365 = vshrl.u32 %v2364, 7
      %v2366 = vsub.s32 %v2363, %v2365
      %v2367 = vrot.slane %v2360, %v2366
      %v2368 = vcombine.low %v2343, %v2351
      %v2369 = vcombine.high %v2343, %v2351
      %v2371 = vunpack.c.l.s4 1934713408
      %v2372 = vunpack.c.0.s8 %v2371
      %v2373 = vlaneseq
      %v2374 = vshrl.u32 %v2373, 7
      %v2375 = vsub.s32 %v2372, %v2374
      %v2376 = vrot.slane %v2368, %v2375
      %v2378 = vunpack.c.l.s4 1934713408
      %v2379 = vunpack.c.0.s8 %v2378
      %v2380 = vlaneseq
      %v2381 = vshrl.u32 %v2380, 7
      %v2382 = vsub.s32 %v2379, %v2381
      %v2383 = vrot.slane %v2369, %v2382
      %v2384 = vcombine.low %v2359, %v2367
      %v2385 = vcombine.high %v2359, %v2367
      %v2387 = vunpack.c.l.s4 1934713408
      %v2388 = vunpack.c.0.s8 %v2387
      %v2389 = vlaneseq
      %v2390 = vshrl.u32 %v2389, 7
      %v2391 = vsub.s32 %v2388, %v2390
      %v2392 = vrot.slane %v2384, %v2391
      %v2394 = vunpack.c.l.s4 1934713408
      %v2395 = vunpack.c.0.s8 %v2394
      %v2396 = vlaneseq
      %v2397 = vshrl.u32 %v2396, 7
      %v2398 = vsub.s32 %v2395, %v2397
      %v2399 = vrot.slane %v2385, %v2398
      %v2400 = vcombine.low %v2376, %v2392
      %v2401 = vcombine.high %v2376, %v2392
      %v2402 = vcombine.low %v2383, %v2399
      %v2403 = vcombine.high %v2383, %v2399
      %2405 = vrot.lane.b32.xlu0 %v2401, 8
      %v2406 = vpop.permute.xlu0 %2405
      %2409 = vrot.lane.b32.xlu0 %v2402, 16
      %v2410 = vpop.permute.xlu0 %2409
      %2413 = vrot.lane.b32.xlu0 %v2403, 24
      %v2414 = vpop.permute.xlu0 %2413
      %v2416 = vsel %vm1296, %v2400, %v2406
      %vm2417 = vcmask 130048
      %v2418 = vsel %vm2417, %v2416, %v2410
      %vm2419 = vcmask 195584
      %v2420 = vsel %vm2419, %v2418, %v2414
      %v2421 = vpack.c.bf16 %v2420, %v2420
      %v2422 = vld [vmem:[%s4] sm:$0xf]
      %v2423 = vld [vmem:[%s4 + $0x4] sm:$0xf]
      %v2424 = vld [vmem:[%s4 + $0x8] sm:$0xf]
      %v2425 = vld [vmem:[%s4 + $0xc] sm:$0xf]
      %v2426 = vld [vmem:[%s5] sm:$0x1]
      %v2428 = vlaneseq
      %v2429 = vshrl.u32 %v2428, 7
      %v2430 = vsub.s32 0, %v2429
      %v2431 = vrot.slane %v2426, %v2430
      %v2437 = vunpack.c.l.b16 %v2422
      %v2438 = vunpack.c.l.b16 %v2423
      %v2439 = vunpack.c.l.b16 %v2424
      %v2440 = vunpack.c.l.b16 %v2425
      %v2441 = vpack.c.b16 %v2438, %v2437
      %v2442 = vpack.c.b16 %v2440, %v2439
      %v2446 = vsel %vm503, %v2421, 0
      %2448 = vmatprep.subr.bf16.mxu0 0
      %2449 = vmatpush1.bf16.msra.mxu0 %v2441
      %2450 = vmatprep.subr.bf16.mxu0 0
      %2451 = vmatpush1.bf16.msra.mxu0 %v2442
      %2452 = vmatprep.subr.bf16.mxu0 0
      %2453 = vmatpush1.bf16.msra.mxu0 0
      %2454 = vmatprep.subr.bf16.mxu0 0
      %2455 = vmatpush1.bf16.msra.mxu0 0
      %2456 = vmatprep.subr.bf16.mxu0 0
      %2457 = vmatpush1.bf16.msra.mxu0 0
      %2458 = vmatprep.subr.bf16.mxu0 0
      %2459 = vmatpush1.bf16.msra.mxu0 0
      %2460 = vmatprep.subr.bf16.mxu0 0
      %2461 = vmatpush1.bf16.msra.mxu0 0
      %2462 = vmatprep.subr.bf16.mxu0 0
      %2463 = vmatpush1.bf16.msra.mxu0 0
      %2464 = vmatprep.subr.bf16.mxu0 0
      %2465 = vmatpush1.bf16.msra.mxu0 0
      %2466 = vmatprep.subr.bf16.mxu0 0
      %2467 = vmatpush1.bf16.msra.mxu0 0
      %2468 = vmatprep.subr.bf16.mxu0 0
      %2469 = vmatpush1.bf16.msra.mxu0 0
      %2470 = vmatprep.subr.bf16.mxu0 0
      %2471 = vmatpush1.bf16.msra.mxu0 0
      %2472 = vmatprep.subr.bf16.mxu0 0
      %2473 = vmatpush1.bf16.msra.mxu0 0
      %2474 = vmatprep.subr.bf16.mxu0 0
      %2475 = vmatpush1.bf16.msra.mxu0 0
      %2476 = vmatprep.subr.bf16.mxu0 0
      %2477 = vmatpush1.bf16.msra.mxu0 0
      %2478 = vmatprep.subr.bf16.mxu0 0
      %2479 = vmatpush1.bf16.msra.mxu0 0
      %2480 = vmatprep.mubr.bf16.mxu0 0
      %2481 = vmatmul.mubr.bf16.gmra.mrb[0].mxu0 %v2446
      %v2482 = vpop.f32.mrb[0].mxu0
      %v2483 = vadd.f32 %v2431, %v2482
      %v2484 = vpop.f32.mrb[0].mxu0
      %v2485 = vpop.f32.mrb[0].mxu0
      %v2486 = vpop.f32.mrb[0].mxu0
      %2487 = vdwg.mxu0
      %v2488 = vadd.f32 %v478, %v2483
      %v2489 = vld [vmem:[%s6] sm:$0x1]
      %v2490 = vld [vmem:[%s7] sm:$0x1]
      %v2491 = vsel %vm503, %v2488, 0.0
      %2492 = vadd.xlane.f32.xlu0 %v2491
      %v2493 = vpop.xlane.xlu0 %2492
      %v2494 = vrcp.pop 32.0
      %v2495 = vmul.f32 %v2493, %v2494
      %v2496 = vsub.f32 %v2488, %v2495
      %v2497 = vmul.f32 %v2496, %v2496
      %v2498 = vsel %vm503, %v2497, 0.0
      %2499 = vadd.xlane.f32.xlu0 %v2498
      %v2500 = vpop.xlane.xlu0 %2499
      %v2501 = vmul.f32 %v2500, %v2494
      %v2502 = vadd.f32 %v2501, 1e-05
      %v2503 = vrsqrt.pop %v2502
      %v2504 = vmul.f32 %v2496, %v2503
      %v2506 = vlaneseq
      %v2507 = vshrl.u32 %v2506, 7
      %v2508 = vsub.s32 0, %v2507
      %v2509 = vrot.slane %v2489, %v2508
      %v2511 = vmul.f32 %v2504, %v2509
      %v2513 = vlaneseq
      %v2514 = vshrl.u32 %v2513, 7
      %v2515 = vsub.s32 0, %v2514
      %v2516 = vrot.slane %v2490, %v2515
      %v2518 = vadd.f32 %v2511, %v2516
      %v2519 = vpack.c.bf16 %v2518, %v2518
      %v2520 = vld [vmem:[%s8] sm:$0xf]
      %v2521 = vld [vmem:[%s8 + $0x4] sm:$0xf]
      %v2522 = vld [vmem:[%s8 + $0x8] sm:$0xf]
      %v2523 = vld [vmem:[%s8 + $0xc] sm:$0xf]
      %v2524 = vld [vmem:[%s9] sm:$0x1]
      %v2526 = vlaneseq
      %v2527 = vshrl.u32 %v2526, 7
      %v2528 = vsub.s32 0, %v2527
      %v2529 = vrot.slane %v2524, %v2528
      %v2535 = vunpack.c.l.b16 %v2520
      %v2536 = vunpack.c.l.b16 %v2521
      %v2537 = vunpack.c.l.b16 %v2522
      %v2538 = vunpack.c.l.b16 %v2523
      %v2539 = vpack.c.b16 %v2536, %v2535
      %v2540 = vpack.c.b16 %v2538, %v2537
      %v2544 = vsel %vm503, %v2519, 0
      %2546 = vmatprep.subr.bf16.mxu0 0
      %2547 = vmatpush1.bf16.msra.mxu0 %v2539
      %2548 = vmatprep.subr.bf16.mxu0 0
      %2549 = vmatpush1.bf16.msra.mxu0 %v2540
      %2550 = vmatprep.subr.bf16.mxu0 0
      %2551 = vmatpush1.bf16.msra.mxu0 0
      %2552 = vmatprep.subr.bf16.mxu0 0
      %2553 = vmatpush1.bf16.msra.mxu0 0
      %2554 = vmatprep.subr.bf16.mxu0 0
      %2555 = vmatpush1.bf16.msra.mxu0 0
      %2556 = vmatprep.subr.bf16.mxu0 0
      %2557 = vmatpush1.bf16.msra.mxu0 0
      %2558 = vmatprep.subr.bf16.mxu0 0
      %2559 = vmatpush1.bf16.msra.mxu0 0
      %2560 = vmatprep.subr.bf16.mxu0 0
      %2561 = vmatpush1.bf16.msra.mxu0 0
      %2562 = vmatprep.subr.bf16.mxu0 0
      %2563 = vmatpush1.bf16.msra.mxu0 0
      %2564 = vmatprep.subr.bf16.mxu0 0
      %2565 = vmatpush1.bf16.msra.mxu0 0
      %2566 = vmatprep.subr.bf16.mxu0 0
      %2567 = vmatpush1.bf16.msra.mxu0 0
      %2568 = vmatprep.subr.bf16.mxu0 0
      %2569 = vmatpush1.bf16.msra.mxu0 0
      %2570 = vmatprep.subr.bf16.mxu0 0
      %2571 = vmatpush1.bf16.msra.mxu0 0
      %2572 = vmatprep.subr.bf16.mxu0 0
      %2573 = vmatpush1.bf16.msra.mxu0 0
      %2574 = vmatprep.subr.bf16.mxu0 0
      %2575 = vmatpush1.bf16.msra.mxu0 0
      %2576 = vmatprep.subr.bf16.mxu0 0
      %2577 = vmatpush1.bf16.msra.mxu0 0
      %2578 = vmatprep.mubr.bf16.mxu0 0
      %2579 = vmatmul.mubr.bf16.gmra.mrb[0].mxu0 %v2544
      %v2580 = vpop.f32.mrb[0].mxu0
      %v2581 = vadd.f32 %v2529, %v2580
      %v2582 = vpop.f32.mrb[0].mxu0
      %v2583 = vpop.f32.mrb[0].mxu0
      %v2584 = vpop.f32.mrb[0].mxu0
      %2585 = vdwg.mxu0
      %v2586 = vmul.f32 %v2581, 0.5
      %v2587 = vmul.f32 %v2581, 0.044715
      %v2588 = vmul.f32 %v2587, %v2581
      %v2589 = vmul.f32 %v2588, %v2581
      %v2590 = vadd.f32 %v2581, %v2589
      %v2591 = vmul.f32 %v2590, 0.7978846
      %v2592 = vtanh.pop %v2591
      %v2593 = vadd.f32 %v2592, 1.0
      %v2594 = vmul.f32 %v2586, %v2593
      %v2595 = vpack.c.bf16 %v2594, %v2594
      %v2596 = vld [vmem:[%s10] sm:$0xf]
      %v2597 = vld [vmem:[%s10 + $0x4] sm:$0xf]
      %v2598 = vld [vmem:[%s10 + $0x8] sm:$0xf]
      %v2599 = vld [vmem:[%s10 + $0xc] sm:$0xf]
      %v2600 = vld [vmem:[%s10 + $0x10] sm:$0xf]
      %v2601 = vld [vmem:[%s10 + $0x14] sm:$0xf]
      %v2602 = vld [vmem:[%s10 + $0x18] sm:$0xf]
      %v2603 = vld [vmem:[%s10 + $0x1c] sm:$0xf]
      %v2604 = vld [vmem:[%s11] sm:$0x1]
      %v2606 = vlaneseq
      %v2607 = vshrl.u32 %v2606, 7
      %v2608 = vsub.s32 0, %v2607
      %v2609 = vrot.slane %v2604, %v2608
      %v2619 = vunpack.c.l.b16 %v2596
      %v2620 = vunpack.c.l.b16 %v2597
      %v2621 = vunpack.c.l.b16 %v2598
      %v2622 = vunpack.c.l.b16 %v2599
      %v2623 = vunpack.c.l.b16 %v2600
      %v2624 = vunpack.c.l.b16 %v2601
      %v2625 = vunpack.c.l.b16 %v2602
      %v2626 = vunpack.c.l.b16 %v2603
      %v2627 = vpack.c.b16 %v2620, %v2619
      %v2628 = vpack.c.b16 %v2622, %v2621
      %v2629 = vpack.c.b16 %v2624, %v2623
      %v2630 = vpack.c.b16 %v2626, %v2625
      %vm2635 = vcmask 523264
      %v2637 = vsel %vm2635, %v2595, 0
      %2639 = vmatprep.subr.bf16.mxu0 0
      %2640 = vmatpush1.bf16.msra.mxu0 %v2627
      %2641 = vmatprep.subr.bf16.mxu0 0
      %2642 = vmatpush1.bf16.msra.mxu0 %v2628
      %2643 = vmatprep.subr.bf16.mxu0 0
      %2644 = vmatpush1.bf16.msra.mxu0 %v2629
      %2645 = vmatprep.subr.bf16.mxu0 0
      %2646 = vmatpush1.bf16.msra.mxu0 %v2630
      %2647 = vmatprep.subr.bf16.mxu0 0
      %2648 = vmatpush1.bf16.msra.mxu0 0
      %2649 = vmatprep.subr.bf16.mxu0 0
      %2650 = vmatpush1.bf16.msra.mxu0 0
      %2651 = vmatprep.subr.bf16.mxu0 0
      %2652 = vmatpush1.bf16.msra.mxu0 0
      %2653 = vmatprep.subr.bf16.mxu0 0
      %2654 = vmatpush1.bf16.msra.mxu0 0
      %2655 = vmatprep.subr.bf16.mxu0 0
      %2656 = vmatpush1.bf16.msra.mxu0 0
      %2657 = vmatprep.subr.bf16.mxu0 0
      %2658 = vmatpush1.bf16.msra.mxu0 0
      %2659 = vmatprep.subr.bf16.mxu0 0
      %2660 = vmatpush1.bf16.msra.mxu0 0
      %2661 = vmatprep.subr.bf16.mxu0 0
      %2662 = vmatpush1.bf16.msra.mxu0 0
      %2663 = vmatprep.subr.bf16.mxu0 0
      %2664 = vmatpush1.bf16.msra.mxu0 0
      %2665 = vmatprep.subr.bf16.mxu0 0
      %2666 = vmatpush1.bf16.msra.mxu0 0
      %2667 = vmatprep.subr.bf16.mxu0 0
      %2668 = vmatpush1.bf16.msra.mxu0 0
      %2669 = vmatprep.subr.bf16.mxu0 0
      %2670 = vmatpush1.bf16.msra.mxu0 0
      %2671 = vmatprep.mubr.bf16.mxu0 0
      %2672 = vmatmul.mubr.bf16.gmra.mrb[0].mxu0 %v2637
      %v2673 = vpop.f32.mrb[0].mxu0
      %v2674 = vadd.f32 %v2609, %v2673
      %v2675 = vpop.f32.mrb[0].mxu0
      %v2676 = vpop.f32.mrb[0].mxu0
      %v2677 = vpop.f32.mrb[0].mxu0
      %2678 = vdwg.mxu0
      %v2679 = vadd.f32 %v2518, %v2674
      %v2680 = vld [vmem:[%s12] sm:$0x1]
      %v2681 = vld [vmem:[%s13] sm:$0x1]
      %v2682 = vsel %vm503, %v2679, 0.0
      %2683 = vadd.xlane.f32.xlu0 %v2682
      %v2684 = vpop.xlane.xlu0 %2683
      %v2685 = vmul.f32 %v2684, %v2494
      %v2686 = vsub.f32 %v2679, %v2685
      %v2687 = vmul.f32 %v2686, %v2686
      %v2688 = vsel %vm503, %v2687, 0.0
      %2689 = vadd.xlane.f32.xlu0 %v2688
      %v2690 = vpop.xlane.xlu0 %2689
      %v2691 = vmul.f32 %v2690, %v2494
      %v2692 = vadd.f32 %v2691, 1e-05
      %v2693 = vrsqrt.pop %v2692
      %v2694 = vmul.f32 %v2686, %v2693
      %v2696 = vlaneseq
      %v2697 = vshrl.u32 %v2696, 7
      %v2698 = vsub.s32 0, %v2697
      %v2699 = vrot.slane %v2680, %v2698
      %v2701 = vmul.f32 %v2694, %v2699
      %v2703 = vlaneseq
      %v2704 = vshrl.u32 %v2703, 7
      %v2705 = vsub.s32 0, %v2704
      %v2706 = vrot.slane %v2681, %v2705
      %v2708 = vadd.f32 %v2701, %v2706
      %2709 = vst.msk [vmem:[%s476] sm:$0xff] %vm503, %v2708
      %p2710 = scmp.lt.s32.totalorder %s25, 1
      %s2711 = scalar_select %p2710, %s25, 1
      %s2712 = smul.addr %s2711, 8
      %s2713 = scalar_lea.vmem %s14, %s2712
      // Predicated region
      $region77: #{roberta_encoder_forward.4} parent=75 // pred_check
        %p2714 = pneg %p347
      $region78: #{roberta_encoder_forward.4} parent=75 // pred_check_branch
        %2716 = sbr.rel (%p2714) target = $region80
      $region79: #{roberta_encoder_forward.4} parent=75 // pred_region
        _
      $region80: #{roberta_encoder_forward.4} parent=75 // pred_fallthru
        _
    $region76: #{roberta_encoder_forward.4} parent=5 // pred_fallthru
      _
    %p2717 = scmp.le.s32.totalorder 2, %s20
    // Predicated region
    $region81: #{roberta_encoder_forward.4} parent=5 // pred_check
      %p2718 = pneg %p2717
    $region82: #{roberta_encoder_forward.4} parent=5 // pred_check_branch
      %2720 = sbr.rel (%p2718) target = $region84
    $region83: #{roberta_encoder_forward.4} parent=5 // pred_region
      %s2721 = ssub.s32 %s20, 2
      // Predicated region
      $region85: #{roberta_encoder_forward.4} parent=83 // pred_check
        %p2722 = pneg %p353
      $region86: #{roberta_encoder_forward.4} parent=83 // pred_check_branch
        %2724 = sbr.rel (%p2722) target = $region88
      $region87: #{roberta_encoder_forward.4} parent=83 // pred_region
        %p2725 = scmp.lt.s32.totalorder %s26, 1
        %s2726 = scalar_select %p2725, %s26, 1
        %s2727 = smul.addr %s2726, 8
        %s2728 = scalar_lea.vmem %s14, %s2727
      $region88: #{roberta_encoder_forward.4} parent=83 // pred_fallthru
        _
    $region84: #{roberta_encoder_forward.4} parent=5 // pred_fallthru
      _
  $region6: #{roberta_encoder_forward.4} parent=0 // loop_footer
    %s24 = sadd.s32 1, %s20
  $region7: #{roberta_encoder_forward.4} parent=0 // loop_footer_branch
    %19 = sbr.rel target = $region3
  $region8: #{roberta_encoder_forward.4} parent=0 // loop_exit
    _

// kernel: roberta_encoder_forward.5
$region0: #{roberta_encoder_forward.5}
  #allocation0 [shape = 'u32[]', space=smem, size = 0x4, offset = 0x4, fixed_abs, tag = 'smem constant byte address 0x4 - core index']
  #allocation1 [shape = 'u32[144,128]{1,0:T(1,128)}', space=vmem, size = 0x12000, scoped, tag = 'internal scratch']
  %s0 = inlined_call_operand.vmem [shape: f32[2,8,32], index: 0, kind: input, shape index: {}]
  %s1 = inlined_call_operand.vmem [shape: f32[2,1,8], index: 1, kind: input, shape index: {}]
  %s2 = inlined_call_operand.vmem [shape: bf16[32,96], index: 2, kind: input, shape index: {}]
  %s3 = inlined_call_operand.vmem [shape: f32[1,96], index: 3, kind: input, shape index: {}]
  %s4 = inlined_call_operand.vmem [shape: bf16[32,32], index: 4, kind: input, shape index: {}]
  %s5 = inlined_call_operand.vmem [shape: f32[1,32], index: 5, kind: input, shape index: {}]
  %s6 = inlined_call_operand.vmem [shape: f32[1,32], index: 6, kind: input, shape index: {}]
  %s7 = inlined_call_operand.vmem [shape: f32[1,32], index: 7, kind: input, shape index: {}]
  %s8 = inlined_call_operand.vmem [shape: bf16[32,64], index: 8, kind: input, shape index: {}]
  %s9 = inlined_call_operand.vmem [shape: f32[1,64], index: 9, kind: input, shape index: {}]
  %s10 = inlined_call_operand.vmem [shape: bf16[64,32], index: 10, kind: input, shape index: {}]
  %s11 = inlined_call_operand.vmem [shape: f32[1,32], index: 11, kind: input, shape index: {}]
  %s12 = inlined_call_operand.vmem [shape: f32[1,32], index: 12, kind: input, shape index: {}]
  %s13 = inlined_call_operand.vmem [shape: f32[1,32], index: 13, kind: input, shape index: {}]
  %s14 = inlined_call_operand.hbm [shape: f32[2,8,32], index: 14, kind: output, shape index: {}]
  %s15 = sld [smem:[#allocation0]]
  $region89: #{roberta_encoder_forward.5} parent=0
    _
  %s17 = ssub.s32 1, %s15
  %s18 = scalar_select 0, %s17, %s15
  $region1: #{roberta_encoder_forward.5} parent=0
    #allocation2 [shape = 'u8[8192]{0}', space=vmem, size = 0x2000, scoped, tag = 'output window, operand 0']
    #allocation3 [shape = 's32[2]{0}', space=sflag, size = 0x8, scoped, tag = 'scoped memory for roberta_encoder_forward.5']
    %19 = vsyncpa [#allocation3], 0
    %s20 = scalar_lea.sflag [#allocation3], 1
    %21 = vsyncpa %s20, 0
    loop: start=0, step=1, limit=4
    $region2: #{roberta_encoder_forward.5} parent=1 // loop_pre_header
      _
    $region3: #{roberta_encoder_forward.5} parent=1 // loop_header
      %s23 = sphi 0, %s27
      %p24 = scmp.ge.s32.totalorder %s23, 4
      %s33 = sphi 0, %s35
      %s36 = sphi 0, %s33
      %s37 = sphi 0, %s36
      %s53 = sphi 0, %s37
      %s59 = sphi 0, %s61
      %s62 = sphi 0, %s59
      %s63 = sphi 0, %s62
      %s79 = sphi 0, %s63
      %s83 = sphi 0, %s83
      %s85 = sphi 0, %s83
      %s86 = sphi 0, %s85
      %s100 = sphi 0, %s86
      %s104 = sphi 0, %s104
      %s106 = sphi 0, %s104
      %s107 = sphi 0, %s106
      %s121 = sphi 0, %s107
      %s125 = sphi 0, %s125
      %s127 = sphi 0, %s125
      %s128 = sphi 0, %s127
      %s142 = sphi 0, %s128
      %s146 = sphi 0, %s146
      %s148 = sphi 0, %s146
      %s149 = sphi 0, %s148
      %s163 = sphi 0, %s149
      %s167 = sphi 0, %s167
      %s169 = sphi 0, %s167
      %s170 = sphi 0, %s169
      %s184 = sphi 0, %s170
      %s188 = sphi 0, %s188
      %s190 = sphi 0, %s188
      %s191 = sphi 0, %s190
      %s205 = sphi 0, %s191
      %s209 = sphi 0, %s209
      %s211 = sphi 0, %s209
      %s212 = sphi 0, %s211
      %s226 = sphi 0, %s212
      %s230 = sphi 0, %s230
      %s232 = sphi 0, %s230
      %s233 = sphi 0, %s232
      %s247 = sphi 0, %s233
      %s251 = sphi 0, %s251
      %s253 = sphi 0, %s251
      %s254 = sphi 0, %s253
      %s268 = sphi 0, %s254
      %s272 = sphi 0, %s272
      %s274 = sphi 0, %s272
      %s275 = sphi 0, %s274
      %s289 = sphi 0, %s275
      %s293 = sphi 0, %s293
      %s295 = sphi 0, %s293
      %s296 = sphi 0, %s295
      %s310 = sphi 0, %s296
      %s314 = sphi 0, %s314
      %s316 = sphi 0, %s314
      %s317 = sphi 0, %s316
      %s331 = sphi 0, %s317
      %s337 = sphi 0, %s339
      %s340 = sphi 0, %s337
      %s341 = sphi 0, %s340
      %s357 = sphi 0, %s341
    $region4: #{roberta_encoder_forward.5} parent=1 // loop_header_branch
      %26 = sbr.rel (%p24) target = $region8
    $region5: #{roberta_encoder_forward.5} parent=1 // loop_body
      %s28 = ssub.s32 %s23, 1
      %s29 = ssub.s32 %s23, 2
      %s30 = sadd.s32 %s23, 1
      %s31 = ssub.s32 %s23, %s30
      %p32 = scmp.eq.s32.totalorder %s31, 0
      %s34 = sadd.s32 %s33, 1
      %s35 = scalar_select %p32, %s33, %s34
      %p38 = pneg %p32
      %p39 = scmp.eq.s32.totalorder %s23, 1
      %p40 = por %p38, %p39
      %p41 = scmp.ne.s32.totalorder %s33, %s36
      %p42 = scmp.eq.s32.totalorder %s23, 0
      %p43 = por %p41, %p42
      %p44 = scmp.ne.s32.totalorder %s33, %s36
      %p45 = scmp.eq.s32.totalorder %s28, 1
      %p46 = por %p44, %p45
      %p47 = scmp.ne.s32.totalorder %s36, %s37
      %p48 = scmp.eq.s32.totalorder %s28, 0
      %p49 = por %p47, %p48
      %p50 = scmp.ne.s32.totalorder %s36, %s37
      %p51 = scmp.eq.s32.totalorder %s29, 1
      %p52 = por %p50, %p51
      %p54 = scmp.ne.s32.totalorder %s37, %s53
      %p55 = scmp.eq.s32.totalorder %s29, 0
      %p56 = por %p54, %p55
      %s57 = ssub.s32 %s23, %s30
      %p58 = scmp.eq.s32.totalorder %s57, 0
      %s60 = sadd.s32 %s59, 1
      %s61 = scalar_select %p58, %s59, %s60
      %p64 = pneg %p58
      %p65 = scmp.eq.s32.totalorder %s23, 1
      %p66 = por %p64, %p65
      %p67 = scmp.ne.s32.totalorder %s59, %s62
      %p68 = scmp.eq.s32.totalorder %s23, 0
      %p69 = por %p67, %p68
      %p70 = scmp.ne.s32.totalorder %s59, %s62
      %p71 = scmp.eq.s32.totalorder %s28, 1
      %p72 = por %p70, %p71
      %p73 = scmp.ne.s32.totalorder %s62, %s63
      %p74 = scmp.eq.s32.totalorder %s28, 0
      %p75 = por %p73, %p74
      %p76 = scmp.ne.s32.totalorder %s62, %s63
      %p77 = scmp.eq.s32.totalorder %s29, 1
      %p78 = por %p76, %p77
      %p80 = scmp.ne.s32.totalorder %s63, %s79
      %p81 = scmp.eq.s32.totalorder %s29, 0
      %p82 = por %p80, %p81
      %s84 = sadd.s32 %s83, 1
      %p87 = scmp.eq.s32.totalorder %s23, 1
      %p88 = scmp.ne.s32.totalorder %s83, %s85
      %p89 = scmp.eq.s32.totalorder %s23, 0
      %p90 = por %p88, %p89
      %p91 = scmp.ne.s32.totalorder %s83, %s85
      %p92 = scmp.eq.s32.totalorder %s28, 1
      %p93 = por %p91, %p92
      %p94 = scmp.ne.s32.totalorder %s85, %s86
      %p95 = scmp.eq.s32.totalorder %s28, 0
      %p96 = por %p94, %p95
      %p97 = scmp.ne.s32.totalorder %s85, %s86
      %p98 = scmp.eq.s32.totalorder %s29, 1
      %p99 = por %p97, %p98
      %p101 = scmp.ne.s32.totalorder %s86, %s100
      %p102 = scmp.eq.s32.totalorder %s29, 0
      %p103 = por %p101, %p102
      %s105 = sadd.s32 %s104, 1
      %p108 = scmp.eq.s32.totalorder %s23, 1
      %p109 = scmp.ne.s32.totalorder %s104, %s106
      %p110 = scmp.eq.s32.totalorder %s23, 0
      %p111 = por %p109, %p110
      %p112 = scmp.ne.s32.totalorder %s104, %s106
      %p113 = scmp.eq.s32.totalorder %s28, 1
      %p114 = por %p112, %p113
      %p115 = scmp.ne.s32.totalorder %s106, %s107
      %p116 = scmp.eq.s32.totalorder %s28, 0
      %p117 = por %p115, %p116
      %p118 = scmp.ne.s32.totalorder %s106, %s107
      %p119 = scmp.eq.s32.totalorder %s29, 1
      %p120 = por %p118, %p119
      %p122 = scmp.ne.s32.totalorder %s107, %s121
      %p123 = scmp.eq.s32.totalorder %s29, 0
      %p124 = por %p122, %p123
      %s126 = sadd.s32 %s125, 1
      %p129 = scmp.eq.s32.totalorder %s23, 1
      %p130 = scmp.ne.s32.totalorder %s125, %s127
      %p131 = scmp.eq.s32.totalorder %s23, 0
      %p132 = por %p130, %p131
      %p133 = scmp.ne.s32.totalorder %s125, %s127
      %p134 = scmp.eq.s32.totalorder %s28, 1
      %p135 = por %p133, %p134
      %p136 = scmp.ne.s32.totalorder %s127, %s128
      %p137 = scmp.eq.s32.totalorder %s28, 0
      %p138 = por %p136, %p137
      %p139 = scmp.ne.s32.totalorder %s127, %s128
      %p140 = scmp.eq.s32.totalorder %s29, 1
      %p141 = por %p139, %p140
      %p143 = scmp.ne.s32.totalorder %s128, %s142
      %p144 = scmp.eq.s32.totalorder %s29, 0
      %p145 = por %p143, %p144
      %s147 = sadd.s32 %s146, 1
      %p150 = scmp.eq.s32.totalorder %s23, 1
      %p151 = scmp.ne.s32.totalorder %s146, %s148
      %p152 = scmp.eq.s32.totalorder %s23, 0
      %p153 = por %p151, %p152
      %p154 = scmp.ne.s32.totalorder %s146, %s148
      %p155 = scmp.eq.s32.totalorder %s28, 1
      %p156 = por %p154, %p155
      %p157 = scmp.ne.s32.totalorder %s148, %s149
      %p158 = scmp.eq.s32.totalorder %s28, 0
      %p159 = por %p157, %p158
      %p160 = scmp.ne.s32.totalorder %s148, %s149
      %p161 = scmp.eq.s32.totalorder %s29, 1
      %p162 = por %p160, %p161
      %p164 = scmp.ne.s32.totalorder %s149, %s163
      %p165 = scmp.eq.s32.totalorder %s29, 0
      %p166 = por %p164, %p165
      %s168 = sadd.s32 %s167, 1
      %p171 = scmp.eq.s32.totalorder %s23, 1
      %p172 = scmp.ne.s32.totalorder %s167, %s169
      %p173 = scmp.eq.s32.totalorder %s23, 0
      %p174 = por %p172, %p173
      %p175 = scmp.ne.s32.totalorder %s167, %s169
      %p176 = scmp.eq.s32.totalorder %s28, 1
      %p177 = por %p175, %p176
      %p178 = scmp.ne.s32.totalorder %s169, %s170
      %p179 = scmp.eq.s32.totalorder %s28, 0
      %p180 = por %p178, %p179
      %p181 = scmp.ne.s32.totalorder %s169, %s170
      %p182 = scmp.eq.s32.totalorder %s29, 1
      %p183 = por %p181, %p182
      %p185 = scmp.ne.s32.totalorder %s170, %s184
      %p186 = scmp.eq.s32.totalorder %s29, 0
      %p187 = por %p185, %p186
      %s189 = sadd.s32 %s188, 1
      %p192 = scmp.eq.s32.totalorder %s23, 1
      %p193 = scmp.ne.s32.totalorder %s188, %s190
      %p194 = scmp.eq.s32.totalorder %s23, 0
      %p195 = por %p193, %p194
      %p196 = scmp.ne.s32.totalorder %s188, %s190
      %p197 = scmp.eq.s32.totalorder %s28, 1
      %p198 = por %p196, %p197
      %p199 = scmp.ne.s32.totalorder %s190, %s191
      %p200 = scmp.eq.s32.totalorder %s28, 0
      %p201 = por %p199, %p200
      %p202 = scmp.ne.s32.totalorder %s190, %s191
      %p203 = scmp.eq.s32.totalorder %s29, 1
      %p204 = por %p202, %p203
      %p206 = scmp.ne.s32.totalorder %s191, %s205
      %p207 = scmp.eq.s32.totalorder %s29, 0
      %p208 = por %p206, %p207
      %s210 = sadd.s32 %s209, 1
      %p213 = scmp.eq.s32.totalorder %s23, 1
      %p214 = scmp.ne.s32.totalorder %s209, %s211
      %p215 = scmp.eq.s32.totalorder %s23, 0
      %p216 = por %p214, %p215
      %p217 = scmp.ne.s32.totalorder %s209, %s211
      %p218 = scmp.eq.s32.totalorder %s28, 1
      %p219 = por %p217, %p218
      %p220 = scmp.ne.s32.totalorder %s211, %s212
      %p221 = scmp.eq.s32.totalorder %s28, 0
      %p222 = por %p220, %p221
      %p223 = scmp.ne.s32.totalorder %s211, %s212
      %p224 = scmp.eq.s32.totalorder %s29, 1
      %p225 = por %p223, %p224
      %p227 = scmp.ne.s32.totalorder %s212, %s226
      %p228 = scmp.eq.s32.totalorder %s29, 0
      %p229 = por %p227, %p228
      %s231 = sadd.s32 %s230, 1
      %p234 = scmp.eq.s32.totalorder %s23, 1
      %p235 = scmp.ne.s32.totalorder %s230, %s232
      %p236 = scmp.eq.s32.totalorder %s23, 0
      %p237 = por %p235, %p236
      %p238 = scmp.ne.s32.totalorder %s230, %s232
      %p239 = scmp.eq.s32.totalorder %s28, 1
      %p240 = por %p238, %p239
      %p241 = scmp.ne.s32.totalorder %s232, %s233
      %p242 = scmp.eq.s32.totalorder %s28, 0
      %p243 = por %p241, %p242
      %p244 = scmp.ne.s32.totalorder %s232, %s233
      %p245 = scmp.eq.s32.totalorder %s29, 1
      %p246 = por %p244, %p245
      %p248 = scmp.ne.s32.totalorder %s233, %s247
      %p249 = scmp.eq.s32.totalorder %s29, 0
      %p250 = por %p248, %p249
      %s252 = sadd.s32 %s251, 1
      %p255 = scmp.eq.s32.totalorder %s23, 1
      %p256 = scmp.ne.s32.totalorder %s251, %s253
      %p257 = scmp.eq.s32.totalorder %s23, 0
      %p258 = por %p256, %p257
      %p259 = scmp.ne.s32.totalorder %s251, %s253
      %p260 = scmp.eq.s32.totalorder %s28, 1
      %p261 = por %p259, %p260
      %p262 = scmp.ne.s32.totalorder %s253, %s254
      %p263 = scmp.eq.s32.totalorder %s28, 0
      %p264 = por %p262, %p263
      %p265 = scmp.ne.s32.totalorder %s253, %s254
      %p266 = scmp.eq.s32.totalorder %s29, 1
      %p267 = por %p265, %p266
      %p269 = scmp.ne.s32.totalorder %s254, %s268
      %p270 = scmp.eq.s32.totalorder %s29, 0
      %p271 = por %p269, %p270
      %s273 = sadd.s32 %s272, 1
      %p276 = scmp.eq.s32.totalorder %s23, 1
      %p277 = scmp.ne.s32.totalorder %s272, %s274
      %p278 = scmp.eq.s32.totalorder %s23, 0
      %p279 = por %p277, %p278
      %p280 = scmp.ne.s32.totalorder %s272, %s274
      %p281 = scmp.eq.s32.totalorder %s28, 1
      %p282 = por %p280, %p281
      %p283 = scmp.ne.s32.totalorder %s274, %s275
      %p284 = scmp.eq.s32.totalorder %s28, 0
      %p285 = por %p283, %p284
      %p286 = scmp.ne.s32.totalorder %s274, %s275
      %p287 = scmp.eq.s32.totalorder %s29, 1
      %p288 = por %p286, %p287
      %p290 = scmp.ne.s32.totalorder %s275, %s289
      %p291 = scmp.eq.s32.totalorder %s29, 0
      %p292 = por %p290, %p291
      %s294 = sadd.s32 %s293, 1
      %p297 = scmp.eq.s32.totalorder %s23, 1
      %p298 = scmp.ne.s32.totalorder %s293, %s295
      %p299 = scmp.eq.s32.totalorder %s23, 0
      %p300 = por %p298, %p299
      %p301 = scmp.ne.s32.totalorder %s293, %s295
      %p302 = scmp.eq.s32.totalorder %s28, 1
      %p303 = por %p301, %p302
      %p304 = scmp.ne.s32.totalorder %s295, %s296
      %p305 = scmp.eq.s32.totalorder %s28, 0
      %p306 = por %p304, %p305
      %p307 = scmp.ne.s32.totalorder %s295, %s296
      %p308 = scmp.eq.s32.totalorder %s29, 1
      %p309 = por %p307, %p308
      %p311 = scmp.ne.s32.totalorder %s296, %s310
      %p312 = scmp.eq.s32.totalorder %s29, 0
      %p313 = por %p311, %p312
      %s315 = sadd.s32 %s314, 1
      %p318 = scmp.eq.s32.totalorder %s23, 1
      %p319 = scmp.ne.s32.totalorder %s314, %s316
      %p320 = scmp.eq.s32.totalorder %s23, 0
      %p321 = por %p319, %p320
      %p322 = scmp.ne.s32.totalorder %s314, %s316
      %p323 = scmp.eq.s32.totalorder %s28, 1
      %p324 = por %p322, %p323
      %p325 = scmp.ne.s32.totalorder %s316, %s317
      %p326 = scmp.eq.s32.totalorder %s28, 0
      %p327 = por %p325, %p326
      %p328 = scmp.ne.s32.totalorder %s316, %s317
      %p329 = scmp.eq.s32.totalorder %s29, 1
      %p330 = por %p328, %p329
      %p332 = scmp.ne.s32.totalorder %s317, %s331
      %p333 = scmp.eq.s32.totalorder %s29, 0
      %p334 = por %p332, %p333
      %s335 = ssub.s32 %s23, %s30
      %p336 = scmp.eq.s32.totalorder %s335, 0
      %s338 = sadd.s32 %s337, 1
      %s339 = scalar_select %p336, %s337, %s338
      %p342 = pneg %p336
      %p343 = scmp.eq.s32.totalorder %s23, 1
      %p344 = por %p342, %p343
      %p345 = scmp.ne.s32.totalorder %s337, %s340
      %p346 = scmp.eq.s32.totalorder %s23, 0
      %p347 = por %p345, %p346
      %p348 = scmp.ne.s32.totalorder %s337, %s340
      %p349 = scmp.eq.s32.totalorder %s28, 1
      %p350 = por %p348, %p349
      %p351 = scmp.ne.s32.totalorder %s340, %s341
      %p352 = scmp.eq.s32.totalorder %s28, 0
      %p353 = por %p351, %p352
      %p354 = scmp.ne.s32.totalorder %s340, %s341
      %p355 = scmp.eq.s32.totalorder %s29, 1
      %p356 = por %p354, %p355
      %p358 = scmp.ne.s32.totalorder %s341, %s357
      %p359 = scmp.eq.s32.totalorder %s29, 0
      %p360 = por %p358, %p359
      %p361 = scmp.le.s32.totalorder 1, %s23
      %p362 = scmp.lt.s32.totalorder %s23, 3
      %p363 = pnand %p361, %p362
      %p364 = pneg %p363
      // Predicated region
      $region9: #{roberta_encoder_forward.5} parent=5 // pred_check
        _
      $region10: #{roberta_encoder_forward.5} parent=5 // pred_check_branch
        %366 = sbr.rel (%p363) target = $region12
      $region11: #{roberta_encoder_forward.5} parent=5 // pred_region
        %s367 = ssub.s32 %s23, 1
        // Predicated region
        $region13: #{roberta_encoder_forward.5} parent=11 // pred_check
          %p368 = pneg %p96
        $region14: #{roberta_encoder_forward.5} parent=11 // pred_check_branch
          %370 = sbr.rel (%p368) target = $region16
        $region15: #{roberta_encoder_forward.5} parent=11 // pred_region
          _
        $region16: #{roberta_encoder_forward.5} parent=11 // pred_fallthru
          _
        // Predicated region
        $region17: #{roberta_encoder_forward.5} parent=11 // pred_check
          %p371 = pneg %p117
        $region18: #{roberta_encoder_forward.5} parent=11 // pred_check_branch
          %373 = sbr.rel (%p371) target = $region20
        $region19: #{roberta_encoder_forward.5} parent=11 // pred_region
          _
        $region20: #{roberta_encoder_forward.5} parent=11 // pred_fallthru
          _
        // Predicated region
        $region21: #{roberta_encoder_forward.5} parent=11 // pred_check
          %p374 = pneg %p138
        $region22: #{roberta_encoder_forward.5} parent=11 // pred_check_branch
          %376 = sbr.rel (%p374) target = $region24
        $region23: #{roberta_encoder_forward.5} parent=11 // pred_region
          _
        $region24: #{roberta_encoder_forward.5} parent=11 // pred_fallthru
          _
        // Predicated region
        $region25: #{roberta_encoder_forward.5} parent=11 // pred_check
          %p377 = pneg %p159
        $region26: #{roberta_encoder_forward.5} parent=11 // pred_check_branch
          %379 = sbr.rel (%p377) target = $region28
        $region27: #{roberta_encoder_forward.5} parent=11 // pred_region
          _
        $region28: #{roberta_encoder_forward.5} parent=11 // pred_fallthru
          _
        // Predicated region
        $region29: #{roberta_encoder_forward.5} parent=11 // pred_check
          %p380 = pneg %p180
        $region30: #{roberta_encoder_forward.5} parent=11 // pred_check_branch
          %382 = sbr.rel (%p380) target = $region32
        $region31: #{roberta_encoder_forward.5} parent=11 // pred_region
          _
        $region32: #{roberta_encoder_forward.5} parent=11 // pred_fallthru
          _
        // Predicated region
        $region33: #{roberta_encoder_forward.5} parent=11 // pred_check
          %p383 = pneg %p201
        $region34: #{roberta_encoder_forward.5} parent=11 // pred_check_branch
          %385 = sbr.rel (%p383) target = $region36
        $region35: #{roberta_encoder_forward.5} parent=11 // pred_region
          _
        $region36: #{roberta_encoder_forward.5} parent=11 // pred_fallthru
          _
        // Predicated region
        $region37: #{roberta_encoder_forward.5} parent=11 // pred_check
          %p386 = pneg %p222
        $region38: #{roberta_encoder_forward.5} parent=11 // pred_check_branch
          %388 = sbr.rel (%p386) target = $region40
        $region39: #{roberta_encoder_forward.5} parent=11 // pred_region
          _
        $region40: #{roberta_encoder_forward.5} parent=11 // pred_fallthru
          _
        // Predicated region
        $region41: #{roberta_encoder_forward.5} parent=11 // pred_check
          %p389 = pneg %p243
        $region42: #{roberta_encoder_forward.5} parent=11 // pred_check_branch
          %391 = sbr.rel (%p389) target = $region44
        $region43: #{roberta_encoder_forward.5} parent=11 // pred_region
          _
        $region44: #{roberta_encoder_forward.5} parent=11 // pred_fallthru
          _
        // Predicated region
        $region45: #{roberta_encoder_forward.5} parent=11 // pred_check
          %p392 = pneg %p264
        $region46: #{roberta_encoder_forward.5} parent=11 // pred_check_branch
          %394 = sbr.rel (%p392) target = $region48
        $region47: #{roberta_encoder_forward.5} parent=11 // pred_region
          _
        $region48: #{roberta_encoder_forward.5} parent=11 // pred_fallthru
          _
        // Predicated region
        $region49: #{roberta_encoder_forward.5} parent=11 // pred_check
          %p395 = pneg %p285
        $region50: #{roberta_encoder_forward.5} parent=11 // pred_check_branch
          %397 = sbr.rel (%p395) target = $region52
        $region51: #{roberta_encoder_forward.5} parent=11 // pred_region
          _
        $region52: #{roberta_encoder_forward.5} parent=11 // pred_fallthru
          _
        // Predicated region
        $region53: #{roberta_encoder_forward.5} parent=11 // pred_check
          %p398 = pneg %p306
        $region54: #{roberta_encoder_forward.5} parent=11 // pred_check_branch
          %400 = sbr.rel (%p398) target = $region56
        $region55: #{roberta_encoder_forward.5} parent=11 // pred_region
          _
        $region56: #{roberta_encoder_forward.5} parent=11 // pred_fallthru
          _
        // Predicated region
        $region57: #{roberta_encoder_forward.5} parent=11 // pred_check
          %p401 = pneg %p327
        $region58: #{roberta_encoder_forward.5} parent=11 // pred_check_branch
          %403 = sbr.rel (%p401) target = $region60
        $region59: #{roberta_encoder_forward.5} parent=11 // pred_region
          _
        $region60: #{roberta_encoder_forward.5} parent=11 // pred_fallthru
          _
      $region12: #{roberta_encoder_forward.5} parent=5 // pred_fallthru
        _
      %p404 = scmp.lt.s32.totalorder %s23, 2
      // Predicated region
      $region61: #{roberta_encoder_forward.5} parent=5 // pred_check
        %p405 = pneg %p404
      $region62: #{roberta_encoder_forward.5} parent=5 // pred_check_branch
        %407 = sbr.rel (%p405) target = $region64
      $region63: #{roberta_encoder_forward.5} parent=5 // pred_region
        // Predicated region
        $region65: #{roberta_encoder_forward.5} parent=63 // pred_check
          %p408 = pneg %p43
        $region66: #{roberta_encoder_forward.5} parent=63 // pred_check_branch
          %410 = sbr.rel (%p408) target = $region68
        $region67: #{roberta_encoder_forward.5} parent=63 // pred_region
          %p411 = scmp.lt.s32.totalorder %s23, 1
          %s412 = scalar_select %p411, %s23, 1
          %s413 = smul.addr %s412, 8
          %s414 = scalar_lea.vmem %s0, %s413
        $region68: #{roberta_encoder_forward.5} parent=63 // pred_fallthru
          _
        // Predicated region
        $region69: #{roberta_encoder_forward.5} parent=63 // pred_check
          %p415 = pneg %p69
        $region70: #{roberta_encoder_forward.5} parent=63 // pred_check_branch
          %417 = sbr.rel (%p415) target = $region72
        $region71: #{roberta_encoder_forward.5} parent=63 // pred_region
          %p418 = scmp.lt.s32.totalorder %s23, 1
          %s419 = scalar_select %p418, %s23, 1
          %s420 = scalar_lea.vmem %s1, %s419
        $region72: #{roberta_encoder_forward.5} parent=63 // pred_fallthru
          _
      $region64: #{roberta_encoder_forward.5} parent=5 // pred_fallthru
        _
      %p421 = scmp.le.s32.totalorder 1, %s23
      %p422 = scmp.lt.s32.totalorder %s23, 3
      %p423 = pnand %p421, %p422
      %p424 = pneg %p423
      // Predicated region
      $region73: #{roberta_encoder_forward.5} parent=5 // pred_check
        _
      $region74: #{roberta_encoder_forward.5} parent=5 // pred_check_branch
        %426 = sbr.rel (%p423) target = $region76
      $region75: #{roberta_encoder_forward.5} parent=5 // pred_region
        %s427 = ssub.s32 %s23, 1
        %p428 = scmp.lt.s32.totalorder %s28, 1
        %s429 = scalar_select %p428, %s28, 1
        %s430 = smul.addr %s429, 8
        %s431 = scalar_lea.vmem %s0, %s430
        %p432 = pneg %p49
        %p433 = pneg %p46
        %p434 = scmp.lt.s32.totalorder %s28, 1
        %s435 = scalar_select %p434, %s28, 1
        %s436 = scalar_lea.vmem %s1, %s435
        %p437 = pneg %p75
        %p438 = pneg %p72
        %p439 = pneg %p96
        %p440 = pneg %p93
        %p441 = pneg %p117
        %p442 = pneg %p114
        %p443 = pneg %p138
        %p444 = pneg %p135
        %p445 = pneg %p159
        %p446 = pneg %p156
        %p447 = pneg %p180
        %p448 = pneg %p177
        %p449 = pneg %p201
        %p450 = pneg %p198
        %p451 = pneg %p222
        %p452 = pneg %p219
        %p453 = pneg %p243
        %p454 = pneg %p240
        %p455 = pneg %p264
        %p456 = pneg %p261
        %p457 = pneg %p285
        %p458 = pneg %p282
        %p459 = pneg %p306
        %p460 = pneg %p303
        %p461 = pneg %p327
        %p462 = pneg %p324
        %p463 = pneg %p353
        %p464 = pneg %p350
        %s465 = sand.u32 %s340, 1
        %s466 = scalar_lea.sflag [#allocation3], %s465
        %s467 = sand.u32 %s340, 1
        %s468 = smul.addr %s467, 8
        %s469 = scalar_lea.vmem [#allocation2], %s468
        %p470 = scmp.lt.s32.totalorder %s28, 1
        %s471 = scalar_select %p470, %s28, 1
        %s472 = smul.addr %s471, 8
        %s473 = scalar_lea.vmem %s0, %s472
        %p474 = scmp.lt.s32.totalorder %s28, 1
        %s475 = scalar_select %p474, %s28, 1
        %s476 = scalar_lea.vmem %s1, %s475
        %v478 = vld [vmem:[%s473] sm:$0xff]
        %v479 = vpack.c.bf16 %v478, %v478
        %v480 = vld [vmem:[%s2] sm:$0xf]
        %v481 = vld [vmem:[%s2 + $0x4] sm:$0xf]
        %v482 = vld [vmem:[%s2 + $0x8] sm:$0xf]
        %v483 = vld [vmem:[%s2 + $0xc] sm:$0xf]
        %v484 = vld [vmem:[%s3] sm:$0x1]
        %v486 = vlaneseq
        %v487 = vshrl.u32 %v486, 7
        %v488 = vsub.s32 0, %v487
        %v489 = vrot.slane %v484, %v488
        %v495 = vunpack.c.l.b16 %v480
        %v496 = vunpack.c.l.b16 %v481
        %v497 = vunpack.c.l.b16 %v482
        %v498 = vunpack.c.l.b16 %v483
        %v499 = vpack.c.b16 %v496, %v495
        %v500 = vpack.c.b16 %v498, %v497
        %vm503 = vcmask 261120
        %v505 = vsel %vm503, %v479, 0
        %507 = vmatprep.subr.bf16.mxu0 0
        %508 = vmatpush1.bf16.msra.mxu0 %v499
        %509 = vmatprep.subr.bf16.mxu0 0
        %510 = vmatpush1.bf16.msra.mxu0 %v500
        %511 = vmatprep.subr.bf16.mxu0 0
        %512 = vmatpush1.bf16.msra.mxu0 0
        %513 = vmatprep.subr.bf16.mxu0 0
        %514 = vmatpush1.bf16.msra.mxu0 0
        %515 = vmatprep.subr.bf16.mxu0 0
        %516 = vmatpush1.bf16.msra.mxu0 0
        %517 = vmatprep.subr.bf16.mxu0 0
        %518 = vmatpush1.bf16.msra.mxu0 0
        %519 = vmatprep.subr.bf16.mxu0 0
        %520 = vmatpush1.bf16.msra.mxu0 0
        %521 = vmatprep.subr.bf16.mxu0 0
        %522 = vmatpush1.bf16.msra.mxu0 0
        %523 = vmatprep.subr.bf16.mxu0 0
        %524 = vmatpush1.bf16.msra.mxu0 0
        %525 = vmatprep.subr.bf16.mxu0 0
        %526 = vmatpush1.bf16.msra.mxu0 0
        %527 = vmatprep.subr.bf16.mxu0 0
        %528 = vmatpush1.bf16.msra.mxu0 0
        %529 = vmatprep.subr.bf16.mxu0 0
        %530 = vmatpush1.bf16.msra.mxu0 0
        %531 = vmatprep.subr.bf16.mxu0 0
        %532 = vmatpush1.bf16.msra.mxu0 0
        %533 = vmatprep.subr.bf16.mxu0 0
        %534 = vmatpush1.bf16.msra.mxu0 0
        %535 = vmatprep.subr.bf16.mxu0 0
        %536 = vmatpush1.bf16.msra.mxu0 0
        %537 = vmatprep.subr.bf16.mxu0 0
        %538 = vmatpush1.bf16.msra.mxu0 0
        %539 = vmatprep.mubr.bf16.mxu0 0
        %540 = vmatmul.mubr.bf16.gmra.mrb[0].mxu0 %v505
        %v541 = vpop.f32.mrb[0].mxu0
        %v542 = vadd.f32 %v489, %v541
        %v543 = vpop.f32.mrb[0].mxu0
        %v544 = vpop.f32.mrb[0].mxu0
        %v545 = vpop.f32.mrb[0].mxu0
        %546 = vdwg.mxu0
        %v547 = vmul.f32 %v542, 0.35355338
        %549 = vrot.lane.b32.xlu0 %v547, 120
        %v550 = vpop.permute.xlu0 %549
        %552 = vrot.lane.b32.xlu0 %v547, 112
        %v553 = vpop.permute.xlu0 %552
        %555 = vrot.lane.b32.xlu0 %v547, 104
        %v556 = vpop.permute.xlu0 %555
        %v558 = vcombine.low %v547, %v553
        %v559 = vcombine.high %v547, %v553
        %v561 = vunpack.c.l.s4 1983009808
        %v562 = vunpack.c.0.s8 %v561
        %v563 = vlaneseq
        %v564 = vshrl.u32 %v563, 7
        %v565 = vsub.s32 %v562, %v564
        %v566 = vrot.slane %v558, %v565
        %v568 = vunpack.c.l.s4 1983009808
        %v569 = vunpack.c.0.s8 %v568
        %v570 = vlaneseq
        %v571 = vshrl.u32 %v570, 7
        %v572 = vsub.s32 %v569, %v571
        %v573 = vrot.slane %v559, %v572
        %v574 = vcombine.low %v550, %v556
        %v575 = vcombine.high %v550, %v556
        %v577 = vunpack.c.l.s4 1983009808
        %v578 = vunpack.c.0.s8 %v577
        %v579 = vlaneseq
        %v580 = vshrl.u32 %v579, 7
        %v581 = vsub.s32 %v578, %v580
        %v582 = vrot.slane %v574, %v581
        %v584 = vunpack.c.l.s4 1983009808
        %v585 = vunpack.c.0.s8 %v584
        %v586 = vlaneseq
        %v587 = vshrl.u32 %v586, 7
        %v588 = vsub.s32 %v585, %v587
        %v589 = vrot.slane %v575, %v588
        %v590 = vcombine.low %v566, %v582
        %v591 = vcombine.high %v566, %v582
        %v593 = vunpack.c.l.s4 1934713408
        %v594 = vunpack.c.0.s8 %v593
        %v595 = vlaneseq
        %v596 = vshrl.u32 %v595, 7
        %v597 = vsub.s32 %v594, %v596
        %v598 = vrot.slane %v590, %v597
        %v600 = vunpack.c.l.s4 1934713408
        %v601 = vunpack.c.0.s8 %v600
        %v602 = vlaneseq
        %v603 = vshrl.u32 %v602, 7
        %v604 = vsub.s32 %v601, %v603
        %v605 = vrot.slane %v591, %v604
        %v606 = vcombine.low %v573, %v589
        %v607 = vcombine.high %v573, %v589
        %v609 = vunpack.c.l.s4 1934713408
        %v610 = vunpack.c.0.s8 %v609
        %v611 = vlaneseq
        %v612 = vshrl.u32 %v611, 7
        %v613 = vsub.s32 %v610, %v612
        %v614 = vrot.slane %v606, %v613
        %v616 = vunpack.c.l.s4 1934713408
        %v617 = vunpack.c.0.s8 %v616
        %v618 = vlaneseq
        %v619 = vshrl.u32 %v618, 7
        %v620 = vsub.s32 %v617, %v619
        %v621 = vrot.slane %v607, %v620
        %v622 = vcombine.high %v598, 0.0
        %v623 = vcombine.high %v605, 0.0
        %v624 = vcombine.high %v614, 0.0
        %v625 = vcombine.high %v621, 0.0
        %627 = vrot.lane.b32.xlu0 %v542, 120
        %v628 = vpop.permute.xlu0 %627
        %629 = vrot.lane.b32.xlu0 %v542, 112
        %v630 = vpop.permute.xlu0 %629
        %631 = vrot.lane.b32.xlu0 %v542, 104
        %v632 = vpop.permute.xlu0 %631
        %633 = vrot.lane.b32.xlu0 %v542, 96
        %v634 = vpop.permute.xlu0 %633
        %635 = vrot.lane.b32.xlu0 %v628, 96
        %v636 = vpop.permute.xlu0 %635
        %637 = vrot.lane.b32.xlu0 %v630, 96
        %v638 = vpop.permute.xlu0 %637
        %639 = vrot.lane.b32.xlu0 %v632, 96
        %v640 = vpop.permute.xlu0 %639
        %v645 = vcombine.low %v634, %v638
        %v646 = vcombine.high %v634, %v638
        %v648 = vunpack.c.l.s4 1983009808
        %v649 = vunpack.c.0.s8 %v648
        %v650 = vlaneseq
        %v651 = vshrl.u32 %v650, 7
        %v652 = vsub.s32 %v649, %v651
        %v653 = vrot.slane %v645, %v652
        %v655 = vunpack.c.l.s4 1983009808
        %v656 = vunpack.c.0.s8 %v655
        %v657 = vlaneseq
        %v658 = vshrl.u32 %v657, 7
        %v659 = vsub.s32 %v656, %v658
        %v660 = vrot.slane %v646, %v659
        %v661 = vcombine.low %v636, %v640
        %v662 = vcombine.high %v636, %v640
        %v664 = vunpack.c.l.s4 1983009808
        %v665 = vunpack.c.0.s8 %v664
        %v666 = vlaneseq
        %v667 = vshrl.u32 %v666, 7
        %v668 = vsub.s32 %v665, %v667
        %v669 = vrot.slane %v661, %v668
        %v671 = vunpack.c.l.s4 1983009808
        %v672 = vunpack.c.0.s8 %v671
        %v673 = vlaneseq
        %v674 = vshrl.u32 %v673, 7
        %v675 = vsub.s32 %v672, %v674
        %v676 = vrot.slane %v662, %v675
        %v677 = vcombine.low %v653, %v669
        %v678 = vcombine.high %v653, %v669
        %v680 = vunpack.c.l.s4 1934713408
        %v681 = vunpack.c.0.s8 %v680
        %v682 = vlaneseq
        %v683 = vshrl.u32 %v682, 7
        %v684 = vsub.s32 %v681, %v683
        %v685 = vrot.slane %v677, %v684
        %v687 = vunpack.c.l.s4 1934713408
        %v688 = vunpack.c.0.s8 %v687
        %v689 = vlaneseq
        %v690 = vshrl.u32 %v689, 7
        %v691 = vsub.s32 %v688, %v690
        %v692 = vrot.slane %v678, %v691
        %v693 = vcombine.low %v660, %v676
        %v694 = vcombine.high %v660, %v676
        %v696 = vunpack.c.l.s4 1934713408
        %v697 = vunpack.c.0.s8 %v696
        %v698 = vlaneseq
        %v699 = vshrl.u32 %v698, 7
        %v700 = vsub.s32 %v697, %v699
        %v701 = vrot.slane %v693, %v700
        %v703 = vunpack.c.l.s4 1934713408
        %v704 = vunpack.c.0.s8 %v703
        %v705 = vlaneseq
        %v706 = vshrl.u32 %v705, 7
        %v707 = vsub.s32 %v704, %v706
        %v708 = vrot.slane %v694, %v707
        %v709 = vcombine.high %v685, 0.0
        %v710 = vcombine.high %v692, 0.0
        %v711 = vcombine.high %v701, 0.0
        %v712 = vcombine.high %v708, 0.0
        %713 = vrot.lane.b32.xlu0 %v542, 64
        %v714 = vpop.permute.xlu0 %713
        %715 = vrot.lane.b32.xlu0 %v628, 64
        %v716 = vpop.permute.xlu0 %715
        %717 = vrot.lane.b32.xlu0 %v630, 64
        %v718 = vpop.permute.xlu0 %717
        %719 = vrot.lane.b32.xlu0 %v632, 64
        %v720 = vpop.permute.xlu0 %719
        %v725 = vcombine.low %v714, %v718
        %v726 = vcombine.high %v714, %v718
        %v728 = vunpack.c.l.s4 1983009808
        %v729 = vunpack.c.0.s8 %v728
        %v730 = vlaneseq
        %v731 = vshrl.u32 %v730, 7
        %v732 = vsub.s32 %v729, %v731
        %v733 = vrot.slane %v725, %v732
        %v735 = vunpack.c.l.s4 1983009808
        %v736 = vunpack.c.0.s8 %v735
        %v737 = vlaneseq
        %v738 = vshrl.u32 %v737, 7
        %v739 = vsub.s32 %v736, %v738
        %v740 = vrot.slane %v726, %v739
        %v741 = vcombine.low %v716, %v720
        %v742 = vcombine.high %v716, %v720
        %v744 = vunpack.c.l.s4 1983009808
        %v745 = vunpack.c.0.s8 %v744
        %v746 = vlaneseq
        %v747 = vshrl.u32 %v746, 7
        %v748 = vsub.s32 %v745, %v747
        %v749 = vrot.slane %v741, %v748
        %v751 = vunpack.c.l.s4 1983009808
        %v752 = vunpack.c.0.s8 %v751
        %v753 = vlaneseq
        %v754 = vshrl.u32 %v753, 7
        %v755 = vsub.s32 %v752, %v754
        %v756 = vrot.slane %v742, %v755
        %v757 = vcombine.low %v733, %v749
        %v758 = vcombine.high %v733, %v749
        %v760 = vunpack.c.l.s4 1934713408
        %v761 = vunpack.c.0.s8 %v760
        %v762 = vlaneseq
        %v763 = vshrl.u32 %v762, 7
        %v764 = vsub.s32 %v761, %v763
        %v765 = vrot.slane %v757, %v764
        %v767 = vunpack.c.l.s4 1934713408
        %v768 = vunpack.c.0.s8 %v767
        %v769 = vlaneseq
        %v770 = vshrl.u32 %v769, 7
        %v771 = vsub.s32 %v768, %v770
        %v772 = vrot.slane %v758, %v771
        %v773 = vcombine.low %v740, %v756
        %v774 = vcombine.high %v740, %v756
        %v776 = vunpack.c.l.s4 1934713408
        %v777 = vunpack.c.0.s8 %v776
        %v778 = vlaneseq
        %v779 = vshrl.u32 %v778, 7
        %v780 = vsub.s32 %v777, %v779
        %v781 = vrot.slane %v773, %v780
        %v783 = vunpack.c.l.s4 1934713408
        %v784 = vunpack.c.0.s8 %v783
        %v785 = vlaneseq
        %v786 = vshrl.u32 %v785, 7
        %v787 = vsub.s32 %v784, %v786
        %v788 = vrot.slane %v774, %v787
        %v789 = vcombine.high %v765, 0.0
        %v790 = vcombine.high %v772, 0.0
        %v791 = vcombine.high %v781, 0.0
        %v792 = vcombine.high %v788, 0.0
        %v793 = vpack.c.bf16 %v598, %v598
        %v794 = vpack.c.bf16 %v622, %v622
        %v795 = vpack.c.bf16 %v605, %v605
        %v796 = vpack.c.bf16 %v623, %v623
        %v797 = vpack.c.bf16 %v614, %v614
        %v798 = vpack.c.bf16 %v624, %v624
        %v799 = vpack.c.bf16 %v621, %v621
        %v800 = vpack.c.bf16 %v625, %v625
        %v801 = vpack.c.bf16 %v685, %v685
        %v802 = vpack.c.bf16 %v709, %v709
        %v803 = vpack.c.bf16 %v692, %v692
        %v804 = vpack.c.bf16 %v710, %v710
        %v805 = vpack.c.bf16 %v701, %v701
        %v806 = vpack.c.bf16 %v711, %v711
        %v807 = vpack.c.bf16 %v708, %v708
        %v808 = vpack.c.bf16 %v712, %v712
        %v809 = vld [vmem:[%s476] sm:$0x1]
        %v811 = vlaneseq
        %v812 = vshrl.u32 %v811, 7
        %v813 = vsub.s32 0, %v812
        %v814 = vrot.slane %v809, %v813
        %v816 = vcombine.low %v793, %v797
        %v818 = vunpack.c.l.s4 1983009808
        %v819 = vunpack.c.0.s8 %v818
        %v820 = vlaneseq
        %v821 = vshrl.u32 %v820, 7
        %v822 = vsub.s32 %v819, %v821
        %v823 = vrot.slane %v816, %v822
        %v824 = vcombine.low %v795, %v799
        %v826 = vunpack.c.l.s4 1983009808
        %v827 = vunpack.c.0.s8 %v826
        %v828 = vlaneseq
        %v829 = vshrl.u32 %v828, 7
        %v830 = vsub.s32 %v827, %v829
        %v831 = vrot.slane %v824, %v830
        %v832 = vcombine.low %v823, %v831
        %v834 = vunpack.c.l.s4 1934713408
        %v835 = vunpack.c.0.s8 %v834
        %v836 = vlaneseq
        %v837 = vshrl.u32 %v836, 7
        %v838 = vsub.s32 %v835, %v837
        %v839 = vrot.slane %v832, %v838
        %v840 = vcombine.high %v839, 0
        %v841 = vcombine.low %v794, %v798
        %v843 = vunpack.c.l.s4 1983009808
        %v844 = vunpack.c.0.s8 %v843
        %v845 = vlaneseq
        %v846 = vshrl.u32 %v845, 7
        %v847 = vsub.s32 %v844, %v846
        %v848 = vrot.slane %v841, %v847
        %v849 = vcombine.low %v796, %v800
        %v851 = vunpack.c.l.s4 1983009808
        %v852 = vunpack.c.0.s8 %v851
        %v853 = vlaneseq
        %v854 = vshrl.u32 %v853, 7
        %v855 = vsub.s32 %v852, %v854
        %v856 = vrot.slane %v849, %v855
        %v857 = vcombine.low %v848, %v856
        %v859 = vunpack.c.l.s4 1934713408
        %v860 = vunpack.c.0.s8 %v859
        %v861 = vlaneseq
        %v862 = vshrl.u32 %v861, 7
        %v863 = vsub.s32 %v860, %v862
        %v864 = vrot.slane %v857, %v863
        %v865 = vcombine.high %v864, 0
        %v868 = vpack.i.b16 %v864, %v839
        %v869 = vshrl.u32 %v839, 16
        %v870 = vshrl.u32 %v864, 16
        %v871 = vpack.i.b16 %v870, %v869
        %v874 = vpack.i.b16 %v865, %v840
        %v875 = vshrl.u32 %v840, 16
        %v876 = vshrl.u32 %v865, 16
        %v877 = vpack.i.b16 %v876, %v875
        %878 = vxpose.xlu0.c.b16.start [1/8] %v801, 128
        %879 = vxpose.xlu0.c.b16.cont [2/8] 0, 128
        %880 = vxpose.xlu0.c.b16.cont [3/8] 0, 128
        %881 = vxpose.xlu0.c.b16.cont [4/8] 0, 128
        %882 = vxpose.xlu0.c.b16.cont [5/8] 0, 128
        %883 = vxpose.xlu0.c.b16.cont [6/8] 0, 128
        %884 = vxpose.xlu0.c.b16.cont [7/8] 0, 128
        %885 = vxpose.xlu0.c.b16.end [8/8] 0, 128
        %v886 = vpop.trf.xlu0
        %v887 = vpop.trf.xlu0
        %v888 = vpop.trf.xlu0
        %v889 = vpop.trf.xlu0
        %v890 = vpop.trf.xlu0
        %v891 = vpop.trf.xlu0
        %v892 = vpop.trf.xlu0
        %v893 = vpop.trf.xlu0
        %894 = vxpose.xlu0.c.b16.start [1/8] %v802, 128
        %895 = vxpose.xlu0.c.b16.cont [2/8] 0, 128
        %896 = vxpose.xlu0.c.b16.cont [3/8] 0, 128
        %897 = vxpose.xlu0.c.b16.cont [4/8] 0, 128
        %898 = vxpose.xlu0.c.b16.cont [5/8] 0, 128
        %899 = vxpose.xlu0.c.b16.cont [6/8] 0, 128
        %900 = vxpose.xlu0.c.b16.cont [7/8] 0, 128
        %901 = vxpose.xlu0.c.b16.end [8/8] 0, 128
        %v902 = vpop.trf.xlu0
        %v903 = vpop.trf.xlu0
        %v904 = vpop.trf.xlu0
        %v905 = vpop.trf.xlu0
        %v906 = vpop.trf.xlu0
        %v907 = vpop.trf.xlu0
        %v908 = vpop.trf.xlu0
        %v909 = vpop.trf.xlu0
        %910 = vxpose.xlu0.c.b16.start [1/8] %v803, 128
        %911 = vxpose.xlu0.c.b16.cont [2/8] 0, 128
        %912 = vxpose.xlu0.c.b16.cont [3/8] 0, 128
        %913 = vxpose.xlu0.c.b16.cont [4/8] 0, 128
        %914 = vxpose.xlu0.c.b16.cont [5/8] 0, 128
        %915 = vxpose.xlu0.c.b16.cont [6/8] 0, 128
        %916 = vxpose.xlu0.c.b16.cont [7/8] 0, 128
        %917 = vxpose.xlu0.c.b16.end [8/8] 0, 128
        %v918 = vpop.trf.xlu0
        %v919 = vpop.trf.xlu0
        %v920 = vpop.trf.xlu0
        %v921 = vpop.trf.xlu0
        %v922 = vpop.trf.xlu0
        %v923 = vpop.trf.xlu0
        %v924 = vpop.trf.xlu0
        %v925 = vpop.trf.xlu0
        %926 = vxpose.xlu0.c.b16.start [1/8] %v804, 128
        %927 = vxpose.xlu0.c.b16.cont [2/8] 0, 128
        %928 = vxpose.xlu0.c.b16.cont [3/8] 0, 128
        %929 = vxpose.xlu0.c.b16.cont [4/8] 0, 128
        %930 = vxpose.xlu0.c.b16.cont [5/8] 0, 128
        %931 = vxpose.xlu0.c.b16.cont [6/8] 0, 128
        %932 = vxpose.xlu0.c.b16.cont [7/8] 0, 128
        %933 = vxpose.xlu0.c.b16.end [8/8] 0, 128
        %v934 = vpop.trf.xlu0
        %v935 = vpop.trf.xlu0
        %v936 = vpop.trf.xlu0
        %v937 = vpop.trf.xlu0
        %v938 = vpop.trf.xlu0
        %v939 = vpop.trf.xlu0
        %v940 = vpop.trf.xlu0
        %v941 = vpop.trf.xlu0
        %942 = vxpose.xlu0.c.b16.start [1/8] %v805, 128
        %943 = vxpose.xlu0.c.b16.cont [2/8] 0, 128
        %944 = vxpose.xlu0.c.b16.cont [3/8] 0, 128
        %945 = vxpose.xlu0.c.b16.cont [4/8] 0, 128
        %946 = vxpose.xlu0.c.b16.cont [5/8] 0, 128
        %947 = vxpose.xlu0.c.b16.cont [6/8] 0, 128
        %948 = vxpose.xlu0.c.b16.cont [7/8] 0, 128
        %949 = vxpose.xlu0.c.b16.end [8/8] 0, 128
        %v950 = vpop.trf.xlu0
        %v951 = vpop.trf.xlu0
        %v952 = vpop.trf.xlu0
        %v953 = vpop.trf.xlu0
        %v954 = vpop.trf.xlu0
        %v955 = vpop.trf.xlu0
        %v956 = vpop.trf.xlu0
        %v957 = vpop.trf.xlu0
        %958 = vxpose.xlu0.c.b16.start [1/8] %v806, 128
        %959 = vxpose.xlu0.c.b16.cont [2/8] 0, 128
        %960 = vxpose.xlu0.c.b16.cont [3/8] 0, 128
        %961 = vxpose.xlu0.c.b16.cont [4/8] 0, 128
        %962 = vxpose.xlu0.c.b16.cont [5/8] 0, 128
        %963 = vxpose.xlu0.c.b16.cont [6/8] 0, 128
        %964 = vxpose.xlu0.c.b16.cont [7/8] 0, 128
        %965 = vxpose.xlu0.c.b16.end [8/8] 0, 128
        %v966 = vpop.trf.xlu0
        %v967 = vpop.trf.xlu0
        %v968 = vpop.trf.xlu0
        %v969 = vpop.trf.xlu0
        %v970 = vpop.trf.xlu0
        %v971 = vpop.trf.xlu0
        %v972 = vpop.trf.xlu0
        %v973 = vpop.trf.xlu0
        %974 = vxpose.xlu0.c.b16.start [1/8] %v807, 128
        %975 = vxpose.xlu0.c.b16.cont [2/8] 0, 128
        %976 = vxpose.xlu0.c.b16.cont [3/8] 0, 128
        %977 = vxpose.xlu0.c.b16.cont [4/8] 0, 128
        %978 = vxpose.xlu0.c.b16.cont [5/8] 0, 128
        %979 = vxpose.xlu0.c.b16.cont [6/8] 0, 128
        %980 = vxpose.xlu0.c.b16.cont [7/8] 0, 128
        %981 = vxpose.xlu0.c.b16.end [8/8] 0, 128
        %v982 = vpop.trf.xlu0
        %v983 = vpop.trf.xlu0
        %v984 = vpop.trf.xlu0
        %v985 = vpop.trf.xlu0
        %v986 = vpop.trf.xlu0
        %v987 = vpop.trf.xlu0
        %v988 = vpop.trf.xlu0
        %v989 = vpop.trf.xlu0
        %990 = vxpose.xlu0.c.b16.start [1/8] %v808, 128
        %991 = vxpose.xlu0.c.b16.cont [2/8] 0, 128
        %992 = vxpose.xlu0.c.b16.cont [3/8] 0, 128
        %993 = vxpose.xlu0.c.b16.cont [4/8] 0, 128
        %994 = vxpose.xlu0.c.b16.cont [5/8] 0, 128
        %995 = vxpose.xlu0.c.b16.cont [6/8] 0, 128
        %996 = vxpose.xlu0.c.b16.cont [7/8] 0, 128
        %997 = vxpose.xlu0.c.b16.end [8/8] 0, 128
        %v998 = vpop.trf.xlu0
        %v999 = vpop.trf.xlu0
        %v1000 = vpop.trf.xlu0
        %v1001 = vpop.trf.xlu0
        %v1002 = vpop.trf.xlu0
        %v1003 = vpop.trf.xlu0
        %v1004 = vpop.trf.xlu0
        %v1005 = vpop.trf.xlu0
        %v1006 = vcombine.low %v886, %v950
        %v1008 = vunpack.c.l.s4 1983009808
        %v1009 = vunpack.c.0.s8 %v1008
        %v1010 = vlaneseq
        %v1011 = vshrl.u32 %v1010, 7
        %v1012 = vsub.s32 %v1009, %v1011
        %v1013 = vrot.slane %v1006, %v1012
        %v1014 = vcombine.low %v918, %v982
        %v1016 = vunpack.c.l.s4 1983009808
        %v1017 = vunpack.c.0.s8 %v1016
        %v1018 = vlaneseq
        %v1019 = vshrl.u32 %v1018, 7
        %v1020 = vsub.s32 %v1017, %v1019
        %v1021 = vrot.slane %v1014, %v1020
        %v1022 = vcombine.low %v1013, %v1021
        %v1023 = vcombine.high %v1013, %v1021
        %v1025 = vunpack.c.l.s4 1934713408
        %v1026 = vunpack.c.0.s8 %v1025
        %v1027 = vlaneseq
        %v1028 = vshrl.u32 %v1027, 7
        %v1029 = vsub.s32 %v1026, %v1028
        %v1030 = vrot.slane %v1022, %v1029
        %v1032 = vunpack.c.l.s4 1934713408
        %v1033 = vunpack.c.0.s8 %v1032
        %v1034 = vlaneseq
        %v1035 = vshrl.u32 %v1034, 7
        %v1036 = vsub.s32 %v1033, %v1035
        %v1037 = vrot.slane %v1023, %v1036
        %v1038 = vcombine.high %v1030, 0
        %v1039 = vcombine.high %v1037, 0
        %v1040 = vcombine.low %v902, %v966
        %v1042 = vunpack.c.l.s4 1983009808
        %v1043 = vunpack.c.0.s8 %v1042
        %v1044 = vlaneseq
        %v1045 = vshrl.u32 %v1044, 7
        %v1046 = vsub.s32 %v1043, %v1045
        %v1047 = vrot.slane %v1040, %v1046
        %v1048 = vcombine.low %v934, %v998
        %v1050 = vunpack.c.l.s4 1983009808
        %v1051 = vunpack.c.0.s8 %v1050
        %v1052 = vlaneseq
        %v1053 = vshrl.u32 %v1052, 7
        %v1054 = vsub.s32 %v1051, %v1053
        %v1055 = vrot.slane %v1048, %v1054
        %v1056 = vcombine.low %v1047, %v1055
        %v1057 = vcombine.high %v1047, %v1055
        %v1059 = vunpack.c.l.s4 1934713408
        %v1060 = vunpack.c.0.s8 %v1059
        %v1061 = vlaneseq
        %v1062 = vshrl.u32 %v1061, 7
        %v1063 = vsub.s32 %v1060, %v1062
        %v1064 = vrot.slane %v1056, %v1063
        %v1066 = vunpack.c.l.s4 1934713408
        %v1067 = vunpack.c.0.s8 %v1066
        %v1068 = vlaneseq
        %v1069 = vshrl.u32 %v1068, 7
        %v1070 = vsub.s32 %v1067, %v1069
        %v1071 = vrot.slane %v1057, %v1070
        %v1072 = vcombine.high %v1064, 0
        %v1073 = vcombine.high %v1071, 0
        %v1076 = vpack.i.b16 %v1064, %v1030
        %v1078 = vshrl.u32 %v1030, 16
        %v1079 = vshrl.u32 %v1064, 16
        %v1080 = vpack.i.b16 %v1079, %v1078
        %v1084 = vpack.i.b16 %v1072, %v1038
        %v1086 = vshrl.u32 %v1038, 16
        %v1087 = vshrl.u32 %v1072, 16
        %v1088 = vpack.i.b16 %v1087, %v1086
        %v1092 = vpack.i.b16 %v1071, %v1037
        %v1094 = vshrl.u32 %v1037, 16
        %v1095 = vshrl.u32 %v1071, 16
        %v1096 = vpack.i.b16 %v1095, %v1094
        %v1100 = vpack.i.b16 %v1073, %v1039
        %v1102 = vshrl.u32 %v1039, 16
        %v1103 = vshrl.u32 %v1073, 16
        %v1104 = vpack.i.b16 %v1103, %v1102
        %1106 = vxpose.xlu0.c.b16.start [1/8] %v1076, 128
        %1107 = vxpose.xlu0.c.b16.cont [2/8] 0, 128
        %1108 = vxpose.xlu0.c.b16.cont [3/8] 0, 128
        %1109 = vxpose.xlu0.c.b16.cont [4/8] 0, 128
        %1110 = vxpose.xlu0.c.b16.cont [5/8] 0, 128
        %1111 = vxpose.xlu0.c.b16.cont [6/8] 0, 128
        %1112 = vxpose.xlu0.c.b16.cont [7/8] 0, 128
        %1113 = vxpose.xlu0.c.b16.end [8/8] 0, 128
        %v1114 = vpop.trf.xlu0
        %v1115 = vpop.trf.xlu0
        %v1116 = vpop.trf.xlu0
        %v1117 = vpop.trf.xlu0
        %v1118 = vpop.trf.xlu0
        %v1119 = vpop.trf.xlu0
        %v1120 = vpop.trf.xlu0
        %v1121 = vpop.trf.xlu0
        %1122 = vxpose.xlu0.c.b16.start [1/8] %v1080, 128
        %1123 = vxpose.xlu0.c.b16.cont [2/8] 0, 128
        %1124 = vxpose.xlu0.c.b16.cont [3/8] 0, 128
        %1125 = vxpose.xlu0.c.b16.cont [4/8] 0, 128
        %1126 = vxpose.xlu0.c.b16.cont [5/8] 0, 128
        %1127 = vxpose.xlu0.c.b16.cont [6/8] 0, 128
        %1128 = vxpose.xlu0.c.b16.cont [7/8] 0, 128
        %1129 = vxpose.xlu0.c.b16.end [8/8] 0, 128
        %v1130 = vpop.trf.xlu0
        %v1131 = vpop.trf.xlu0
        %v1132 = vpop.trf.xlu0
        %v1133 = vpop.trf.xlu0
        %v1134 = vpop.trf.xlu0
        %v1135 = vpop.trf.xlu0
        %v1136 = vpop.trf.xlu0
        %v1137 = vpop.trf.xlu0
        %1138 = vxpose.xlu0.c.b16.start [1/8] %v1084, 128
        %1139 = vxpose.xlu0.c.b16.cont [2/8] 0, 128
        %1140 = vxpose.xlu0.c.b16.cont [3/8] 0, 128
        %1141 = vxpose.xlu0.c.b16.cont [4/8] 0, 128
        %1142 = vxpose.xlu0.c.b16.cont [5/8] 0, 128
        %1143 = vxpose.xlu0.c.b16.cont [6/8] 0, 128
        %1144 = vxpose.xlu0.c.b16.cont [7/8] 0, 128
        %1145 = vxpose.xlu0.c.b16.end [8/8] 0, 128
        %v1146 = vpop.trf.xlu0
        %v1147 = vpop.trf.xlu0
        %v1148 = vpop.trf.xlu0
        %v1149 = vpop.trf.xlu0
        %v1150 = vpop.trf.xlu0
        %v1151 = vpop.trf.xlu0
        %v1152 = vpop.trf.xlu0
        %v1153 = vpop.trf.xlu0
        %1154 = vxpose.xlu0.c.b16.start [1/8] %v1088, 128
        %1155 = vxpose.xlu0.c.b16.cont [2/8] 0, 128
        %1156 = vxpose.xlu0.c.b16.cont [3/8] 0, 128
        %1157 = vxpose.xlu0.c.b16.cont [4/8] 0, 128
        %1158 = vxpose.xlu0.c.b16.cont [5/8] 0, 128
        %1159 = vxpose.xlu0.c.b16.cont [6/8] 0, 128
        %1160 = vxpose.xlu0.c.b16.cont [7/8] 0, 128
        %1161 = vxpose.xlu0.c.b16.end [8/8] 0, 128
        %v1162 = vpop.trf.xlu0
        %v1163 = vpop.trf.xlu0
        %v1164 = vpop.trf.xlu0
        %v1165 = vpop.trf.xlu0
        %v1166 = vpop.trf.xlu0
        %v1167 = vpop.trf.xlu0
        %v1168 = vpop.trf.xlu0
        %v1169 = vpop.trf.xlu0
        %1170 = vxpose.xlu0.c.b16.start [1/8] %v1092, 128
        %1171 = vxpose.xlu0.c.b16.cont [2/8] 0, 128
        %1172 = vxpose.xlu0.c.b16.cont [3/8] 0, 128
        %1173 = vxpose.xlu0.c.b16.cont [4/8] 0, 128
        %1174 = vxpose.xlu0.c.b16.cont [5/8] 0, 128
        %1175 = vxpose.xlu0.c.b16.cont [6/8] 0, 128
        %1176 = vxpose.xlu0.c.b16.cont [7/8] 0, 128
        %1177 = vxpose.xlu0.c.b16.end [8/8] 0, 128
        %v1178 = vpop.trf.xlu0
        %v1179 = vpop.trf.xlu0
        %v1180 = vpop.trf.xlu0
        %v1181 = vpop.trf.xlu0
        %v1182 = vpop.trf.xlu0
        %v1183 = vpop.trf.xlu0
        %v1184 = vpop.trf.xlu0
        %v1185 = vpop.trf.xlu0
        %1186 = vxpose.xlu0.c.b16.start [1/8] %v1096, 128
        %1187 = vxpose.xlu0.c.b16.cont [2/8] 0, 128
        %1188 = vxpose.xlu0.c.b16.cont [3/8] 0, 128
        %1189 = vxpose.xlu0.c.b16.cont [4/8] 0, 128
        %1190 = vxpose.xlu0.c.b16.cont [5/8] 0, 128
        %1191 = vxpose.xlu0.c.b16.cont [6/8] 0, 128
        %1192 = vxpose.xlu0.c.b16.cont [7/8] 0, 128
        %1193 = vxpose.xlu0.c.b16.end [8/8] 0, 128
        %v1194 = vpop.trf.xlu0
        %v1195 = vpop.trf.xlu0
        %v1196 = vpop.trf.xlu0
        %v1197 = vpop.trf.xlu0
        %v1198 = vpop.trf.xlu0
        %v1199 = vpop.trf.xlu0
        %v1200 = vpop.trf.xlu0
        %v1201 = vpop.trf.xlu0
        %1202 = vxpose.xlu0.c.b16.start [1/8] %v1100, 128
        %1203 = vxpose.xlu0.c.b16.cont [2/8] 0, 128
        %1204 = vxpose.xlu0.c.b16.cont [3/8] 0, 128
        %1205 = vxpose.xlu0.c.b16.cont [4/8] 0, 128
        %1206 = vxpose.xlu0.c.b16.cont [5/8] 0, 128
        %1207 = vxpose.xlu0.c.b16.cont [6/8] 0, 128
        %1208 = vxpose.xlu0.c.b16.cont [7/8] 0, 128
        %1209 = vxpose.xlu0.c.b16.end [8/8] 0, 128
        %v1210 = vpop.trf.xlu0
        %v1211 = vpop.trf.xlu0
        %v1212 = vpop.trf.xlu0
        %v1213 = vpop.trf.xlu0
        %v1214 = vpop.trf.xlu0
        %v1215 = vpop.trf.xlu0
        %v1216 = vpop.trf.xlu0
        %v1217 = vpop.trf.xlu0
        %1218 = vxpose.xlu0.c.b16.start [1/8] %v1104, 128
        %1219 = vxpose.xlu0.c.b16.cont [2/8] 0, 128
        %1220 = vxpose.xlu0.c.b16.cont [3/8] 0, 128
        %1221 = vxpose.xlu0.c.b16.cont [4/8] 0, 128
        %1222 = vxpose.xlu0.c.b16.cont [5/8] 0, 128
        %1223 = vxpose.xlu0.c.b16.cont [6/8] 0, 128
        %1224 = vxpose.xlu0.c.b16.cont [7/8] 0, 128
        %1225 = vxpose.xlu0.c.b16.end [8/8] 0, 128
        %v1226 = vpop.trf.xlu0
        %v1227 = vpop.trf.xlu0
        %v1228 = vpop.trf.xlu0
        %v1229 = vpop.trf.xlu0
        %v1230 = vpop.trf.xlu0
        %v1231 = vpop.trf.xlu0
        %v1232 = vpop.trf.xlu0
        %v1233 = vpop.trf.xlu0
        %v1234 = vcombine.low %v1114, %v1178
        %v1236 = vunpack.c.l.s4 1983009808
        %v1237 = vunpack.c.0.s8 %v1236
        %v1238 = vlaneseq
        %v1239 = vshrl.u32 %v1238, 7
        %v1240 = vsub.s32 %v1237, %v1239
        %v1241 = vrot.slane %v1234, %v1240
        %v1242 = vcombine.low %v1146, %v1210
        %v1244 = vunpack.c.l.s4 1983009808
        %v1245 = vunpack.c.0.s8 %v1244
        %v1246 = vlaneseq
        %v1247 = vshrl.u32 %v1246, 7
        %v1248 = vsub.s32 %v1245, %v1247
        %v1249 = vrot.slane %v1242, %v1248
        %v1250 = vcombine.low %v1241, %v1249
        %v1252 = vunpack.c.l.s4 1934713408
        %v1253 = vunpack.c.0.s8 %v1252
        %v1254 = vlaneseq
        %v1255 = vshrl.u32 %v1254, 7
        %v1256 = vsub.s32 %v1253, %v1255
        %v1257 = vrot.slane %v1250, %v1256
        %v1258 = vcombine.high %v1257, 0
        %v1259 = vcombine.low %v1130, %v1194
        %v1261 = vunpack.c.l.s4 1983009808
        %v1262 = vunpack.c.0.s8 %v1261
        %v1263 = vlaneseq
        %v1264 = vshrl.u32 %v1263, 7
        %v1265 = vsub.s32 %v1262, %v1264
        %v1266 = vrot.slane %v1259, %v1265
        %v1267 = vcombine.low %v1162, %v1226
        %v1269 = vunpack.c.l.s4 1983009808
        %v1270 = vunpack.c.0.s8 %v1269
        %v1271 = vlaneseq
        %v1272 = vshrl.u32 %v1271, 7
        %v1273 = vsub.s32 %v1270, %v1272
        %v1274 = vrot.slane %v1267, %v1273
        %v1275 = vcombine.low %v1266, %v1274
        %v1277 = vunpack.c.l.s4 1934713408
        %v1278 = vunpack.c.0.s8 %v1277
        %v1279 = vlaneseq
        %v1280 = vshrl.u32 %v1279, 7
        %v1281 = vsub.s32 %v1278, %v1280
        %v1282 = vrot.slane %v1275, %v1281
        %v1283 = vcombine.high %v1282, 0
        %v1286 = vpack.i.b16 %v1282, %v1257
        %v1287 = vshrl.u32 %v1257, 16
        %v1288 = vshrl.u32 %v1282, 16
        %v1289 = vpack.i.b16 %v1288, %v1287
        %v1292 = vpack.i.b16 %v1283, %v1258
        %v1293 = vshrl.u32 %v1258, 16
        %v1294 = vshrl.u32 %v1283, 16
        %v1295 = vpack.i.b16 %v1294, %v1293
        %vm1296 = vcmask 64512
        %v1298 = vsel %vm1296, %v868, 0
        %vm1300 = vcmask 1043456
        %v1302 = vsel %vm1300, %v1286, 0
        %1304 = vmatprep.subr.bf16.mxu0 0
        %1305 = vmatpush1.bf16.msra.mxu0 %v1302
        %1306 = vmatprep.subr.bf16.mxu0 0
        %1307 = vmatpush1.bf16.msra.mxu0 0
        %1308 = vmatprep.subr.bf16.mxu0 0
        %1309 = vmatpush1.bf16.msra.mxu0 0
        %1310 = vmatprep.subr.bf16.mxu0 0
        %1311 = vmatpush1.bf16.msra.mxu0 0
        %1312 = vmatprep.subr.bf16.mxu0 0
        %1313 = vmatpush1.bf16.msra.mxu0 0
        %1314 = vmatprep.subr.bf16.mxu0 0
        %1315 = vmatpush1.bf16.msra.mxu0 0
        %1316 = vmatprep.subr.bf16.mxu0 0
        %1317 = vmatpush1.bf16.msra.mxu0 0
        %1318 = vmatprep.subr.bf16.mxu0 0
        %1319 = vmatpush1.bf16.msra.mxu0 0
        %1320 = vmatprep.subr.bf16.mxu0 0
        %1321 = vmatpush1.bf16.msra.mxu0 0
        %1322 = vmatprep.subr.bf16.mxu0 0
        %1323 = vmatpush1.bf16.msra.mxu0 0
        %1324 = vmatprep.subr.bf16.mxu0 0
        %1325 = vmatpush1.bf16.msra.mxu0 0
        %1326 = vmatprep.subr.bf16.mxu0 0
        %1327 = vmatpush1.bf16.msra.mxu0 0
        %1328 = vmatprep.subr.bf16.mxu0 0
        %1329 = vmatpush1.bf16.msra.mxu0 0
        %1330 = vmatprep.subr.bf16.mxu0 0
        %1331 = vmatpush1.bf16.msra.mxu0 0
        %1332 = vmatprep.subr.bf16.mxu0 0
        %1333 = vmatpush1.bf16.msra.mxu0 0
        %1334 = vmatprep.subr.bf16.mxu0 0
        %1335 = vmatpush1.bf16.msra.mxu0 0
        %1336 = vmatprep.mubr.bf16.mxu0 0
        %1337 = vmatmul.mubr.bf16.gmra.mrb[0].mxu0 %v1298
        %v1338 = vpop.f32.mrb[0].mxu0
        %v1339 = vadd.f32 %v814, %v1338
        %v1340 = vpop.f32.mrb[0].mxu0
        %v1341 = vpop.f32.mrb[0].mxu0
        %v1342 = vpop.f32.mrb[0].mxu0
        %1343 = vdwg.mxu0
        %v1345 = vsel %vm1296, %v871, 0
        %v1348 = vsel %vm1300, %v1289, 0
        %1350 = vmatprep.subr.bf16.mxu0 0
        %1351 = vmatpush1.bf16.msra.mxu0 %v1348
        %1352 = vmatprep.subr.bf16.mxu0 0
        %1353 = vmatpush1.bf16.msra.mxu0 0
        %1354 = vmatprep.subr.bf16.mxu0 0
        %1355 = vmatpush1.bf16.msra.mxu0 0
        %1356 = vmatprep.subr.bf16.mxu0 0
        %1357 = vmatpush1.bf16.msra.mxu0 0
        %1358 = vmatprep.subr.bf16.mxu0 0
        %1359 = vmatpush1.bf16.msra.mxu0 0
        %1360 = vmatprep.subr.bf16.mxu0 0
        %1361 = vmatpush1.bf16.msra.mxu0 0
        %1362 = vmatprep.subr.bf16.mxu0 0
        %1363 = vmatpush1.bf16.msra.mxu0 0
        %1364 = vmatprep.subr.bf16.mxu0 0
        %1365 = vmatpush1.bf16.msra.mxu0 0
        %1366 = vmatprep.subr.bf16.mxu0 0
        %1367 = vmatpush1.bf16.msra.mxu0 0
        %1368 = vmatprep.subr.bf16.mxu0 0
        %1369 = vmatpush1.bf16.msra.mxu0 0
        %1370 = vmatprep.subr.bf16.mxu0 0
        %1371 = vmatpush1.bf16.msra.mxu0 0
        %1372 = vmatprep.subr.bf16.mxu0 0
        %1373 = vmatpush1.bf16.msra.mxu0 0
        %1374 = vmatprep.subr.bf16.mxu0 0
        %1375 = vmatpush1.bf16.msra.mxu0 0
        %1376 = vmatprep.subr.bf16.mxu0 0
        %1377 = vmatpush1.bf16.msra.mxu0 0
        %1378 = vmatprep.subr.bf16.mxu0 0
        %1379 = vmatpush1.bf16.msra.mxu0 0
        %1380 = vmatprep.subr.bf16.mxu0 0
        %1381 = vmatpush1.bf16.msra.mxu0 0
        %1382 = vmatprep.mubr.bf16.mxu0 0
        %1383 = vmatmul.mubr.bf16.gmra.mrb[0].mxu0 %v1345
        %v1384 = vpop.f32.mrb[0].mxu0
        %v1385 = vadd.f32 %v814, %v1384
        %v1386 = vpop.f32.mrb[0].mxu0
        %v1387 = vpop.f32.mrb[0].mxu0
        %v1388 = vpop.f32.mrb[0].mxu0
        %1389 = vdwg.mxu0
        %v1391 = vsel %vm1296, %v874, 0
        %v1394 = vsel %vm1300, %v1292, 0
        %1396 = vmatprep.subr.bf16.mxu0 0
        %1397 = vmatpush1.bf16.msra.mxu0 %v1394
        %1398 = vmatprep.subr.bf16.mxu0 0
        %1399 = vmatpush1.bf16.msra.mxu0 0
        %1400 = vmatprep.subr.bf16.mxu0 0
        %1401 = vmatpush1.bf16.msra.mxu0 0
        %1402 = vmatprep.subr.bf16.mxu0 0
        %1403 = vmatpush1.bf16.msra.mxu0 0
        %1404 = vmatprep.subr.bf16.mxu0 0
        %1405 = vmatpush1.bf16.msra.mxu0 0
        %1406 = vmatprep.subr.bf16.mxu0 0
        %1407 = vmatpush1.bf16.msra.mxu0 0
        %1408 = vmatprep.subr.bf16.mxu0 0
        %1409 = vmatpush1.bf16.msra.mxu0 0
        %1410 = vmatprep.subr.bf16.mxu0 0
        %1411 = vmatpush1.bf16.msra.mxu0 0
        %1412 = vmatprep.subr.bf16.mxu0 0
        %1413 = vmatpush1.bf16.msra.mxu0 0
        %1414 = vmatprep.subr.bf16.mxu0 0
        %1415 = vmatpush1.bf16.msra.mxu0 0
        %1416 = vmatprep.subr.bf16.mxu0 0
        %1417 = vmatpush1.bf16.msra.mxu0 0
        %1418 = vmatprep.subr.bf16.mxu0 0
        %1419 = vmatpush1.bf16.msra.mxu0 0
        %1420 = vmatprep.subr.bf16.mxu0 0
        %1421 = vmatpush1.bf16.msra.mxu0 0
        %1422 = vmatprep.subr.bf16.mxu0 0
        %1423 = vmatpush1.bf16.msra.mxu0 0
        %1424 = vmatprep.subr.bf16.mxu0 0
        %1425 = vmatpush1.bf16.msra.mxu0 0
        %1426 = vmatprep.subr.bf16.mxu0 0
        %1427 = vmatpush1.bf16.msra.mxu0 0
        %1428 = vmatprep.mubr.bf16.mxu0 0
        %1429 = vmatmul.mubr.bf16.gmra.mrb[0].mxu0 %v1391
        %v1430 = vpop.f32.mrb[0].mxu0
        %v1431 = vadd.f32 %v814, %v1430
        %v1432 = vpop.f32.mrb[0].mxu0
        %v1433 = vpop.f32.mrb[0].mxu0
        %v1434 = vpop.f32.mrb[0].mxu0
        %1435 = vdwg.mxu0
        %v1437 = vsel %vm1296, %v877, 0
        %v1440 = vsel %vm1300, %v1295, 0
        %1442 = vmatprep.subr.bf16.mxu0 0
        %1443 = vmatpush1.bf16.msra.mxu0 %v1440
        %1444 = vmatprep.subr.bf16.mxu0 0
        %1445 = vmatpush1.bf16.msra.mxu0 0
        %1446 = vmatprep.subr.bf16.mxu0 0
        %1447 = vmatpush1.bf16.msra.mxu0 0
        %1448 = vmatprep.subr.bf16.mxu0 0
        %1449 = vmatpush1.bf16.msra.mxu0 0
        %1450 = vmatprep.subr.bf16.mxu0 0
        %1451 = vmatpush1.bf16.msra.mxu0 0
        %1452 = vmatprep.subr.bf16.mxu0 0
        %1453 = vmatpush1.bf16.msra.mxu0 0
        %1454 = vmatprep.subr.bf16.mxu0 0
        %1455 = vmatpush1.bf16.msra.mxu0 0
        %1456 = vmatprep.subr.bf16.mxu0 0
        %1457 = vmatpush1.bf16.msra.mxu0 0
        %1458 = vmatprep.subr.bf16.mxu0 0
        %1459 = vmatpush1.bf16.msra.mxu0 0
        %1460 = vmatprep.subr.bf16.mxu0 0
        %1461 = vmatpush1.bf16.msra.mxu0 0
        %1462 = vmatprep.subr.bf16.mxu0 0
        %1463 = vmatpush1.bf16.msra.mxu0 0
        %1464 = vmatprep.subr.bf16.mxu0 0
        %1465 = vmatpush1.bf16.msra.mxu0 0
        %1466 = vmatprep.subr.bf16.mxu0 0
        %1467 = vmatpush1.bf16.msra.mxu0 0
        %1468 = vmatprep.subr.bf16.mxu0 0
        %1469 = vmatpush1.bf16.msra.mxu0 0
        %1470 = vmatprep.subr.bf16.mxu0 0
        %1471 = vmatpush1.bf16.msra.mxu0 0
        %1472 = vmatprep.subr.bf16.mxu0 0
        %1473 = vmatpush1.bf16.msra.mxu0 0
        %1474 = vmatprep.mubr.bf16.mxu0 0
        %1475 = vmatmul.mubr.bf16.gmra.mrb[0].mxu0 %v1437
        %v1476 = vpop.f32.mrb[0].mxu0
        %v1477 = vadd.f32 %v814, %v1476
        %v1478 = vpop.f32.mrb[0].mxu0
        %v1479 = vpop.f32.mrb[0].mxu0
        %v1480 = vpop.f32.mrb[0].mxu0
        %1481 = vdwg.mxu0
        %v1482 = vsel %vm1296, %v1339, -inf
        %1483 = vmax.xlane.f32.xlu0 %v1482
        %v1484 = vpop.xlane.xlu0 %1483
        %v1485 = vsel %vm1296, %v1385, -inf
        %1486 = vmax.xlane.f32.xlu0 %v1485
        %v1487 = vpop.xlane.xlu0 %1486
        %v1488 = vsel %vm1296, %v1431, -inf
        %1489 = vmax.xlane.f32.xlu0 %v1488
        %v1490 = vpop.xlane.xlu0 %1489
        %v1491 = vsel %vm1296, %v1477, -inf
        %1492 = vmax.xlane.f32.xlu0 %v1491
        %v1493 = vpop.xlane.xlu0 %1492
        %v1494 = vsub.f32 %v1339, %v1484
        %v1495 = vsub.f32 %v1385, %v1487
        %v1496 = vsub.f32 %v1431, %v1490
        %v1497 = vsub.f32 %v1477, %v1493
        %v1498 = vmul.f32 %v1494, 1.442695
        %v1499 = vpow.pop %v1498
        %v1500 = vmul.f32 %v1495, 1.442695
        %v1501 = vpow.pop %v1500
        %v1502 = vmul.f32 %v1496, 1.442695
        %v1503 = vpow.pop %v1502
        %v1504 = vmul.f32 %v1497, 1.442695
        %v1505 = vpow.pop %v1504
        %v1506 = vsel %vm1296, %v1499, 0.0
        %1507 = vadd.xlane.f32.xlu0 %v1506
        %v1508 = vpop.xlane.xlu0 %1507
        %v1509 = vsel %vm1296, %v1501, 0.0
        %1510 = vadd.xlane.f32.xlu0 %v1509
        %v1511 = vpop.xlane.xlu0 %1510
        %v1512 = vsel %vm1296, %v1503, 0.0
        %1513 = vadd.xlane.f32.xlu0 %v1512
        %v1514 = vpop.xlane.xlu0 %1513
        %v1515 = vsel %vm1296, %v1505, 0.0
        %1516 = vadd.xlane.f32.xlu0 %v1515
        %v1517 = vpop.xlane.xlu0 %1516
        %v1518 = vrcp.pop %v1508
        %v1519 = vrcp.pop %v1511
        %v1520 = vrcp.pop %v1514
        %v1521 = vrcp.pop %v1517
        %v1522 = vmul.f32 %v1499, %v1518
        %v1523 = vmul.f32 %v1501, %v1519
        %v1524 = vmul.f32 %v1503, %v1520
        %v1525 = vmul.f32 %v1505, %v1521
        %v1526 = vpack.c.bf16 %v1522, %v1522
        %v1527 = vpack.c.bf16 %v1523, %v1523
        %v1528 = vpack.c.bf16 %v1524, %v1524
        %v1529 = vpack.c.bf16 %v1525, %v1525
        %v1530 = vpack.c.bf16 %v765, %v765
        %v1531 = vpack.c.bf16 %v789, %v789
        %v1532 = vpack.c.bf16 %v772, %v772
        %v1533 = vpack.c.bf16 %v790, %v790
        %v1534 = vpack.c.bf16 %v781, %v781
        %v1535 = vpack.c.bf16 %v791, %v791
        %v1536 = vpack.c.bf16 %v788, %v788
        %v1537 = vpack.c.bf16 %v792, %v792
        %1538 = vxpose.xlu0.c.b16.start [1/8] %v1530, 128
        %1539 = vxpose.xlu0.c.b16.cont [2/8] 0, 128
        %1540 = vxpose.xlu0.c.b16.cont [3/8] 0, 128
        %1541 = vxpose.xlu0.c.b16.cont [4/8] 0, 128
        %1542 = vxpose.xlu0.c.b16.cont [5/8] 0, 128
        %1543 = vxpose.xlu0.c.b16.cont [6/8] 0, 128
        %1544 = vxpose.xlu0.c.b16.cont [7/8] 0, 128
        %1545 = vxpose.xlu0.c.b16.end [8/8] 0, 128
        %v1546 = vpop.trf.xlu0
        %v1547 = vpop.trf.xlu0
        %v1548 = vpop.trf.xlu0
        %v1549 = vpop.trf.xlu0
        %v1550 = vpop.trf.xlu0
        %v1551 = vpop.trf.xlu0
        %v1552 = vpop.trf.xlu0
        %v1553 = vpop.trf.xlu0
        %1554 = vxpose.xlu0.c.b16.start [1/8] %v1531, 128
        %1555 = vxpose.xlu0.c.b16.cont [2/8] 0, 128
        %1556 = vxpose.xlu0.c.b16.cont [3/8] 0, 128
        %1557 = vxpose.xlu0.c.b16.cont [4/8] 0, 128
        %1558 = vxpose.xlu0.c.b16.cont [5/8] 0, 128
        %1559 = vxpose.xlu0.c.b16.cont [6/8] 0, 128
        %1560 = vxpose.xlu0.c.b16.cont [7/8] 0, 128
        %1561 = vxpose.xlu0.c.b16.end [8/8] 0, 128
        %v1562 = vpop.trf.xlu0
        %v1563 = vpop.trf.xlu0
        %v1564 = vpop.trf.xlu0
        %v1565 = vpop.trf.xlu0
        %v1566 = vpop.trf.xlu0
        %v1567 = vpop.trf.xlu0
        %v1568 = vpop.trf.xlu0
        %v1569 = vpop.trf.xlu0
        %1570 = vxpose.xlu0.c.b16.start [1/8] %v1532, 128
        %1571 = vxpose.xlu0.c.b16.cont [2/8] 0, 128
        %1572 = vxpose.xlu0.c.b16.cont [3/8] 0, 128
        %1573 = vxpose.xlu0.c.b16.cont [4/8] 0, 128
        %1574 = vxpose.xlu0.c.b16.cont [5/8] 0, 128
        %1575 = vxpose.xlu0.c.b16.cont [6/8] 0, 128
        %1576 = vxpose.xlu0.c.b16.cont [7/8] 0, 128
        %1577 = vxpose.xlu0.c.b16.end [8/8] 0, 128
        %v1578 = vpop.trf.xlu0
        %v1579 = vpop.trf.xlu0
        %v1580 = vpop.trf.xlu0
        %v1581 = vpop.trf.xlu0
        %v1582 = vpop.trf.xlu0
        %v1583 = vpop.trf.xlu0
        %v1584 = vpop.trf.xlu0
        %v1585 = vpop.trf.xlu0
        %1586 = vxpose.xlu0.c.b16.start [1/8] %v1533, 128
        %1587 = vxpose.xlu0.c.b16.cont [2/8] 0, 128
        %1588 = vxpose.xlu0.c.b16.cont [3/8] 0, 128
        %1589 = vxpose.xlu0.c.b16.cont [4/8] 0, 128
        %1590 = vxpose.xlu0.c.b16.cont [5/8] 0, 128
        %1591 = vxpose.xlu0.c.b16.cont [6/8] 0, 128
        %1592 = vxpose.xlu0.c.b16.cont [7/8] 0, 128
        %1593 = vxpose.xlu0.c.b16.end [8/8] 0, 128
        %v1594 = vpop.trf.xlu0
        %v1595 = vpop.trf.xlu0
        %v1596 = vpop.trf.xlu0
        %v1597 = vpop.trf.xlu0
        %v1598 = vpop.trf.xlu0
        %v1599 = vpop.trf.xlu0
        %v1600 = vpop.trf.xlu0
        %v1601 = vpop.trf.xlu0
        %1602 = vxpose.xlu0.c.b16.start [1/8] %v1534, 128
        %1603 = vxpose.xlu0.c.b16.cont [2/8] 0, 128
        %1604 = vxpose.xlu0.c.b16.cont [3/8] 0, 128
        %1605 = vxpose.xlu0.c.b16.cont [4/8] 0, 128
        %1606 = vxpose.xlu0.c.b16.cont [5/8] 0, 128
        %1607 = vxpose.xlu0.c.b16.cont [6/8] 0, 128
        %1608 = vxpose.xlu0.c.b16.cont [7/8] 0, 128
        %1609 = vxpose.xlu0.c.b16.end [8/8] 0, 128
        %v1610 = vpop.trf.xlu0
        %v1611 = vpop.trf.xlu0
        %v1612 = vpop.trf.xlu0
        %v1613 = vpop.trf.xlu0
        %v1614 = vpop.trf.xlu0
        %v1615 = vpop.trf.xlu0
        %v1616 = vpop.trf.xlu0
        %v1617 = vpop.trf.xlu0
        %1618 = vxpose.xlu0.c.b16.start [1/8] %v1535, 128
        %1619 = vxpose.xlu0.c.b16.cont [2/8] 0, 128
        %1620 = vxpose.xlu0.c.b16.cont [3/8] 0, 128
        %1621 = vxpose.xlu0.c.b16.cont [4/8] 0, 128
        %1622 = vxpose.xlu0.c.b16.cont [5/8] 0, 128
        %1623 = vxpose.xlu0.c.b16.cont [6/8] 0, 128
        %1624 = vxpose.xlu0.c.b16.cont [7/8] 0, 128
        %1625 = vxpose.xlu0.c.b16.end [8/8] 0, 128
        %v1626 = vpop.trf.xlu0
        %v1627 = vpop.trf.xlu0
        %v1628 = vpop.trf.xlu0
        %v1629 = vpop.trf.xlu0
        %v1630 = vpop.trf.xlu0
        %v1631 = vpop.trf.xlu0
        %v1632 = vpop.trf.xlu0
        %v1633 = vpop.trf.xlu0
        %1634 = vxpose.xlu0.c.b16.start [1/8] %v1536, 128
        %1635 = vxpose.xlu0.c.b16.cont [2/8] 0, 128
        %1636 = vxpose.xlu0.c.b16.cont [3/8] 0, 128
        %1637 = vxpose.xlu0.c.b16.cont [4/8] 0, 128
        %1638 = vxpose.xlu0.c.b16.cont [5/8] 0, 128
        %1639 = vxpose.xlu0.c.b16.cont [6/8] 0, 128
        %1640 = vxpose.xlu0.c.b16.cont [7/8] 0, 128
        %1641 = vxpose.xlu0.c.b16.end [8/8] 0, 128
        %v1642 = vpop.trf.xlu0
        %v1643 = vpop.trf.xlu0
        %v1644 = vpop.trf.xlu0
        %v1645 = vpop.trf.xlu0
        %v1646 = vpop.trf.xlu0
        %v1647 = vpop.trf.xlu0
        %v1648 = vpop.trf.xlu0
        %v1649 = vpop.trf.xlu0
        %1650 = vxpose.xlu0.c.b16.start [1/8] %v1537, 128
        %1651 = vxpose.xlu0.c.b16.cont [2/8] 0, 128
        %1652 = vxpose.xlu0.c.b16.cont [3/8] 0, 128
        %1653 = vxpose.xlu0.c.b16.cont [4/8] 0, 128
        %1654 = vxpose.xlu0.c.b16.cont [5/8] 0, 128
        %1655 = vxpose.xlu0.c.b16.cont [6/8] 0, 128
        %1656 = vxpose.xlu0.c.b16.cont [7/8] 0, 128
        %1657 = vxpose.xlu0.c.b16.end [8/8] 0, 128
        %v1658 = vpop.trf.xlu0
        %v1659 = vpop.trf.xlu0
        %v1660 = vpop.trf.xlu0
        %v1661 = vpop.trf.xlu0
        %v1662 = vpop.trf.xlu0
        %v1663 = vpop.trf.xlu0
        %v1664 = vpop.trf.xlu0
        %v1665 = vpop.trf.xlu0
        %v1666 = vcombine.low %v1546, %v1610
        %v1668 = vunpack.c.l.s4 1983009808
        %v1669 = vunpack.c.0.s8 %v1668
        %v1670 = vlaneseq
        %v1671 = vshrl.u32 %v1670, 7
        %v1672 = vsub.s32 %v1669, %v1671
        %v1673 = vrot.slane %v1666, %v1672
        %v1674 = vcombine.low %v1578, %v1642
        %v1676 = vunpack.c.l.s4 1983009808
        %v1677 = vunpack.c.0.s8 %v1676
        %v1678 = vlaneseq
        %v1679 = vshrl.u32 %v1678, 7
        %v1680 = vsub.s32 %v1677, %v1679
        %v1681 = vrot.slane %v1674, %v1680
        %v1682 = vcombine.low %v1673, %v1681
        %v1683 = vcombine.high %v1673, %v1681
        %v1685 = vunpack.c.l.s4 1934713408
        %v1686 = vunpack.c.0.s8 %v1685
        %v1687 = vlaneseq
        %v1688 = vshrl.u32 %v1687, 7
        %v1689 = vsub.s32 %v1686, %v1688
        %v1690 = vrot.slane %v1682, %v1689
        %v1692 = vunpack.c.l.s4 1934713408
        %v1693 = vunpack.c.0.s8 %v1692
        %v1694 = vlaneseq
        %v1695 = vshrl.u32 %v1694, 7
        %v1696 = vsub.s32 %v1693, %v1695
        %v1697 = vrot.slane %v1683, %v1696
        %v1698 = vcombine.high %v1690, 0
        %v1699 = vcombine.high %v1697, 0
        %v1700 = vcombine.low %v1562, %v1626
        %v1702 = vunpack.c.l.s4 1983009808
        %v1703 = vunpack.c.0.s8 %v1702
        %v1704 = vlaneseq
        %v1705 = vshrl.u32 %v1704, 7
        %v1706 = vsub.s32 %v1703, %v1705
        %v1707 = vrot.slane %v1700, %v1706
        %v1708 = vcombine.low %v1594, %v1658
        %v1710 = vunpack.c.l.s4 1983009808
        %v1711 = vunpack.c.0.s8 %v1710
        %v1712 = vlaneseq
        %v1713 = vshrl.u32 %v1712, 7
        %v1714 = vsub.s32 %v1711, %v1713
        %v1715 = vrot.slane %v1708, %v1714
        %v1716 = vcombine.low %v1707, %v1715
        %v1717 = vcombine.high %v1707, %v1715
        %v1719 = vunpack.c.l.s4 1934713408
        %v1720 = vunpack.c.0.s8 %v1719
        %v1721 = vlaneseq
        %v1722 = vshrl.u32 %v1721, 7
        %v1723 = vsub.s32 %v1720, %v1722
        %v1724 = vrot.slane %v1716, %v1723
        %v1726 = vunpack.c.l.s4 1934713408
        %v1727 = vunpack.c.0.s8 %v1726
        %v1728 = vlaneseq
        %v1729 = vshrl.u32 %v1728, 7
        %v1730 = vsub.s32 %v1727, %v1729
        %v1731 = vrot.slane %v1717, %v1730
        %v1732 = vcombine.high %v1724, 0
        %v1733 = vcombine.high %v1731, 0
        %v1736 = vpack.i.b16 %v1724, %v1690
        %v1738 = vshrl.u32 %v1690, 16
        %v1739 = vshrl.u32 %v1724, 16
        %v1740 = vpack.i.b16 %v1739, %v1738
        %v1744 = vpack.i.b16 %v1732, %v1698
        %v1746 = vshrl.u32 %v1698, 16
        %v1747 = vshrl.u32 %v1732, 16
        %v1748 = vpack.i.b16 %v1747, %v1746
        %v1752 = vpack.i.b16 %v1731, %v1697
        %v1754 = vshrl.u32 %v1697, 16
        %v1755 = vshrl.u32 %v1731, 16
        %v1756 = vpack.i.b16 %v1755, %v1754
        %v1760 = vpack.i.b16 %v1733, %v1699
        %v1762 = vshrl.u32 %v1699, 16
        %v1763 = vshrl.u32 %v1733, 16
        %v1764 = vpack.i.b16 %v1763, %v1762
        %1766 = vxpose.xlu0.c.b16.start [1/8] %v1736, 128
        %1767 = vxpose.xlu0.c.b16.cont [2/8] 0, 128
        %1768 = vxpose.xlu0.c.b16.cont [3/8] 0, 128
        %1769 = vxpose.xlu0.c.b16.cont [4/8] 0, 128
        %1770 = vxpose.xlu0.c.b16.cont [5/8] 0, 128
        %1771 = vxpose.xlu0.c.b16.cont [6/8] 0, 128
        %1772 = vxpose.xlu0.c.b16.cont [7/8] 0, 128
        %1773 = vxpose.xlu0.c.b16.end [8/8] 0, 128
        %v1774 = vpop.trf.xlu0
        %v1775 = vpop.trf.xlu0
        %v1776 = vpop.trf.xlu0
        %v1777 = vpop.trf.xlu0
        %v1778 = vpop.trf.xlu0
        %v1779 = vpop.trf.xlu0
        %v1780 = vpop.trf.xlu0
        %v1781 = vpop.trf.xlu0
        %1782 = vxpose.xlu0.c.b16.start [1/8] %v1740, 128
        %1783 = vxpose.xlu0.c.b16.cont [2/8] 0, 128
        %1784 = vxpose.xlu0.c.b16.cont [3/8] 0, 128
        %1785 = vxpose.xlu0.c.b16.cont [4/8] 0, 128
        %1786 = vxpose.xlu0.c.b16.cont [5/8] 0, 128
        %1787 = vxpose.xlu0.c.b16.cont [6/8] 0, 128
        %1788 = vxpose.xlu0.c.b16.cont [7/8] 0, 128
        %1789 = vxpose.xlu0.c.b16.end [8/8] 0, 128
        %v1790 = vpop.trf.xlu0
        %v1791 = vpop.trf.xlu0
        %v1792 = vpop.trf.xlu0
        %v1793 = vpop.trf.xlu0
        %v1794 = vpop.trf.xlu0
        %v1795 = vpop.trf.xlu0
        %v1796 = vpop.trf.xlu0
        %v1797 = vpop.trf.xlu0
        %1798 = vxpose.xlu0.c.b16.start [1/8] %v1744, 128
        %1799 = vxpose.xlu0.c.b16.cont [2/8] 0, 128
        %1800 = vxpose.xlu0.c.b16.cont [3/8] 0, 128
        %1801 = vxpose.xlu0.c.b16.cont [4/8] 0, 128
        %1802 = vxpose.xlu0.c.b16.cont [5/8] 0, 128
        %1803 = vxpose.xlu0.c.b16.cont [6/8] 0, 128
        %1804 = vxpose.xlu0.c.b16.cont [7/8] 0, 128
        %1805 = vxpose.xlu0.c.b16.end [8/8] 0, 128
        %v1806 = vpop.trf.xlu0
        %v1807 = vpop.trf.xlu0
        %v1808 = vpop.trf.xlu0
        %v1809 = vpop.trf.xlu0
        %v1810 = vpop.trf.xlu0
        %v1811 = vpop.trf.xlu0
        %v1812 = vpop.trf.xlu0
        %v1813 = vpop.trf.xlu0
        %1814 = vxpose.xlu0.c.b16.start [1/8] %v1748, 128
        %1815 = vxpose.xlu0.c.b16.cont [2/8] 0, 128
        %1816 = vxpose.xlu0.c.b16.cont [3/8] 0, 128
        %1817 = vxpose.xlu0.c.b16.cont [4/8] 0, 128
        %1818 = vxpose.xlu0.c.b16.cont [5/8] 0, 128
        %1819 = vxpose.xlu0.c.b16.cont [6/8] 0, 128
        %1820 = vxpose.xlu0.c.b16.cont [7/8] 0, 128
        %1821 = vxpose.xlu0.c.b16.end [8/8] 0, 128
        %v1822 = vpop.trf.xlu0
        %v1823 = vpop.trf.xlu0
        %v1824 = vpop.trf.xlu0
        %v1825 = vpop.trf.xlu0
        %v1826 = vpop.trf.xlu0
        %v1827 = vpop.trf.xlu0
        %v1828 = vpop.trf.xlu0
        %v1829 = vpop.trf.xlu0
        %1830 = vxpose.xlu0.c.b16.start [1/8] %v1752, 128
        %1831 = vxpose.xlu0.c.b16.cont [2/8] 0, 128
        %1832 = vxpose.xlu0.c.b16.cont [3/8] 0, 128
        %1833 = vxpose.xlu0.c.b16.cont [4/8] 0, 128
        %1834 = vxpose.xlu0.c.b16.cont [5/8] 0, 128
        %1835 = vxpose.xlu0.c.b16.cont [6/8] 0, 128
        %1836 = vxpose.xlu0.c.b16.cont [7/8] 0, 128
        %1837 = vxpose.xlu0.c.b16.end [8/8] 0, 128
        %v1838 = vpop.trf.xlu0
        %v1839 = vpop.trf.xlu0
        %v1840 = vpop.trf.xlu0
        %v1841 = vpop.trf.xlu0
        %v1842 = vpop.trf.xlu0
        %v1843 = vpop.trf.xlu0
        %v1844 = vpop.trf.xlu0
        %v1845 = vpop.trf.xlu0
        %1846 = vxpose.xlu0.c.b16.start [1/8] %v1756, 128
        %1847 = vxpose.xlu0.c.b16.cont [2/8] 0, 128
        %1848 = vxpose.xlu0.c.b16.cont [3/8] 0, 128
        %1849 = vxpose.xlu0.c.b16.cont [4/8] 0, 128
        %1850 = vxpose.xlu0.c.b16.cont [5/8] 0, 128
        %1851 = vxpose.xlu0.c.b16.cont [6/8] 0, 128
        %1852 = vxpose.xlu0.c.b16.cont [7/8] 0, 128
        %1853 = vxpose.xlu0.c.b16.end [8/8] 0, 128
        %v1854 = vpop.trf.xlu0
        %v1855 = vpop.trf.xlu0
        %v1856 = vpop.trf.xlu0
        %v1857 = vpop.trf.xlu0
        %v1858 = vpop.trf.xlu0
        %v1859 = vpop.trf.xlu0
        %v1860 = vpop.trf.xlu0
        %v1861 = vpop.trf.xlu0
        %1862 = vxpose.xlu0.c.b16.start [1/8] %v1760, 128
        %1863 = vxpose.xlu0.c.b16.cont [2/8] 0, 128
        %1864 = vxpose.xlu0.c.b16.cont [3/8] 0, 128
        %1865 = vxpose.xlu0.c.b16.cont [4/8] 0, 128
        %1866 = vxpose.xlu0.c.b16.cont [5/8] 0, 128
        %1867 = vxpose.xlu0.c.b16.cont [6/8] 0, 128
        %1868 = vxpose.xlu0.c.b16.cont [7/8] 0, 128
        %1869 = vxpose.xlu0.c.b16.end [8/8] 0, 128
        %v1870 = vpop.trf.xlu0
        %v1871 = vpop.trf.xlu0
        %v1872 = vpop.trf.xlu0
        %v1873 = vpop.trf.xlu0
        %v1874 = vpop.trf.xlu0
        %v1875 = vpop.trf.xlu0
        %v1876 = vpop.trf.xlu0
        %v1877 = vpop.trf.xlu0
        %1878 = vxpose.xlu0.c.b16.start [1/8] %v1764, 128
        %1879 = vxpose.xlu0.c.b16.cont [2/8] 0, 128
        %1880 = vxpose.xlu0.c.b16.cont [3/8] 0, 128
        %1881 = vxpose.xlu0.c.b16.cont [4/8] 0, 128
        %1882 = vxpose.xlu0.c.b16.cont [5/8] 0, 128
        %1883 = vxpose.xlu0.c.b16.cont [6/8] 0, 128
        %1884 = vxpose.xlu0.c.b16.cont [7/8] 0, 128
        %1885 = vxpose.xlu0.c.b16.end [8/8] 0, 128
        %v1886 = vpop.trf.xlu0
        %v1887 = vpop.trf.xlu0
        %v1888 = vpop.trf.xlu0
        %v1889 = vpop.trf.xlu0
        %v1890 = vpop.trf.xlu0
        %v1891 = vpop.trf.xlu0
        %v1892 = vpop.trf.xlu0
        %v1893 = vpop.trf.xlu0
        %v1894 = vcombine.low %v1774, %v1838
        %v1896 = vunpack.c.l.s4 1983009808
        %v1897 = vunpack.c.0.s8 %v1896
        %v1898 = vlaneseq
        %v1899 = vshrl.u32 %v1898, 7
        %v1900 = vsub.s32 %v1897, %v1899
        %v1901 = vrot.slane %v1894, %v1900
        %v1902 = vcombine.low %v1806, %v1870
        %v1904 = vunpack.c.l.s4 1983009808
        %v1905 = vunpack.c.0.s8 %v1904
        %v1906 = vlaneseq
        %v1907 = vshrl.u32 %v1906, 7
        %v1908 = vsub.s32 %v1905, %v1907
        %v1909 = vrot.slane %v1902, %v1908
        %v1910 = vcombine.low %v1901, %v1909
        %v1912 = vunpack.c.l.s4 1934713408
        %v1913 = vunpack.c.0.s8 %v1912
        %v1914 = vlaneseq
        %v1915 = vshrl.u32 %v1914, 7
        %v1916 = vsub.s32 %v1913, %v1915
        %v1917 = vrot.slane %v1910, %v1916
        %v1918 = vcombine.high %v1917, 0
        %v1919 = vcombine.low %v1790, %v1854
        %v1921 = vunpack.c.l.s4 1983009808
        %v1922 = vunpack.c.0.s8 %v1921
        %v1923 = vlaneseq
        %v1924 = vshrl.u32 %v1923, 7
        %v1925 = vsub.s32 %v1922, %v1924
        %v1926 = vrot.slane %v1919, %v1925
        %v1927 = vcombine.low %v1822, %v1886
        %v1929 = vunpack.c.l.s4 1983009808
        %v1930 = vunpack.c.0.s8 %v1929
        %v1931 = vlaneseq
        %v1932 = vshrl.u32 %v1931, 7
        %v1933 = vsub.s32 %v1930, %v1932
        %v1934 = vrot.slane %v1927, %v1933
        %v1935 = vcombine.low %v1926, %v1934
        %v1937 = vunpack.c.l.s4 1934713408
        %v1938 = vunpack.c.0.s8 %v1937
        %v1939 = vlaneseq
        %v1940 = vshrl.u32 %v1939, 7
        %v1941 = vsub.s32 %v1938, %v1940
        %v1942 = vrot.slane %v1935, %v1941
        %v1943 = vcombine.high %v1942, 0
        %v1946 = vpack.i.b16 %v1942, %v1917
        %v1947 = vshrl.u32 %v1917, 16
        %v1948 = vshrl.u32 %v1942, 16
        %v1949 = vpack.i.b16 %v1948, %v1947
        %v1952 = vpack.i.b16 %v1943, %v1918
        %v1953 = vshrl.u32 %v1918, 16
        %v1954 = vshrl.u32 %v1943, 16
        %v1955 = vpack.i.b16 %v1954, %v1953
        %v1957 = vsel %vm1296, %v1946, 0
        %v1960 = vsel %vm1296, %v1526, 0
        %1962 = vmatprep.subr.bf16.mxu0 0
        %1963 = vmatpush1.bf16.xpose.msra.mxu0 %v1960
        %1964 = vmatprep.subr.bf16.mxu0 0
        %1965 = vmatpush1.bf16.xpose.msra.mxu0 0
        %1966 = vmatprep.subr.bf16.mxu0 0
        %1967 = vmatpush1.bf16.xpose.msra.mxu0 0
        %1968 = vmatprep.subr.bf16.mxu0 0
        %1969 = vmatpush1.bf16.xpose.msra.mxu0 0
        %1970 = vmatprep.subr.bf16.mxu0 0
        %1971 = vmatpush1.bf16.xpose.msra.mxu0 0
        %1972 = vmatprep.subr.bf16.mxu0 0
        %1973 = vmatpush1.bf16.xpose.msra.mxu0 0
        %1974 = vmatprep.subr.bf16.mxu0 0
        %1975 = vmatpush1.bf16.xpose.msra.mxu0 0
        %1976 = vmatprep.subr.bf16.mxu0 0
        %1977 = vmatpush1.bf16.xpose.msra.mxu0 0
        %1978 = vmatprep.subr.bf16.mxu0 0
        %1979 = vmatpush1.bf16.xpose.msra.mxu0 0
        %1980 = vmatprep.subr.bf16.mxu0 0
        %1981 = vmatpush1.bf16.xpose.msra.mxu0 0
        %1982 = vmatprep.subr.bf16.mxu0 0
        %1983 = vmatpush1.bf16.xpose.msra.mxu0 0
        %1984 = vmatprep.subr.bf16.mxu0 0
        %1985 = vmatpush1.bf16.xpose.msra.mxu0 0
        %1986 = vmatprep.subr.bf16.mxu0 0
        %1987 = vmatpush1.bf16.xpose.msra.mxu0 0
        %1988 = vmatprep.subr.bf16.mxu0 0
        %1989 = vmatpush1.bf16.xpose.msra.mxu0 0
        %1990 = vmatprep.subr.bf16.mxu0 0
        %1991 = vmatpush1.bf16.xpose.msra.mxu0 0
        %1992 = vmatprep.subr.bf16.mxu0 0
        %1993 = vmatpush1.bf16.xpose.msra.mxu0 0
        %1994 = vmatprep.mubr.bf16.mxu0 0
        %1995 = vmatmul.mubr.bf16.gmra.mrb[0].mxu0 %v1957
        %v1996 = vpop.f32.mrb[0].mxu0
        %v1997 = vadd.f32 0.0, %v1996
        %v1998 = vpop.f32.mrb[0].mxu0
        %v1999 = vpop.f32.mrb[0].mxu0
        %v2000 = vpop.f32.mrb[0].mxu0
        %2001 = vdwg.mxu0
        %v2003 = vsel %vm1296, %v1949, 0
        %v2006 = vsel %vm1296, %v1527, 0
        %2008 = vmatprep.subr.bf16.mxu0 0
        %2009 = vmatpush1.bf16.xpose.msra.mxu0 %v2006
        %2010 = vmatprep.subr.bf16.mxu0 0
        %2011 = vmatpush1.bf16.xpose.msra.mxu0 0
        %2012 = vmatprep.subr.bf16.mxu0 0
        %2013 = vmatpush1.bf16.xpose.msra.mxu0 0
        %2014 = vmatprep.subr.bf16.mxu0 0
        %2015 = vmatpush1.bf16.xpose.msra.mxu0 0
        %2016 = vmatprep.subr.bf16.mxu0 0
        %2017 = vmatpush1.bf16.xpose.msra.mxu0 0
        %2018 = vmatprep.subr.bf16.mxu0 0
        %2019 = vmatpush1.bf16.xpose.msra.mxu0 0
        %2020 = vmatprep.subr.bf16.mxu0 0
        %2021 = vmatpush1.bf16.xpose.msra.mxu0 0
        %2022 = vmatprep.subr.bf16.mxu0 0
        %2023 = vmatpush1.bf16.xpose.msra.mxu0 0
        %2024 = vmatprep.subr.bf16.mxu0 0
        %2025 = vmatpush1.bf16.xpose.msra.mxu0 0
        %2026 = vmatprep.subr.bf16.mxu0 0
        %2027 = vmatpush1.bf16.xpose.msra.mxu0 0
        %2028 = vmatprep.subr.bf16.mxu0 0
        %2029 = vmatpush1.bf16.xpose.msra.mxu0 0
        %2030 = vmatprep.subr.bf16.mxu0 0
        %2031 = vmatpush1.bf16.xpose.msra.mxu0 0
        %2032 = vmatprep.subr.bf16.mxu0 0
        %2033 = vmatpush1.bf16.xpose.msra.mxu0 0
        %2034 = vmatprep.subr.bf16.mxu0 0
        %2035 = vmatpush1.bf16.xpose.msra.mxu0 0
        %2036 = vmatprep.subr.bf16.mxu0 0
        %2037 = vmatpush1.bf16.xpose.msra.mxu0 0
        %2038 = vmatprep.subr.bf16.mxu0 0
        %2039 = vmatpush1.bf16.xpose.msra.mxu0 0
        %2040 = vmatprep.mubr.bf16.mxu0 0
        %2041 = vmatmul.mubr.bf16.gmra.mrb[0].mxu0 %v2003
        %v2042 = vpop.f32.mrb[0].mxu0
        %v2043 = vadd.f32 0.0, %v2042
        %v2044 = vpop.f32.mrb[0].mxu0
        %v2045 = vpop.f32.mrb[0].mxu0
        %v2046 = vpop.f32.mrb[0].mxu0
        %2047 = vdwg.mxu0
        %v2049 = vsel %vm1296, %v1952, 0
        %v2052 = vsel %vm1296, %v1528, 0
        %2054 = vmatprep.subr.bf16.mxu0 0
        %2055 = vmatpush1.bf16.xpose.msra.mxu0 %v2052
        %2056 = vmatprep.subr.bf16.mxu0 0
        %2057 = vmatpush1.bf16.xpose.msra.mxu0 0
        %2058 = vmatprep.subr.bf16.mxu0 0
        %2059 = vmatpush1.bf16.xpose.msra.mxu0 0
        %2060 = vmatprep.subr.bf16.mxu0 0
        %2061 = vmatpush1.bf16.xpose.msra.mxu0 0
        %2062 = vmatprep.subr.bf16.mxu0 0
        %2063 = vmatpush1.bf16.xpose.msra.mxu0 0
        %2064 = vmatprep.subr.bf16.mxu0 0
        %2065 = vmatpush1.bf16.xpose.msra.mxu0 0
        %2066 = vmatprep.subr.bf16.mxu0 0
        %2067 = vmatpush1.bf16.xpose.msra.mxu0 0
        %2068 = vmatprep.subr.bf16.mxu0 0
        %2069 = vmatpush1.bf16.xpose.msra.mxu0 0
        %2070 = vmatprep.subr.bf16.mxu0 0
        %2071 = vmatpush1.bf16.xpose.msra.mxu0 0
        %2072 = vmatprep.subr.bf16.mxu0 0
        %2073 = vmatpush1.bf16.xpose.msra.mxu0 0
        %2074 = vmatprep.subr.bf16.mxu0 0
        %2075 = vmatpush1.bf16.xpose.msra.mxu0 0
        %2076 = vmatprep.subr.bf16.mxu0 0
        %2077 = vmatpush1.bf16.xpose.msra.mxu0 0
        %2078 = vmatprep.subr.bf16.mxu0 0
        %2079 = vmatpush1.bf16.xpose.msra.mxu0 0
        %2080 = vmatprep.subr.bf16.mxu0 0
        %2081 = vmatpush1.bf16.xpose.msra.mxu0 0
        %2082 = vmatprep.subr.bf16.mxu0 0
        %2083 = vmatpush1.bf16.xpose.msra.mxu0 0
        %2084 = vmatprep.subr.bf16.mxu0 0
        %2085 = vmatpush1.bf16.xpose.msra.mxu0 0
        %2086 = vmatprep.mubr.bf16.mxu0 0
        %2087 = vmatmul.mubr.bf16.gmra.mrb[0].mxu0 %v2049
        %v2088 = vpop.f32.mrb[0].mxu0
        %v2089 = vadd.f32 0.0, %v2088
        %v2090 = vpop.f32.mrb[0].mxu0
        %v2091 = vpop.f32.mrb[0].mxu0
        %v2092 = vpop.f32.mrb[0].mxu0
        %2093 = vdwg.mxu0
        %v2095 = vsel %vm1296, %v1955, 0
        %v2098 = vsel %vm1296, %v1529, 0
        %2100 = vmatprep.subr.bf16.mxu0 0
        %2101 = vmatpush1.bf16.xpose.msra.mxu0 %v2098
        %2102 = vmatprep.subr.bf16.mxu0 0
        %2103 = vmatpush1.bf16.xpose.msra.mxu0 0
        %2104 = vmatprep.subr.bf16.mxu0 0
        %2105 = vmatpush1.bf16.xpose.msra.mxu0 0
        %2106 = vmatprep.subr.bf16.mxu0 0
        %2107 = vmatpush1.bf16.xpose.msra.mxu0 0
        %2108 = vmatprep.subr.bf16.mxu0 0
        %2109 = vmatpush1.bf16.xpose.msra.mxu0 0
        %2110 = vmatprep.subr.bf16.mxu0 0
        %2111 = vmatpush1.bf16.xpose.msra.mxu0 0
        %2112 = vmatprep.subr.bf16.mxu0 0
        %2113 = vmatpush1.bf16.xpose.msra.mxu0 0
        %2114 = vmatprep.subr.bf16.mxu0 0
        %2115 = vmatpush1.bf16.xpose.msra.mxu0 0
        %2116 = vmatprep.subr.bf16.mxu0 0
        %2117 = vmatpush1.bf16.xpose.msra.mxu0 0
        %2118 = vmatprep.subr.bf16.mxu0 0
        %2119 = vmatpush1.bf16.xpose.msra.mxu0 0
        %2120 = vmatprep.subr.bf16.mxu0 0
        %2121 = vmatpush1.bf16.xpose.msra.mxu0 0
        %2122 = vmatprep.subr.bf16.mxu0 0
        %2123 = vmatpush1.bf16.xpose.msra.mxu0 0
        %2124 = vmatprep.subr.bf16.mxu0 0
        %2125 = vmatpush1.bf16.xpose.msra.mxu0 0
        %2126 = vmatprep.subr.bf16.mxu0 0
        %2127 = vmatpush1.bf16.xpose.msra.mxu0 0
        %2128 = vmatprep.subr.bf16.mxu0 0
        %2129 = vmatpush1.bf16.xpose.msra.mxu0 0
        %2130 = vmatprep.subr.bf16.mxu0 0
        %2131 = vmatpush1.bf16.xpose.msra.mxu0 0
        %2132 = vmatprep.mubr.bf16.mxu0 0
        %2133 = vmatmul.mubr.bf16.gmra.mrb[0].mxu0 %v2095
        %v2134 = vpop.f32.mrb[0].mxu0
        %v2135 = vadd.f32 0.0, %v2134
        %v2136 = vpop.f32.mrb[0].mxu0
        %v2137 = vpop.f32.mrb[0].mxu0
        %v2138 = vpop.f32.mrb[0].mxu0
        %2139 = vdwg.mxu0
        %2140 = vxpose.xlu0.b32.start [1/16] %v1997, 128
        %2141 = vxpose.xlu0.b32.cont [2/16] 0.0, 128
        %2142 = vxpose.xlu0.b32.cont [3/16] 0.0, 128
        %2143 = vxpose.xlu0.b32.cont [4/16] 0.0, 128
        %2144 = vxpose.xlu0.b32.cont [5/16] 0.0, 128
        %2145 = vxpose.xlu0.b32.cont [6/16] 0.0, 128
        %2146 = vxpose.xlu0.b32.cont [7/16] 0.0, 128
        %2147 = vxpose.xlu0.b32.cont [8/16] 0.0, 128
        %2148 = vxpose.xlu0.b32.cont [9/16] 0.0, 128
        %2149 = vxpose.xlu0.b32.cont [10/16] 0.0, 128
        %2150 = vxpose.xlu0.b32.cont [11/16] 0.0, 128
        %2151 = vxpose.xlu0.b32.cont [12/16] 0.0, 128
        %2152 = vxpose.xlu0.b32.cont [13/16] 0.0, 128
        %2153 = vxpose.xlu0.b32.cont [14/16] 0.0, 128
        %2154 = vxpose.xlu0.b32.cont [15/16] 0.0, 128
        %2155 = vxpose.xlu0.b32.end [16/16] 0.0, 128
        %v2156 = vpop.trf.xlu0
        %v2157 = vpop.trf.xlu0
        %v2158 = vpop.trf.xlu0
        %v2159 = vpop.trf.xlu0
        %v2160 = vpop.trf.xlu0
        %v2161 = vpop.trf.xlu0
        %v2162 = vpop.trf.xlu0
        %v2163 = vpop.trf.xlu0
        %v2164 = vpop.trf.xlu0
        %v2165 = vpop.trf.xlu0
        %v2166 = vpop.trf.xlu0
        %v2167 = vpop.trf.xlu0
        %v2168 = vpop.trf.xlu0
        %v2169 = vpop.trf.xlu0
        %v2170 = vpop.trf.xlu0
        %v2171 = vpop.trf.xlu0
        %2172 = vxpose.xlu0.b32.start [1/16] %v2043, 128
        %2173 = vxpose.xlu0.b32.cont [2/16] 0.0, 128
        %2174 = vxpose.xlu0.b32.cont [3/16] 0.0, 128
        %2175 = vxpose.xlu0.b32.cont [4/16] 0.0, 128
        %2176 = vxpose.xlu0.b32.cont [5/16] 0.0, 128
        %2177 = vxpose.xlu0.b32.cont [6/16] 0.0, 128
        %2178 = vxpose.xlu0.b32.cont [7/16] 0.0, 128
        %2179 = vxpose.xlu0.b32.cont [8/16] 0.0, 128
        %2180 = vxpose.xlu0.b32.cont [9/16] 0.0, 128
        %2181 = vxpose.xlu0.b32.cont [10/16] 0.0, 128
        %2182 = vxpose.xlu0.b32.cont [11/16] 0.0, 128
        %2183 = vxpose.xlu0.b32.cont [12/16] 0.0, 128
        %2184 = vxpose.xlu0.b32.cont [13/16] 0.0, 128
        %2185 = vxpose.xlu0.b32.cont [14/16] 0.0, 128
        %2186 = vxpose.xlu0.b32.cont [15/16] 0.0, 128
        %2187 = vxpose.xlu0.b32.end [16/16] 0.0, 128
        %v2188 = vpop.trf.xlu0
        %v2189 = vpop.trf.xlu0
        %v2190 = vpop.trf.xlu0
        %v2191 = vpop.trf.xlu0
        %v2192 = vpop.trf.xlu0
        %v2193 = vpop.trf.xlu0
        %v2194 = vpop.trf.xlu0
        %v2195 = vpop.trf.xlu0
        %v2196 = vpop.trf.xlu0
        %v2197 = vpop.trf.xlu0
        %v2198 = vpop.trf.xlu0
        %v2199 = vpop.trf.xlu0
        %v2200 = vpop.trf.xlu0
        %v2201 = vpop.trf.xlu0
        %v2202 = vpop.trf.xlu0
        %v2203 = vpop.trf.xlu0
        %2204 = vxpose.xlu0.b32.start [1/16] %v2089, 128
        %2205 = vxpose.xlu0.b32.cont [2/16] 0.0, 128
        %2206 = vxpose.xlu0.b32.cont [3/16] 0.0, 128
        %2207 = vxpose.xlu0.b32.cont [4/16] 0.0, 128
        %2208 = vxpose.xlu0.b32.cont [5/16] 0.0, 128
        %2209 = vxpose.xlu0.b32.cont [6/16] 0.0, 128
        %2210 = vxpose.xlu0.b32.cont [7/16] 0.0, 128
        %2211 = vxpose.xlu0.b32.cont [8/16] 0.0, 128
        %2212 = vxpose.xlu0.b32.cont [9/16] 0.0, 128
        %2213 = vxpose.xlu0.b32.cont [10/16] 0.0, 128
        %2214 = vxpose.xlu0.b32.cont [11/16] 0.0, 128
        %2215 = vxpose.xlu0.b32.cont [12/16] 0.0, 128
        %2216 = vxpose.xlu0.b32.cont [13/16] 0.0, 128
        %2217 = vxpose.xlu0.b32.cont [14/16] 0.0, 128
        %2218 = vxpose.xlu0.b32.cont [15/16] 0.0, 128
        %2219 = vxpose.xlu0.b32.end [16/16] 0.0, 128
        %v2220 = vpop.trf.xlu0
        %v2221 = vpop.trf.xlu0
        %v2222 = vpop.trf.xlu0
        %v2223 = vpop.trf.xlu0
        %v2224 = vpop.trf.xlu0
        %v2225 = vpop.trf.xlu0
        %v2226 = vpop.trf.xlu0
        %v2227 = vpop.trf.xlu0
        %v2228 = vpop.trf.xlu0
        %v2229 = vpop.trf.xlu0
        %v2230 = vpop.trf.xlu0
        %v2231 = vpop.trf.xlu0
        %v2232 = vpop.trf.xlu0
        %v2233 = vpop.trf.xlu0
        %v2234 = vpop.trf.xlu0
        %v2235 = vpop.trf.xlu0
        %2236 = vxpose.xlu0.b32.start [1/16] %v2135, 128
        %2237 = vxpose.xlu0.b32.cont [2/16] 0.0, 128
        %2238 = vxpose.xlu0.b32.cont [3/16] 0.0, 128
        %2239 = vxpose.xlu0.b32.cont [4/16] 0.0, 128
        %2240 = vxpose.xlu0.b32.cont [5/16] 0.0, 128
        %2241 = vxpose.xlu0.b32.cont [6/16] 0.0, 128
        %2242 = vxpose.xlu0.b32.cont [7/16] 0.0, 128
        %2243 = vxpose.xlu0.b32.cont [8/16] 0.0, 128
        %2244 = vxpose.xlu0.b32.cont [9/16] 0.0, 128
        %2245 = vxpose.xlu0.b32.cont [10/16] 0.0, 128
        %2246 = vxpose.xlu0.b32.cont [11/16] 0.0, 128
        %2247 = vxpose.xlu0.b32.cont [12/16] 0.0, 128
        %2248 = vxpose.xlu0.b32.cont [13/16] 0.0, 128
        %2249 = vxpose.xlu0.b32.cont [14/16] 0.0, 128
        %2250 = vxpose.xlu0.b32.cont [15/16] 0.0, 128
        %2251 = vxpose.xlu0.b32.end [16/16] 0.0, 128
        %v2252 = vpop.trf.xlu0
        %v2253 = vpop.trf.xlu0
        %v2254 = vpop.trf.xlu0
        %v2255 = vpop.trf.xlu0
        %v2256 = vpop.trf.xlu0
        %v2257 = vpop.trf.xlu0
        %v2258 = vpop.trf.xlu0
        %v2259 = vpop.trf.xlu0
        %v2260 = vpop.trf.xlu0
        %v2261 = vpop.trf.xlu0
        %v2262 = vpop.trf.xlu0
        %v2263 = vpop.trf.xlu0
        %v2264 = vpop.trf.xlu0
        %v2265 = vpop.trf.xlu0
        %v2266 = vpop.trf.xlu0
        %v2267 = vpop.trf.xlu0
        %v2268 = vcombine.low %v2156, %v2220
        %v2269 = vcombine.high %v2156, %v2220
        %v2271 = vunpack.c.l.s4 1983009808
        %v2272 = vunpack.c.0.s8 %v2271
        %v2273 = vlaneseq
        %v2274 = vshrl.u32 %v2273, 7
        %v2275 = vsub.s32 %v2272, %v2274
        %v2276 = vrot.slane %v2268, %v2275
        %v2278 = vunpack.c.l.s4 1983009808
        %v2279 = vunpack.c.0.s8 %v2278
        %v2280 = vlaneseq
        %v2281 = vshrl.u32 %v2280, 7
        %v2282 = vsub.s32 %v2279, %v2281
        %v2283 = vrot.slane %v2269, %v2282
        %v2284 = vcombine.low %v2188, %v2252
        %v2285 = vcombine.high %v2188, %v2252
        %v2287 = vunpack.c.l.s4 1983009808
        %v2288 = vunpack.c.0.s8 %v2287
        %v2289 = vlaneseq
        %v2290 = vshrl.u32 %v2289, 7
        %v2291 = vsub.s32 %v2288, %v2290
        %v2292 = vrot.slane %v2284, %v2291
        %v2294 = vunpack.c.l.s4 1983009808
        %v2295 = vunpack.c.0.s8 %v2294
        %v2296 = vlaneseq
        %v2297 = vshrl.u32 %v2296, 7
        %v2298 = vsub.s32 %v2295, %v2297
        %v2299 = vrot.slane %v2285, %v2298
        %v2300 = vcombine.low %v2276, %v2292
        %v2301 = vcombine.high %v2276, %v2292
        %v2303 = vunpack.c.l.s4 1934713408
        %v2304 = vunpack.c.0.s8 %v2303
        %v2305 = vlaneseq
        %v2306 = vshrl.u32 %v2305, 7
        %v2307 = vsub.s32 %v2304, %v2306
        %v2308 = vrot.slane %v2300, %v2307
        %v2310 = vunpack.c.l.s4 1934713408
        %v2311 = vunpack.c.0.s8 %v2310
        %v2312 = vlaneseq
        %v2313 = vshrl.u32 %v2312, 7
        %v2314 = vsub.s32 %v2311, %v2313
        %v2315 = vrot.slane %v2301, %v2314
        %v2316 = vcombine.low %v2283, %v2299
        %v2317 = vcombine.high %v2283, %v2299
        %v2319 = vunpack.c.l.s4 1934713408
        %v2320 = vunpack.c.0.s8 %v2319
        %v2321 = vlaneseq
        %v2322 = vshrl.u32 %v2321, 7
        %v2323 = vsub.s32 %v2320, %v2322
        %v2324 = vrot.slane %v2316, %v2323
        %v2326 = vunpack.c.l.s4 1934713408
        %v2327 = vunpack.c.0.s8 %v2326
        %v2328 = vlaneseq
        %v2329 = vshrl.u32 %v2328, 7
        %v2330 = vsub.s32 %v2327, %v2329
        %v2331 = vrot.slane %v2317, %v2330
        %v2332 = vcombine.high %v2308, 0.0
        %v2333 = vcombine.high %v2315, 0.0
        %v2334 = vcombine.high %v2324, 0.0
        %v2335 = vcombine.high %v2331, 0.0
        %v2336 = vcombine.low %v2308, %v2315
        %v2338 = vunpack.c.l.s4 1983009808
        %v2339 = vunpack.c.0.s8 %v2338
        %v2340 = vlaneseq
        %v2341 = vshrl.u32 %v2340, 7
        %v2342 = vsub.s32 %v2339, %v2341
        %v2343 = vrot.slane %v2336, %v2342
        %v2344 = vcombine.low %v2332, %v2333
        %v2346 = vunpack.c.l.s4 1983009808
        %v2347 = vunpack.c.0.s8 %v2346
        %v2348 = vlaneseq
        %v2349 = vshrl.u32 %v2348, 7
        %v2350 = vsub.s32 %v2347, %v2349
        %v2351 = vrot.slane %v2344, %v2350
        %v2352 = vcombine.low %v2324, %v2331
        %v2354 = vunpack.c.l.s4 1983009808
        %v2355 = vunpack.c.0.s8 %v2354
        %v2356 = vlaneseq
        %v2357 = vshrl.u32 %v2356, 7
        %v2358 = vsub.s32 %v2355, %v2357
        %v2359 = vrot.slane %v2352, %v2358
        %v2360 = vcombine.low %v2334, %v2335
        %v2362 = vunpack.c.l.s4 1983009808
        %v2363 = vunpack.c.0.s8 %v2362
        %v2364 = vlaneseq
        %v2365 = vshrl.u32 %v2364, 7
        %v2366 = vsub.s32 %v2363, %v2365
        %v2367 = vrot.slane %v2360, %v2366
        %v2368 = vcombine.low %v2343, %v2351
        %v2369 = vcombine.high %v2343, %v2351
        %v2371 = vunpack.c.l.s4 1934713408
        %v2372 = vunpack.c.0.s8 %v2371
        %v2373 = vlaneseq
        %v2374 = vshrl.u32 %v2373, 7
        %v2375 = vsub.s32 %v2372, %v2374
        %v2376 = vrot.slane %v2368, %v2375
        %v2378 = vunpack.c.l.s4 1934713408
        %v2379 = vunpack.c.0.s8 %v2378
        %v2380 = vlaneseq
        %v2381 = vshrl.u32 %v2380, 7
        %v2382 = vsub.s32 %v2379, %v2381
        %v2383 = vrot.slane %v2369, %v2382
        %v2384 = vcombine.low %v2359, %v2367
        %v2385 = vcombine.high %v2359, %v2367
        %v2387 = vunpack.c.l.s4 1934713408
        %v2388 = vunpack.c.0.s8 %v2387
        %v2389 = vlaneseq
        %v2390 = vshrl.u32 %v2389, 7
        %v2391 = vsub.s32 %v2388, %v2390
        %v2392 = vrot.slane %v2384, %v2391
        %v2394 = vunpack.c.l.s4 1934713408
        %v2395 = vunpack.c.0.s8 %v2394
        %v2396 = vlaneseq
        %v2397 = vshrl.u32 %v2396, 7
        %v2398 = vsub.s32 %v2395, %v2397
        %v2399 = vrot.slane %v2385, %v2398
        %v2400 = vcombine.low %v2376, %v2392
        %v2401 = vcombine.high %v2376, %v2392
        %v2402 = vcombine.low %v2383, %v2399
        %v2403 = vcombine.high %v2383, %v2399
        %2405 = vrot.lane.b32.xlu0 %v2401, 8
        %v2406 = vpop.permute.xlu0 %2405
        %2409 = vrot.lane.b32.xlu0 %v2402, 16
        %v2410 = vpop.permute.xlu0 %2409
        %2413 = vrot.lane.b32.xlu0 %v2403, 24
        %v2414 = vpop.permute.xlu0 %2413
        %v2416 = vsel %vm1296, %v2400, %v2406
        %vm2417 = vcmask 130048
        %v2418 = vsel %vm2417, %v2416, %v2410
        %vm2419 = vcmask 195584
        %v2420 = vsel %vm2419, %v2418, %v2414
        %v2421 = vpack.c.bf16 %v2420, %v2420
        %v2422 = vld [vmem:[%s4] sm:$0xf]
        %v2423 = vld [vmem:[%s4 + $0x4] sm:$0xf]
        %v2424 = vld [vmem:[%s4 + $0x8] sm:$0xf]
        %v2425 = vld [vmem:[%s4 + $0xc] sm:$0xf]
        %v2426 = vld [vmem:[%s5] sm:$0x1]
        %v2428 = vlaneseq
        %v2429 = vshrl.u32 %v2428, 7
        %v2430 = vsub.s32 0, %v2429
        %v2431 = vrot.slane %v2426, %v2430
        %v2437 = vunpack.c.l.b16 %v2422
        %v2438 = vunpack.c.l.b16 %v2423
        %v2439 = vunpack.c.l.b16 %v2424
        %v2440 = vunpack.c.l.b16 %v2425
        %v2441 = vpack.c.b16 %v2438, %v2437
        %v2442 = vpack.c.b16 %v2440, %v2439
        %v2446 = vsel %vm503, %v2421, 0
        %2448 = vmatprep.subr.bf16.mxu0 0
        %2449 = vmatpush1.bf16.msra.mxu0 %v2441
        %2450 = vmatprep.subr.bf16.mxu0 0
        %2451 = vmatpush1.bf16.msra.mxu0 %v2442
        %2452 = vmatprep.subr.bf16.mxu0 0
        %2453 = vmatpush1.bf16.msra.mxu0 0
        %2454 = vmatprep.subr.bf16.mxu0 0
        %2455 = vmatpush1.bf16.msra.mxu0 0
        %2456 = vmatprep.subr.bf16.mxu0 0
        %2457 = vmatpush1.bf16.msra.mxu0 0
        %2458 = vmatprep.subr.bf16.mxu0 0
        %2459 = vmatpush1.bf16.msra.mxu0 0
        %2460 = vmatprep.subr.bf16.mxu0 0
        %2461 = vmatpush1.bf16.msra.mxu0 0
        %2462 = vmatprep.subr.bf16.mxu0 0
        %2463 = vmatpush1.bf16.msra.mxu0 0
        %2464 = vmatprep.subr.bf16.mxu0 0
        %2465 = vmatpush1.bf16.msra.mxu0 0
        %2466 = vmatprep.subr.bf16.mxu0 0
        %2467 = vmatpush1.bf16.msra.mxu0 0
        %2468 = vmatprep.subr.bf16.mxu0 0
        %2469 = vmatpush1.bf16.msra.mxu0 0
        %2470 = vmatprep.subr.bf16.mxu0 0
        %2471 = vmatpush1.bf16.msra.mxu0 0
        %2472 = vmatprep.subr.bf16.mxu0 0
        %2473 = vmatpush1.bf16.msra.mxu0 0
        %2474 = vmatprep.subr.bf16.mxu0 0
        %2475 = vmatpush1.bf16.msra.mxu0 0
        %2476 = vmatprep.subr.bf16.mxu0 0
        %2477 = vmatpush1.bf16.msra.mxu0 0
        %2478 = vmatprep.subr.bf16.mxu0 0
        %2479 = vmatpush1.bf16.msra.mxu0 0
        %2480 = vmatprep.mubr.bf16.mxu0 0
        %2481 = vmatmul.mubr.bf16.gmra.mrb[0].mxu0 %v2446
        %v2482 = vpop.f32.mrb[0].mxu0
        %v2483 = vadd.f32 %v2431, %v2482
        %v2484 = vpop.f32.mrb[0].mxu0
        %v2485 = vpop.f32.mrb[0].mxu0
        %v2486 = vpop.f32.mrb[0].mxu0
        %2487 = vdwg.mxu0
        %v2488 = vadd.f32 %v478, %v2483
        %v2489 = vld [vmem:[%s6] sm:$0x1]
        %v2490 = vld [vmem:[%s7] sm:$0x1]
        %v2491 = vsel %vm503, %v2488, 0.0
        %2492 = vadd.xlane.f32.xlu0 %v2491
        %v2493 = vpop.xlane.xlu0 %2492
        %v2494 = vrcp.pop 32.0
        %v2495 = vmul.f32 %v2493, %v2494
        %v2496 = vsub.f32 %v2488, %v2495
        %v2497 = vmul.f32 %v2496, %v2496
        %v2498 = vsel %vm503, %v2497, 0.0
        %2499 = vadd.xlane.f32.xlu0 %v2498
        %v2500 = vpop.xlane.xlu0 %2499
        %v2501 = vmul.f32 %v2500, %v2494
        %v2502 = vadd.f32 %v2501, 1e-05
        %v2503 = vrsqrt.pop %v2502
        %v2504 = vmul.f32 %v2496, %v2503
        %v2506 = vlaneseq
        %v2507 = vshrl.u32 %v2506, 7
        %v2508 = vsub.s32 0, %v2507
        %v2509 = vrot.slane %v2489, %v2508
        %v2511 = vmul.f32 %v2504, %v2509
        %v2513 = vlaneseq
        %v2514 = vshrl.u32 %v2513, 7
        %v2515 = vsub.s32 0, %v2514
        %v2516 = vrot.slane %v2490, %v2515
        %v2518 = vadd.f32 %v2511, %v2516
        %v2519 = vpack.c.bf16 %v2518, %v2518
        %v2520 = vld [vmem:[%s8] sm:$0xf]
        %v2521 = vld [vmem:[%s8 + $0x4] sm:$0xf]
        %v2522 = vld [vmem:[%s8 + $0x8] sm:$0xf]
        %v2523 = vld [vmem:[%s8 + $0xc] sm:$0xf]
        %v2524 = vld [vmem:[%s9] sm:$0x1]
        %v2526 = vlaneseq
        %v2527 = vshrl.u32 %v2526, 7
        %v2528 = vsub.s32 0, %v2527
        %v2529 = vrot.slane %v2524, %v2528
        %v2535 = vunpack.c.l.b16 %v2520
        %v2536 = vunpack.c.l.b16 %v2521
        %v2537 = vunpack.c.l.b16 %v2522
        %v2538 = vunpack.c.l.b16 %v2523
        %v2539 = vpack.c.b16 %v2536, %v2535
        %v2540 = vpack.c.b16 %v2538, %v2537
        %v2544 = vsel %vm503, %v2519, 0
        %2546 = vmatprep.subr.bf16.mxu0 0
        %2547 = vmatpush1.bf16.msra.mxu0 %v2539
        %2548 = vmatprep.subr.bf16.mxu0 0
        %2549 = vmatpush1.bf16.msra.mxu0 %v2540
        %2550 = vmatprep.subr.bf16.mxu0 0
        %2551 = vmatpush1.bf16.msra.mxu0 0
        %2552 = vmatprep.subr.bf16.mxu0 0
        %2553 = vmatpush1.bf16.msra.mxu0 0
        %2554 = vmatprep.subr.bf16.mxu0 0
        %2555 = vmatpush1.bf16.msra.mxu0 0
        %2556 = vmatprep.subr.bf16.mxu0 0
        %2557 = vmatpush1.bf16.msra.mxu0 0
        %2558 = vmatprep.subr.bf16.mxu0 0
        %2559 = vmatpush1.bf16.msra.mxu0 0
        %2560 = vmatprep.subr.bf16.mxu0 0
        %2561 = vmatpush1.bf16.msra.mxu0 0
        %2562 = vmatprep.subr.bf16.mxu0 0
        %2563 = vmatpush1.bf16.msra.mxu0 0
        %2564 = vmatprep.subr.bf16.mxu0 0
        %2565 = vmatpush1.bf16.msra.mxu0 0
        %2566 = vmatprep.subr.bf16.mxu0 0
        %2567 = vmatpush1.bf16.msra.mxu0 0
        %2568 = vmatprep.subr.bf16.mxu0 0
        %2569 = vmatpush1.bf16.msra.mxu0 0
        %2570 = vmatprep.subr.bf16.mxu0 0
        %2571 = vmatpush1.bf16.msra.mxu0 0
        %2572 = vmatprep.subr.bf16.mxu0 0
        %2573 = vmatpush1.bf16.msra.mxu0 0
        %2574 = vmatprep.subr.bf16.mxu0 0
        %2575 = vmatpush1.bf16.msra.mxu0 0
        %2576 = vmatprep.subr.bf16.mxu0 0
        %2577 = vmatpush1.bf16.msra.mxu0 0
        %2578 = vmatprep.mubr.bf16.mxu0 0
        %2579 = vmatmul.mubr.bf16.gmra.mrb[0].mxu0 %v2544
        %v2580 = vpop.f32.mrb[0].mxu0
        %v2581 = vadd.f32 %v2529, %v2580
        %v2582 = vpop.f32.mrb[0].mxu0
        %v2583 = vpop.f32.mrb[0].mxu0
        %v2584 = vpop.f32.mrb[0].mxu0
        %2585 = vdwg.mxu0
        %v2586 = vmul.f32 %v2581, 0.5
        %v2587 = vmul.f32 %v2581, 0.044715
        %v2588 = vmul.f32 %v2587, %v2581
        %v2589 = vmul.f32 %v2588, %v2581
        %v2590 = vadd.f32 %v2581, %v2589
        %v2591 = vmul.f32 %v2590, 0.7978846
        %v2592 = vtanh.pop %v2591
        %v2593 = vadd.f32 %v2592, 1.0
        %v2594 = vmul.f32 %v2586, %v2593
        %v2595 = vpack.c.bf16 %v2594, %v2594
        %v2596 = vld [vmem:[%s10] sm:$0xf]
        %v2597 = vld [vmem:[%s10 + $0x4] sm:$0xf]
        %v2598 = vld [vmem:[%s10 + $0x8] sm:$0xf]
        %v2599 = vld [vmem:[%s10 + $0xc] sm:$0xf]
        %v2600 = vld [vmem:[%s10 + $0x10] sm:$0xf]
        %v2601 = vld [vmem:[%s10 + $0x14] sm:$0xf]
        %v2602 = vld [vmem:[%s10 + $0x18] sm:$0xf]
        %v2603 = vld [vmem:[%s10 + $0x1c] sm:$0xf]
        %v2604 = vld [vmem:[%s11] sm:$0x1]
        %v2606 = vlaneseq
        %v2607 = vshrl.u32 %v2606, 7
        %v2608 = vsub.s32 0, %v2607
        %v2609 = vrot.slane %v2604, %v2608
        %v2619 = vunpack.c.l.b16 %v2596
        %v2620 = vunpack.c.l.b16 %v2597
        %v2621 = vunpack.c.l.b16 %v2598
        %v2622 = vunpack.c.l.b16 %v2599
        %v2623 = vunpack.c.l.b16 %v2600
        %v2624 = vunpack.c.l.b16 %v2601
        %v2625 = vunpack.c.l.b16 %v2602
        %v2626 = vunpack.c.l.b16 %v2603
        %v2627 = vpack.c.b16 %v2620, %v2619
        %v2628 = vpack.c.b16 %v2622, %v2621
        %v2629 = vpack.c.b16 %v2624, %v2623
        %v2630 = vpack.c.b16 %v2626, %v2625
        %vm2635 = vcmask 523264
        %v2637 = vsel %vm2635, %v2595, 0
        %2639 = vmatprep.subr.bf16.mxu0 0
        %2640 = vmatpush1.bf16.msra.mxu0 %v2627
        %2641 = vmatprep.subr.bf16.mxu0 0
        %2642 = vmatpush1.bf16.msra.mxu0 %v2628
        %2643 = vmatprep.subr.bf16.mxu0 0
        %2644 = vmatpush1.bf16.msra.mxu0 %v2629
        %2645 = vmatprep.subr.bf16.mxu0 0
        %2646 = vmatpush1.bf16.msra.mxu0 %v2630
        %2647 = vmatprep.subr.bf16.mxu0 0
        %2648 = vmatpush1.bf16.msra.mxu0 0
        %2649 = vmatprep.subr.bf16.mxu0 0
        %2650 = vmatpush1.bf16.msra.mxu0 0
        %2651 = vmatprep.subr.bf16.mxu0 0
        %2652 = vmatpush1.bf16.msra.mxu0 0
        %2653 = vmatprep.subr.bf16.mxu0 0
        %2654 = vmatpush1.bf16.msra.mxu0 0
        %2655 = vmatprep.subr.bf16.mxu0 0
        %2656 = vmatpush1.bf16.msra.mxu0 0
        %2657 = vmatprep.subr.bf16.mxu0 0
        %2658 = vmatpush1.bf16.msra.mxu0 0
        %2659 = vmatprep.subr.bf16.mxu0 0
        %2660 = vmatpush1.bf16.msra.mxu0 0
        %2661 = vmatprep.subr.bf16.mxu0 0
        %2662 = vmatpush1.bf16.msra.mxu0 0
        %2663 = vmatprep.subr.bf16.mxu0 0
        %2664 = vmatpush1.bf16.msra.mxu0 0
        %2665 = vmatprep.subr.bf16.mxu0 0
        %2666 = vmatpush1.bf16.msra.mxu0 0
        %2667 = vmatprep.subr.bf16.mxu0 0
        %2668 = vmatpush1.bf16.msra.mxu0 0
        %2669 = vmatprep.subr.bf16.mxu0 0
        %2670 = vmatpush1.bf16.msra.mxu0 0
        %2671 = vmatprep.mubr.bf16.mxu0 0
        %2672 = vmatmul.mubr.bf16.gmra.mrb[0].mxu0 %v2637
        %v2673 = vpop.f32.mrb[0].mxu0
        %v2674 = vadd.f32 %v2609, %v2673
        %v2675 = vpop.f32.mrb[0].mxu0
        %v2676 = vpop.f32.mrb[0].mxu0
        %v2677 = vpop.f32.mrb[0].mxu0
        %2678 = vdwg.mxu0
        %v2679 = vadd.f32 %v2518, %v2674
        %v2680 = vld [vmem:[%s12] sm:$0x1]
        %v2681 = vld [vmem:[%s13] sm:$0x1]
        %v2682 = vsel %vm503, %v2679, 0.0
        %2683 = vadd.xlane.f32.xlu0 %v2682
        %v2684 = vpop.xlane.xlu0 %2683
        %v2685 = vmul.f32 %v2684, %v2494
        %v2686 = vsub.f32 %v2679, %v2685
        %v2687 = vmul.f32 %v2686, %v2686
        %v2688 = vsel %vm503, %v2687, 0.0
        %2689 = vadd.xlane.f32.xlu0 %v2688
        %v2690 = vpop.xlane.xlu0 %2689
        %v2691 = vmul.f32 %v2690, %v2494
        %v2692 = vadd.f32 %v2691, 1e-05
        %v2693 = vrsqrt.pop %v2692
        %v2694 = vmul.f32 %v2686, %v2693
        %v2696 = vlaneseq
        %v2697 = vshrl.u32 %v2696, 7
        %v2698 = vsub.s32 0, %v2697
        %v2699 = vrot.slane %v2680, %v2698
        %v2701 = vmul.f32 %v2694, %v2699
        %v2703 = vlaneseq
        %v2704 = vshrl.u32 %v2703, 7
        %v2705 = vsub.s32 0, %v2704
        %v2706 = vrot.slane %v2681, %v2705
        %v2708 = vadd.f32 %v2701, %v2706
        %2709 = vst.msk [vmem:[%s469] sm:$0xff] %vm503, %v2708
        %s2710 = sand.u32 %s340, 1
        %s2711 = scalar_lea.sflag [#allocation3], %s2710
        %s2712 = sand.u32 %s340, 1
        %s2713 = smul.addr %s2712, 8
        %s2714 = scalar_lea.vmem [#allocation2], %s2713
        // Predicated region
        $region77: #{roberta_encoder_forward.5} parent=75 // pred_check
          %p2715 = pneg %p350
        $region78: #{roberta_encoder_forward.5} parent=75 // pred_check_branch
          %2717 = sbr.rel (%p2715) target = $region80
        $region79: #{roberta_encoder_forward.5} parent=75 // pred_region
          %s2719 = ssub.s32 128, 128
          %2720 = vsyncadd %s2711, %s2719
          %s2721 = smul.addr %s28, 128
          %s2722 = scalar_lea.hbm %s14, %s2721
          %s2724 = sshll.u32 %s2714, 4
          %s2725 = int_to_ptr.vmem [resolvable:$true] %s2724
          %2727 = dma.vmem_to_hbm [thread:$0]  %s2725, 128, %s2722, %s2711
        $region80: #{roberta_encoder_forward.5} parent=75 // pred_fallthru
          _
      $region76: #{roberta_encoder_forward.5} parent=5 // pred_fallthru
        _
      %p2728 = scmp.le.s32.totalorder 2, %s23
      // Predicated region
      $region81: #{roberta_encoder_forward.5} parent=5 // pred_check
        %p2729 = pneg %p2728
      $region82: #{roberta_encoder_forward.5} parent=5 // pred_check_branch
        %2731 = sbr.rel (%p2729) target = $region84
      $region83: #{roberta_encoder_forward.5} parent=5 // pred_region
        %s2732 = ssub.s32 %s23, 2
        // Predicated region
        $region85: #{roberta_encoder_forward.5} parent=83 // pred_check
          %p2733 = pneg %p356
        $region86: #{roberta_encoder_forward.5} parent=83 // pred_check_branch
          %2735 = sbr.rel (%p2733) target = $region88
        $region87: #{roberta_encoder_forward.5} parent=83 // pred_region
          %s2736 = sand.u32 %s341, 1
          %s2737 = scalar_lea.sflag [#allocation3], %s2736
          %s2738 = sand.u32 %s341, 1
          %s2739 = smul.addr %s2738, 8
          %s2740 = scalar_lea.vmem [#allocation2], %s2739
          %2741 = dma.done %s2737, 128
        $region88: #{roberta_encoder_forward.5} parent=83 // pred_fallthru
          _
      $region84: #{roberta_encoder_forward.5} parent=5 // pred_fallthru
        _
    $region6: #{roberta_encoder_forward.5} parent=1 // loop_footer
      %s27 = sadd.s32 1, %s23
    $region7: #{roberta_encoder_forward.5} parent=1 // loop_footer_branch
      %22 = sbr.rel target = $region3
    $region8: #{roberta_encoder_forward.5} parent=1 // loop_exit
      _
    %2742 = vsyncpa [#allocation3], 1
    %s2743 = scalar_lea.sflag [#allocation3], 1
    %2744 = vsyncpa %s2743, 1

</llo_original>
